<compile_context>
chip_gen: v7x
topology: tpu7x:2x2x1
jax: 0.10.0
libtpu: 0.0.40
codegen_flags: <defaults>
</compile_context>

<pallas_src>
import functools

import jax
import jax.numpy as jnp
from jax import lax
from jax.experimental import pallas as pl
from jax.experimental.pallas import tpu as pltpu

EPS = 1e-5                      # nn.BatchNorm2d default eps
LANE = 128                      # TPU lane width: channel dims padded to this
VMEM_LIMIT = 32 * 1024 * 1024   # explicit scoped-VMEM budget (v7x-safe)


def _round_up(x, m):
    return (x + m - 1) // m * m


# ------------------------- Pallas kernels: pass A ---------------------------
# conv (as matmul) + global BN statistics.  The (1, C) outputs scale/shift
# double as running sum / sum-of-squares accumulators (VMEM-resident across
# the grid via a constant output block index) and are converted to the affine
# BN (scale, shift) on the last grid step.

def _finalize_bn(sum_ref, sumsq_ref, g_ref, b_ref, inv_m):
    mean = sum_ref[...] * inv_m
    var = jnp.maximum(sumsq_ref[...] * inv_m - mean * mean, 0.0)
    scale = g_ref[...] * lax.rsqrt(var + EPS)
    shift = b_ref[...] - mean * scale
    sum_ref[...] = scale
    sumsq_ref[...] = shift


def _conv_stats_kernel(cols_ref, w_ref, g_ref, b_ref,
                       y_ref, scale_ref, shift_ref, *, inv_m):
    i = pl.program_id(0)

    @pl.when(i == 0)
    def _init():
        scale_ref[...] = jnp.zeros_like(scale_ref)
        shift_ref[...] = jnp.zeros_like(shift_ref)

    y = jnp.dot(cols_ref[...], w_ref[...], preferred_element_type=jnp.float32)
    y_ref[...] = y
    scale_ref[...] += jnp.sum(y, axis=0, keepdims=True)       # running sum
    shift_ref[...] += jnp.sum(y * y, axis=0, keepdims=True)   # running sumsq

    @pl.when(i == pl.num_programs(0) - 1)
    def _done():
        _finalize_bn(scale_ref, shift_ref, g_ref, b_ref, inv_m)


def _conv_proj_stats_kernel(cols_ref, w_ref, g_ref, b_ref,
                            sx_ref, ws_ref, gs_ref, bs_ref,
                            y_ref, ys_ref, sc_ref, sh_ref, scs_ref, shs_ref,
                            *, inv_m):
    # conv2 matmul + 1x1 projection-shortcut matmul sharing one row-tile grid,
    # so the small 1x1 rides in conv2's DMA/MXU shadow.
    i = pl.program_id(0)

    @pl.when(i == 0)
    def _init():
        sc_ref[...] = jnp.zeros_like(sc_ref)
        sh_ref[...] = jnp.zeros_like(sh_ref)
        scs_ref[...] = jnp.zeros_like(scs_ref)
        shs_ref[...] = jnp.zeros_like(shs_ref)

    y = jnp.dot(cols_ref[...], w_ref[...], preferred_element_type=jnp.float32)
    ys = jnp.dot(sx_ref[...], ws_ref[...], preferred_element_type=jnp.float32)
    y_ref[...] = y
    ys_ref[...] = ys
    sc_ref[...] += jnp.sum(y, axis=0, keepdims=True)
    sh_ref[...] += jnp.sum(y * y, axis=0, keepdims=True)
    scs_ref[...] += jnp.sum(ys, axis=0, keepdims=True)
    shs_ref[...] += jnp.sum(ys * ys, axis=0, keepdims=True)

    @pl.when(i == pl.num_programs(0) - 1)
    def _done():
        _finalize_bn(sc_ref, sh_ref, g_ref, b_ref, inv_m)
        _finalize_bn(scs_ref, shs_ref, gs_ref, bs_ref, inv_m)


# ------------------------- Pallas kernels: pass B ---------------------------
# Cheap per-tile epilogues: normalize (+ residual add) + ReLU.  Pure map ->
# "parallel" grid axis.

def _bn_relu_kernel(y_ref, scale_ref, shift_ref, o_ref):
    o = jnp.maximum(y_ref[...] * scale_ref[...] + shift_ref[...], 0.0)
    o_ref[...] = o.astype(o_ref.dtype)


def _bn_add_relu_proj_kernel(y_ref, sc_ref, sh_ref, ys_ref, scs_ref, shs_ref,
                             o_ref):
    o = (y_ref[...] * sc_ref[...] + sh_ref[...]
         + ys_ref[...] * scs_ref[...] + shs_ref[...])
    o_ref[...] = jnp.maximum(o, 0.0).astype(o_ref.dtype)


def _bn_add_relu_id_kernel(y_ref, sc_ref, sh_ref, sx_ref, o_ref):
    o = y_ref[...] * sc_ref[...] + sh_ref[...] + sx_ref[...]
    o_ref[...] = jnp.maximum(o, 0.0).astype(o_ref.dtype)


# ----------------------------- pallas_call wrappers --------------------------

def _row_spec(tm, c):
    return pl.BlockSpec((tm, c), lambda i: (i, 0))


def _full_spec(shape):
    return pl.BlockSpec(shape, lambda i: (0, 0))


def _conv_stats_call(cols, w, gamma, beta, *, m_real, tm):
    m_pad, k = cols.shape
    cp = w.shape[1]
    kern = functools.partial(_conv_stats_kernel, inv_m=1.0 / m_real)
    stat = jax.ShapeDtypeStruct((1, cp), jnp.float32)
    return pl.pallas_call(
        kern,
        out_shape=(jax.ShapeDtypeStruct((m_pad, cp), jnp.float32), stat, stat),
        grid=(m_pad // tm,),
        in_specs=[_row_spec(tm, k), _full_spec((k, cp)),
                  _full_spec((1, cp)), _full_spec((1, cp))],
        out_specs=(_row_spec(tm, cp), _full_spec((1, cp)), _full_spec((1, cp))),
        compiler_params=pltpu.CompilerParams(
            dimension_semantics=("arbitrary",),     # global BN reduction
            vmem_limit_bytes=VMEM_LIMIT),
    )(cols, w, gamma, beta)


def _conv_proj_stats_call(cols, w, gamma, beta, sx, ws, gammas, betas,
                          *, m_real, tm):
    m_pad, k = cols.shape
    cp = w.shape[1]
    ks = ws.shape[0]
    kern = functools.partial(_conv_proj_stats_kernel, inv_m=1.0 / m_real)
    stat = jax.ShapeDtypeStruct((1, cp), jnp.float32)
    return pl.pallas_call(
        kern,
        out_shape=(jax.ShapeDtypeStruct((m_pad, cp), jnp.float32),
                   jax.ShapeDtypeStruct((m_pad, cp), jnp.float32),
                   stat, stat, stat, stat),
        grid=(m_pad // tm,),
        in_specs=[_row_spec(tm, k), _full_spec((k, cp)),
                  _full_spec((1, cp)), _full_spec((1, cp)),
                  _row_spec(tm, ks), _full_spec((ks, cp)),
                  _full_spec((1, cp)), _full_spec((1, cp))],
        out_specs=(_row_spec(tm, cp), _row_spec(tm, cp),
                   _full_spec((1, cp)), _full_spec((1, cp)),
                   _full_spec((1, cp)), _full_spec((1, cp))),
        compiler_params=pltpu.CompilerParams(
            dimension_semantics=("arbitrary",),
            vmem_limit_bytes=VMEM_LIMIT),
    )(cols, w, gamma, beta, sx, ws, gammas, betas)


def _bn_relu_call(y, scale, shift, *, out_dtype, tm):
    m_pad, cp = y.shape
    return pl.pallas_call(
        _bn_relu_kernel,
        out_shape=jax.ShapeDtypeStruct((m_pad, cp), out_dtype),
        grid=(m_pad // tm,),
        in_specs=[_row_spec(tm, cp), _full_spec((1, cp)), _full_spec((1, cp))],
        out_specs=_row_spec(tm, cp),
        compiler_params=pltpu.CompilerParams(
            dimension_semantics=("parallel",),      # pure map: v7x 2-TC shard
            vmem_limit_bytes=VMEM_LIMIT),
    )(y, scale, shift)


def _bn_add_relu_proj_call(y, sc, sh, ys, scs, shs, *, tm):
    m_pad, cp = y.shape
    return pl.pallas_call(
        _bn_add_relu_proj_kernel,
        out_shape=jax.ShapeDtypeStruct((m_pad, cp), jnp.float32),
        grid=(m_pad // tm,),
        in_specs=[_row_spec(tm, cp), _full_spec((1, cp)), _full_spec((1, cp)),
                  _row_spec(tm, cp), _full_spec((1, cp)), _full_spec((1, cp))],
        out_specs=_row_spec(tm, cp),
        compiler_params=pltpu.CompilerParams(
            dimension_semantics=("parallel",),
            vmem_limit_bytes=VMEM_LIMIT),
    )(y, sc, sh, ys, scs, shs)


def _bn_add_relu_id_call(y, sc, sh, sx, *, tm):
    m_pad, cp = y.shape
    return pl.pallas_call(
        _bn_add_relu_id_kernel,
        out_shape=jax.ShapeDtypeStruct((m_pad, cp), jnp.float32),
        grid=(m_pad // tm,),
        in_specs=[_row_spec(tm, cp), _full_spec((1, cp)), _full_spec((1, cp)),
                  _row_spec(tm, cp)],
        out_specs=_row_spec(tm, cp),
        compiler_params=pltpu.CompilerParams(
            dimension_semantics=("parallel",),
            vmem_limit_bytes=VMEM_LIMIT),
    )(y, sc, sh, sx)


# ------------------------------ JAX glue -------------------------------------

def _im2col_3x3(x_nhwc, stride):
    """3x3 / pad=1 patch extraction (data-movement glue; kept in bf16)."""
    n, h, w, c = x_nhwc.shape
    ho = (h + 2 - 3) // stride + 1
    wo = (w + 2 - 3) // stride + 1
    xp = jnp.pad(x_nhwc, ((0, 0), (1, 1), (1, 1), (0, 0)))
    taps = []
    for dy in range(3):
        for dx in range(3):
            taps.append(xp[:, dy:dy + stride * (ho - 1) + 1:stride,
                           dx:dx + stride * (wo - 1) + 1:stride, :])
    cols = jnp.concatenate(taps, axis=-1)                # (N, Ho, Wo, 9*C)
    return cols.reshape(n * ho * wo, 9 * c), (ho, wo)


def _pad_rows(a, m_pad):
    return jnp.pad(a, ((0, m_pad - a.shape[0]), (0, 0)))


def _pad_weight(w, ci_pad, co_pad):
    """HWIO conv weight -> zero-padded, flattened (kh*kw*ci_pad, co_pad) bf16."""
    kh, kw, ci, co = w.shape
    w = jnp.pad(w, ((0, 0), (0, 0), (0, ci_pad - ci), (0, co_pad - co)))
    return w.reshape(kh * kw * ci_pad, co_pad).astype(jnp.bfloat16)


def _pad_vec(v, c_pad):
    return jnp.pad(v, ((0, 0), (0, c_pad - v.shape[1]))).astype(jnp.float32)


def init_params(key, in_planes, planes):
    ks = jax.random.split(key, 9)

    def rnd(k, shape, scale):
        return (scale * jax.random.normal(k, shape)).astype(jnp.float32)

    # conv weights stored HWIO; BN gamma/beta stored as (1, C) rows.
    return {
        "w1": rnd(ks[0], (3, 3, in_planes, planes), 0.2),
        "g1": rnd(ks[1], (1, planes), 0.1) + 1.0,
        "b1": rnd(ks[2], (1, planes), 0.1),
        "w2": rnd(ks[3], (3, 3, planes, planes), 0.2),
        "g2": rnd(ks[4], (1, planes), 0.1) + 1.0,
        "b2": rnd(ks[5], (1, planes), 0.1),
        "ws": rnd(ks[6], (1, 1, in_planes, planes), 0.2),
        "gs": rnd(ks[7], (1, planes), 0.1) + 1.0,
        "bs": rnd(ks[8], (1, planes), 0.1),
    }


@functools.partial(jax.jit, static_argnums=(2,), static_argnames=("tm",))
def basic_block_forward(x_nchw, params, stride, *, tm=512):
    """Pallas implementation of BasicBlock.forward.  NCHW in, NCHW out."""
    # NOTE: a full network would stay NHWC end-to-end; the two transposes here
    # exist only to honour the module's NCHW interface.
    x = jnp.transpose(x_nchw, (0, 2, 3, 1)).astype(jnp.float32)   # -> NHWC
    n, h, w, cin = x.shape
    planes = params["w1"].shape[-1]
    ci_p = _round_up(cin, LANE)          # lane-aligned channel padding
    co_p = _round_up(planes, LANE)

    x_pad = jnp.pad(x, ((0, 0), (0, 0), (0, 0), (0, ci_p - cin)))
    x_bf = x_pad.astype(jnp.bfloat16)    # bf16 only for matmul operands

    # ---------------- conv1 -> bn1 -> relu ----------------
    cols1, (ho, wo) = _im2col_3x3(x_bf, stride)           # (M, 9*ci_p) bf16
    m = n * ho * wo
    tm = min(tm, _round_up(m, 16))
    m_pad = _round_up(m, tm)             # zero rows don't perturb sum/sumsq
    cols1 = _pad_rows(cols1, m_pad)
    y1, s1, t1 = _conv_stats_call(
        cols1, _pad_weight(params["w1"], ci_p, co_p),
        _pad_vec(params["g1"], co_p), _pad_vec(params["b1"], co_p),
        m_real=m, tm=tm)
    o1 = _bn_relu_call(y1, s1, t1, out_dtype=jnp.bfloat16, tm=tm)

    # ---------------- conv2 -> bn2 (+ shortcut) -> relu ----------------
    cols2, _ = _im2col_3x3(o1[:m].reshape(n, ho, wo, co_p), 1)
    cols2 = _pad_rows(cols2, m_pad)
    w2 = _pad_weight(params["w2"], co_p, co_p)
    g2 = _pad_vec(params["g2"], co_p)
    b2 = _pad_vec(params["b2"], co_p)

    if stride != 1 or cin != planes:                      # projection shortcut
        sx = _pad_rows(x_bf[:, ::stride, ::stride, :].reshape(m, ci_p), m_pad)
        y2, ys, s2, t2, ss, ts = _conv_proj_stats_call(
            cols2, w2, g2, b2,
            sx, _pad_weight(params["ws"], ci_p, co_p),
            _pad_vec(params["gs"], co_p), _pad_vec(params["bs"], co_p),
            m_real=m, tm=tm)
        out = _bn_add_relu_proj_call(y2, s2, t2, ys, ss, ts, tm=tm)
    else:                                                 # identity shortcut
        sx = _pad_rows(x_pad.reshape(m, ci_p), m_pad)     # f32 residual add
        y2, s2, t2 = _conv_stats_call(cols2, w2, g2, b2, m_real=m, tm=tm)
        out = _bn_add_relu_id_call(y2, s2, t2, sx, tm=tm)

    out = out[:m, :planes].reshape(n, ho, wo, planes)
    return jnp.transpose(out, (0, 3, 1, 2))               # NHWC -> NCHW


# ----------------------- pure-JAX reference (for sanity) --------------------

def basic_block_reference(x_nchw, params, stride):
    """Pure-JAX reference.  Conv operands are cast to bf16 (accumulated in
    f32) to mirror the kernel's MXU policy, so the comparison validates the
    Pallas implementation rather than bf16-vs-f32 rounding."""
    x = jnp.transpose(x_nchw, (0, 2, 3, 1)).astype(jnp.float32)
    dn = ("NHWC", "HWIO", "NHWC")

    def conv(v, w, s, pad):
        return lax.conv_general_dilated(
            v.astype(jnp.bfloat16), w.astype(jnp.bfloat16), (s, s), pad,
            dimension_numbers=dn, preferred_element_type=jnp.float32)

    def bn(y, g, b):
        mean = jnp.mean(y, axis=(0, 1, 2), keepdims=True)
        var = jnp.mean((y - mean) ** 2, axis=(0, 1, 2), keepdims=True)
        return ((y - mean) * lax.rsqrt(var + EPS) * g.reshape(1, 1, 1, -1)
                + b.reshape(1, 1, 1, -1))

    cin, planes = x.shape[-1], params["w1"].shape[-1]
    o1 = jnp.maximum(bn(conv(x, params["w1"], stride, [(1, 1), (1, 1)]),
                        params["g1"], params["b1"]), 0.0)
    o2 = bn(conv(o1, params["w2"], 1, [(1, 1), (1, 1)]),
            params["g2"], params["b2"])
    if stride != 1 or cin != planes:
        sc = bn(conv(x, params["ws"], stride, [(0, 0), (0, 0)]),
                params["gs"], params["bs"])
    else:
        sc = x
    out = jnp.maximum(o2 + sc, 0.0)
    return jnp.transpose(out, (0, 3, 1, 2))


# --------------------------------- main --------------------------------------

def _run_case(kx, kp, n, cin, planes, hw, stride):
    x = jax.random.normal(kx, (n, cin, hw, hw), jnp.float32)  # NCHW, like PyTorch
    params = init_params(kp, cin, planes)
    # tm=64 so these toy shapes still exercise a multi-step grid (and thus the
    # cross-tile BN accumulate/finalize path); production default is tm=512.
    out = jax.block_until_ready(basic_block_forward(x, params, stride, tm=64))
    ref = jax.block_until_ready(basic_block_reference(x, params, stride))
    assert out.shape == (n, planes, hw // stride, hw // stride), out.shape
    err = float(jnp.max(jnp.abs(out - ref)))
    # Tolerance accounts for MXU-vs-XLA reduction order and the fused
    # E[x^2]-E[x]^2 BN variance; both paths use bf16 matmul operands.
    assert err < 2e-2, f"mismatch vs pure-JAX reference: {err}"


if __name__ == "__main__":
    k = jax.random.split(jax.random.PRNGKey(0), 4)
    _run_case(k[0], k[1], 2, 4, 8, 16, 2)   # projection shortcut (stride 2)
    _run_case(k[2], k[3], 2, 8, 8, 16, 1)   # identity shortcut
    print("KERNEL_OK")
</pallas_src>

<mosaic_0001>
module attributes {stable_mosaic.version = 11 : i64} {
  func.func @_conv_stats_kernel(%arg0: i32, %arg1: memref<64x1152xbf16, #tpu.memory_space<vmem>>, %arg2: memref<1152x128xbf16, #tpu.memory_space<vmem>>, %arg3: memref<1x128xf32, #tpu.memory_space<vmem>>, %arg4: memref<1x128xf32, #tpu.memory_space<vmem>>, %arg5: memref<64x128xf32, #tpu.memory_space<vmem>>, %arg6: memref<1x128xf32, #tpu.memory_space<vmem>>, %arg7: memref<1x128xf32, #tpu.memory_space<vmem>>) attributes {dimension_semantics = [#tpu.dimension_semantics<arbitrary>], iteration_bounds = array<i64: 2>, scalar_prefetch = 0 : i64, scratch_operands = 0 : i64, tpu.core_type = #tpu.core_type<tc>, window_params = [{transform_indices = @transform_0, window_bounds = array<i64: 64, 1152>}, {pipeline_mode = #tpu.pipeline_mode<synchronous>, transform_indices = @transform_1, window_bounds = array<i64: 1152, 128>}, {pipeline_mode = #tpu.pipeline_mode<synchronous>, transform_indices = @transform_2, window_bounds = array<i64: 1, 128>}, {pipeline_mode = #tpu.pipeline_mode<synchronous>, transform_indices = @transform_3, window_bounds = array<i64: 1, 128>}, {transform_indices = @transform_4, window_bounds = array<i64: 64, 128>}, {pipeline_mode = #tpu.pipeline_mode<synchronous>, transform_indices = @transform_5, window_bounds = array<i64: 1, 128>}, {pipeline_mode = #tpu.pipeline_mode<synchronous>, transform_indices = @transform_6, window_bounds = array<i64: 1, 128>}]} {
    %c0_i32 = arith.constant 0 : i32
    %0 = arith.cmpi eq, %arg0, %c0_i32 : i32
    %1 = arith.extui %0 : i1 to i32
    %c0_i32_0 = arith.constant 0 : i32
    %2 = arith.cmpi ne, %1, %c0_i32_0 : i32
    scf.if %2 {
      %cst_17 = arith.constant 0.000000e+00 : f32
      %21 = vector.broadcast %cst_17 : f32 to vector<1x128xf32>
      %c0_18 = arith.constant 0 : index
      %c0_19 = arith.constant 0 : index
      %22 = vector.load %arg6[%c0_18, %c0_19] : memref<1x128xf32, #tpu.memory_space<vmem>>, vector<1x128xf32>
      tpu.vector_store %arg6[%c0_18, %c0_19], %21 {strides = array<i32>} : memref<1x128xf32, #tpu.memory_space<vmem>>, vector<1x128xf32>,
      %cst_20 = arith.constant 0.000000e+00 : f32
      %23 = vector.broadcast %cst_20 : f32 to vector<1x128xf32>
      %c0_21 = arith.constant 0 : index
      %c0_22 = arith.constant 0 : index
      %24 = vector.load %arg7[%c0_21, %c0_22] : memref<1x128xf32, #tpu.memory_space<vmem>>, vector<1x128xf32>
      tpu.vector_store %arg7[%c0_21, %c0_22], %23 {strides = array<i32>} : memref<1x128xf32, #tpu.memory_space<vmem>>, vector<1x128xf32>,
    } else {
    }
    %c0 = arith.constant 0 : index
    %c0_1 = arith.constant 0 : index
    %3 = vector.load %arg1[%c0, %c0_1] : memref<64x1152xbf16, #tpu.memory_space<vmem>>, vector<64x1152xbf16>
    %c0_2 = arith.constant 0 : index
    %c0_3 = arith.constant 0 : index
    %4 = vector.load %arg2[%c0_2, %c0_3] : memref<1152x128xbf16, #tpu.memory_space<vmem>>, vector<1152x128xbf16>
    %cst = arith.constant dense<0.000000e+00> : vector<64x128xf32>
    %5 = tpu.matmul %3, %4, %cst {dimension_numbers = #tpu.dot_dimension_numbers<[1], [0], [0], [1], [0, 0, 1, 1], [], []>} : vector<64x1152xbf16>, vector<1152x128xbf16>, vector<64x128xf32> -> vector<64x128xf32>
    %c0_4 = arith.constant 0 : index
    %c0_5 = arith.constant 0 : index
    %6 = vector.load %arg5[%c0_4, %c0_5] : memref<64x128xf32, #tpu.memory_space<vmem>>, vector<64x128xf32>
    tpu.vector_store %arg5[%c0_4, %c0_5], %5 {strides = array<i32>} : memref<64x128xf32, #tpu.memory_space<vmem>>, vector<64x128xf32>,
    %c0_6 = arith.constant 0 : index
    %c0_7 = arith.constant 0 : index
    %7 = vector.load %arg6[%c0_6, %c0_7] : memref<1x128xf32, #tpu.memory_space<vmem>>, vector<1x128xf32>
    %cst_8 = arith.constant dense<0.000000e+00> : vector<128xf32>
    %8 = vector.multi_reduction <add>, %5, %cst_8 [0] : vector<64x128xf32> to vector<128xf32>
    %9 = vector.shape_cast %8 : vector<128xf32> to vector<1x128xf32>
    %10 = arith.addf %7, %9 : vector<1x128xf32>
    %c0_9 = arith.constant 0 : index
    %c0_10 = arith.constant 0 : index
    %11 = vector.load %arg6[%c0_9, %c0_10] : memref<1x128xf32, #tpu.memory_space<vmem>>, vector<1x128xf32>
    tpu.vector_store %arg6[%c0_9, %c0_10], %10 {strides = array<i32>} : memref<1x128xf32, #tpu.memory_space<vmem>>, vector<1x128xf32>,
    %c0_11 = arith.constant 0 : index
    %c0_12 = arith.constant 0 : index
    %12 = vector.load %arg7[%c0_11, %c0_12] : memref<1x128xf32, #tpu.memory_space<vmem>>, vector<1x128xf32>
    %13 = arith.mulf %5, %5 : vector<64x128xf32>
    %cst_13 = arith.constant dense<0.000000e+00> : vector<128xf32>
    %14 = vector.multi_reduction <add>, %13, %cst_13 [0] : vector<64x128xf32> to vector<128xf32>
    %15 = vector.shape_cast %14 : vector<128xf32> to vector<1x128xf32>
    %16 = arith.addf %12, %15 : vector<1x128xf32>
    %c0_14 = arith.constant 0 : index
    %c0_15 = arith.constant 0 : index
    %17 = vector.load %arg7[%c0_14, %c0_15] : memref<1x128xf32, #tpu.memory_space<vmem>>, vector<1x128xf32>
    tpu.vector_store %arg7[%c0_14, %c0_15], %16 {strides = array<i32>} : memref<1x128xf32, #tpu.memory_space<vmem>>, vector<1x128xf32>,
    %c1_i32 = arith.constant 1 : i32
    %18 = arith.cmpi eq, %arg0, %c1_i32 : i32
    %19 = arith.extui %18 : i1 to i32
    %c0_i32_16 = arith.constant 0 : i32
    %20 = arith.cmpi ne, %19, %c0_i32_16 : i32
    scf.if %20 {
      %c0_17 = arith.constant 0 : index
      %c0_18 = arith.constant 0 : index
      %21 = vector.load %arg6[%c0_17, %c0_18] : memref<1x128xf32, #tpu.memory_space<vmem>>, vector<1x128xf32>
      %cst_19 = arith.constant 7.812500e-03 : f32
      %22 = vector.broadcast %cst_19 : f32 to vector<1x128xf32>
      %23 = arith.mulf %21, %22 : vector<1x128xf32>
      %c0_20 = arith.constant 0 : index
      %c0_21 = arith.constant 0 : index
      %24 = vector.load %arg7[%c0_20, %c0_21] : memref<1x128xf32, #tpu.memory_space<vmem>>, vector<1x128xf32>
      %cst_22 = arith.constant 7.812500e-03 : f32
      %25 = vector.broadcast %cst_22 : f32 to vector<1x128xf32>
      %26 = arith.mulf %24, %25 : vector<1x128xf32>
      %27 = arith.mulf %23, %23 : vector<1x128xf32>
      %28 = arith.subf %26, %27 : vector<1x128xf32>
      %cst_23 = arith.constant 0.000000e+00 : f32
      %29 = vector.broadcast %cst_23 : f32 to vector<1x128xf32>
      %30 = arith.maximumf %28, %29 : vector<1x128xf32>
      %c0_24 = arith.constant 0 : index
      %c0_25 = arith.constant 0 : index
      %31 = vector.load %arg3[%c0_24, %c0_25] : memref<1x128xf32, #tpu.memory_space<vmem>>, vector<1x128xf32>
      %cst_26 = arith.constant 9.99999974E-6 : f32
      %32 = vector.broadcast %cst_26 : f32 to vector<1x128xf32>
      %33 = arith.addf %30, %32 : vector<1x128xf32>
      %34 = math.rsqrt %33 : vector<1x128xf32>
      %35 = arith.mulf %31, %34 : vector<1x128xf32>
      %c0_27 = arith.constant 0 : index
      %c0_28 = arith.constant 0 : index
      %36 = vector.load %arg4[%c0_27, %c0_28] : memref<1x128xf32, #tpu.memory_space<vmem>>, vector<1x128xf32>
      %37 = arith.mulf %23, %35 : vector<1x128xf32>
      %38 = arith.subf %36, %37 : vector<1x128xf32>
      %c0_29 = arith.constant 0 : index
      %c0_30 = arith.constant 0 : index
      %39 = vector.load %arg6[%c0_29, %c0_30] : memref<1x128xf32, #tpu.memory_space<vmem>>, vector<1x128xf32>
      tpu.vector_store %arg6[%c0_29, %c0_30], %35 {strides = array<i32>} : memref<1x128xf32, #tpu.memory_space<vmem>>, vector<1x128xf32>,
      %c0_31 = arith.constant 0 : index
      %c0_32 = arith.constant 0 : index
      %40 = vector.load %arg7[%c0_31, %c0_32] : memref<1x128xf32, #tpu.memory_space<vmem>>, vector<1x128xf32>
      tpu.vector_store %arg7[%c0_31, %c0_32], %38 {strides = array<i32>} : memref<1x128xf32, #tpu.memory_space<vmem>>, vector<1x128xf32>,
    } else {
    }
    return
  }
  func.func @transform_0(%arg0: i32) -> (i32, i32) {
    %c0_i32 = arith.constant 0 : i32
    %c0_i32_0 = arith.constant 0 : i32
    return %arg0, %c0_i32 : i32, i32
  }
  func.func @transform_1(%arg0: i32) -> (i32, i32) {
    %c0_i32 = arith.constant 0 : i32
    %c0_i32_0 = arith.constant 0 : i32
    %c0_i32_1 = arith.constant 0 : i32
    return %c0_i32, %c0_i32_0 : i32, i32
  }
  func.func @transform_2(%arg0: i32) -> (i32, i32) {
    %c0_i32 = arith.constant 0 : i32
    %c0_i32_0 = arith.constant 0 : i32
    %c0_i32_1 = arith.constant 0 : i32
    return %c0_i32, %c0_i32_0 : i32, i32
  }
  func.func @transform_3(%arg0: i32) -> (i32, i32) {
    %c0_i32 = arith.constant 0 : i32
    %c0_i32_0 = arith.constant 0 : i32
    %c0_i32_1 = arith.constant 0 : i32
    return %c0_i32, %c0_i32_0 : i32, i32
  }
  func.func @transform_4(%arg0: i32) -> (i32, i32) {
    %c0_i32 = arith.constant 0 : i32
    %c0_i32_0 = arith.constant 0 : i32
    return %arg0, %c0_i32 : i32, i32
  }
  func.func @transform_5(%arg0: i32) -> (i32, i32) {
    %c0_i32 = arith.constant 0 : i32
    %c0_i32_0 = arith.constant 0 : i32
    %c0_i32_1 = arith.constant 0 : i32
    return %c0_i32, %c0_i32_0 : i32, i32
  }
  func.func @transform_6(%arg0: i32) -> (i32, i32) {
    %c0_i32 = arith.constant 0 : i32
    %c0_i32_0 = arith.constant 0 : i32
    %c0_i32_1 = arith.constant 0 : i32
    return %c0_i32, %c0_i32_0 : i32, i32
  }
}

module attributes {stable_mosaic.version = 11 : i64} {
  func.func @_bn_relu_kernel(%arg0: i32, %arg1: memref<64x128xf32, #tpu.memory_space<vmem>>, %arg2: memref<1x128xf32, #tpu.memory_space<vmem>>, %arg3: memref<1x128xf32, #tpu.memory_space<vmem>>, %arg4: memref<64x128xbf16, #tpu.memory_space<vmem>>) attributes {dimension_semantics = [#tpu.dimension_semantics<parallel>], iteration_bounds = array<i64: 2>, scalar_prefetch = 0 : i64, scratch_operands = 0 : i64, tpu.core_type = #tpu.core_type<tc>, window_params = [{transform_indices = @transform_0, window_bounds = array<i64: 64, 128>}, {pipeline_mode = #tpu.pipeline_mode<synchronous>, transform_indices = @transform_1, window_bounds = array<i64: 1, 128>}, {pipeline_mode = #tpu.pipeline_mode<synchronous>, transform_indices = @transform_2, window_bounds = array<i64: 1, 128>}, {transform_indices = @transform_3, window_bounds = array<i64: 64, 128>}]} {
    %c0 = arith.constant 0 : index
    %c0_0 = arith.constant 0 : index
    %0 = vector.load %arg1[%c0, %c0_0] : memref<64x128xf32, #tpu.memory_space<vmem>>, vector<64x128xf32>
    %c0_1 = arith.constant 0 : index
    %c0_2 = arith.constant 0 : index
    %1 = vector.load %arg2[%c0_1, %c0_2] : memref<1x128xf32, #tpu.memory_space<vmem>>, vector<1x128xf32>
    %2 = vector.broadcast %1 : vector<1x128xf32> to vector<64x128xf32>
    %3 = arith.mulf %0, %2 : vector<64x128xf32>
    %c0_3 = arith.constant 0 : index
    %c0_4 = arith.constant 0 : index
    %4 = vector.load %arg3[%c0_3, %c0_4] : memref<1x128xf32, #tpu.memory_space<vmem>>, vector<1x128xf32>
    %5 = vector.broadcast %4 : vector<1x128xf32> to vector<64x128xf32>
    %6 = arith.addf %3, %5 : vector<64x128xf32>
    %cst = arith.constant 0.000000e+00 : f32
    %7 = vector.broadcast %cst : f32 to vector<64x128xf32>
    %8 = arith.maximumf %6, %7 : vector<64x128xf32>
    %9 = arith.truncf %8 : vector<64x128xf32> to vector<64x128xbf16>
    %c0_5 = arith.constant 0 : index
    %c0_6 = arith.constant 0 : index
    %10 = vector.load %arg4[%c0_5, %c0_6] : memref<64x128xbf16, #tpu.memory_space<vmem>>, vector<64x128xbf16>
    tpu.vector_store %arg4[%c0_5, %c0_6], %9 {strides = array<i32>} : memref<64x128xbf16, #tpu.memory_space<vmem>>, vector<64x128xbf16>,
    return
  }
  func.func @transform_0(%arg0: i32) -> (i32, i32) {
    %c0_i32 = arith.constant 0 : i32
    %c0_i32_0 = arith.constant 0 : i32
    return %arg0, %c0_i32 : i32, i32
  }
  func.func @transform_1(%arg0: i32) -> (i32, i32) {
    %c0_i32 = arith.constant 0 : i32
    %c0_i32_0 = arith.constant 0 : i32
    %c0_i32_1 = arith.constant 0 : i32
    return %c0_i32, %c0_i32_0 : i32, i32
  }
  func.func @transform_2(%arg0: i32) -> (i32, i32) {
    %c0_i32 = arith.constant 0 : i32
    %c0_i32_0 = arith.constant 0 : i32
    %c0_i32_1 = arith.constant 0 : i32
    return %c0_i32, %c0_i32_0 : i32, i32
  }
  func.func @transform_3(%arg0: i32) -> (i32, i32) {
    %c0_i32 = arith.constant 0 : i32
    %c0_i32_0 = arith.constant 0 : i32
    return %arg0, %c0_i32 : i32, i32
  }
}

module attributes {stable_mosaic.version = 11 : i64} {
  func.func @_bn_add_relu_proj_kernel(%arg0: i32, %arg1: memref<64x128xf32, #tpu.memory_space<vmem>>, %arg2: memref<1x128xf32, #tpu.memory_space<vmem>>, %arg3: memref<1x128xf32, #tpu.memory_space<vmem>>, %arg4: memref<64x128xf32, #tpu.memory_space<vmem>>, %arg5: memref<1x128xf32, #tpu.memory_space<vmem>>, %arg6: memref<1x128xf32, #tpu.memory_space<vmem>>, %arg7: memref<64x128xf32, #tpu.memory_space<vmem>>) attributes {dimension_semantics = [#tpu.dimension_semantics<parallel>], iteration_bounds = array<i64: 2>, scalar_prefetch = 0 : i64, scratch_operands = 0 : i64, tpu.core_type = #tpu.core_type<tc>, window_params = [{transform_indices = @transform_0, window_bounds = array<i64: 64, 128>}, {pipeline_mode = #tpu.pipeline_mode<synchronous>, transform_indices = @transform_1, window_bounds = array<i64: 1, 128>}, {pipeline_mode = #tpu.pipeline_mode<synchronous>, transform_indices = @transform_2, window_bounds = array<i64: 1, 128>}, {transform_indices = @transform_3, window_bounds = array<i64: 64, 128>}, {pipeline_mode = #tpu.pipeline_mode<synchronous>, transform_indices = @transform_4, window_bounds = array<i64: 1, 128>}, {pipeline_mode = #tpu.pipeline_mode<synchronous>, transform_indices = @transform_5, window_bounds = array<i64: 1, 128>}, {transform_indices = @transform_6, window_bounds = array<i64: 64, 128>}]} {
    %c0 = arith.constant 0 : index
    %c0_0 = arith.constant 0 : index
    %0 = vector.load %arg1[%c0, %c0_0] : memref<64x128xf32, #tpu.memory_space<vmem>>, vector<64x128xf32>
    %c0_1 = arith.constant 0 : index
    %c0_2 = arith.constant 0 : index
    %1 = vector.load %arg2[%c0_1, %c0_2] : memref<1x128xf32, #tpu.memory_space<vmem>>, vector<1x128xf32>
    %2 = vector.broadcast %1 : vector<1x128xf32> to vector<64x128xf32>
    %3 = arith.mulf %0, %2 : vector<64x128xf32>
    %c0_3 = arith.constant 0 : index
    %c0_4 = arith.constant 0 : index
    %4 = vector.load %arg3[%c0_3, %c0_4] : memref<1x128xf32, #tpu.memory_space<vmem>>, vector<1x128xf32>
    %5 = vector.broadcast %4 : vector<1x128xf32> to vector<64x128xf32>
    %6 = arith.addf %3, %5 : vector<64x128xf32>
    %c0_5 = arith.constant 0 : index
    %c0_6 = arith.constant 0 : index
    %7 = vector.load %arg4[%c0_5, %c0_6] : memref<64x128xf32, #tpu.memory_space<vmem>>, vector<64x128xf32>
    %c0_7 = arith.constant 0 : index
    %c0_8 = arith.constant 0 : index
    %8 = vector.load %arg5[%c0_7, %c0_8] : memref<1x128xf32, #tpu.memory_space<vmem>>, vector<1x128xf32>
    %9 = vector.broadcast %8 : vector<1x128xf32> to vector<64x128xf32>
    %10 = arith.mulf %7, %9 : vector<64x128xf32>
    %11 = arith.addf %6, %10 : vector<64x128xf32>
    %c0_9 = arith.constant 0 : index
    %c0_10 = arith.constant 0 : index
    %12 = vector.load %arg6[%c0_9, %c0_10] : memref<1x128xf32, #tpu.memory_space<vmem>>, vector<1x128xf32>
    %13 = vector.broadcast %12 : vector<1x128xf32> to vector<64x128xf32>
    %14 = arith.addf %11, %13 : vector<64x128xf32>
    %cst = arith.constant 0.000000e+00 : f32
    %15 = vector.broadcast %cst : f32 to vector<64x128xf32>
    %16 = arith.maximumf %14, %15 : vector<64x128xf32>
    %c0_11 = arith.constant 0 : index
    %c0_12 = arith.constant 0 : index
    %17 = vector.load %arg7[%c0_11, %c0_12] : memref<64x128xf32, #tpu.memory_space<vmem>>, vector<64x128xf32>
    tpu.vector_store %arg7[%c0_11, %c0_12], %16 {strides = array<i32>} : memref<64x128xf32, #tpu.memory_space<vmem>>, vector<64x128xf32>,
    return
  }
  func.func @transform_0(%arg0: i32) -> (i32, i32) {
    %c0_i32 = arith.constant 0 : i32
    %c0_i32_0 = arith.constant 0 : i32
    return %arg0, %c0_i32 : i32, i32
  }
  func.func @transform_1(%arg0: i32) -> (i32, i32) {
    %c0_i32 = arith.constant 0 : i32
    %c0_i32_0 = arith.constant 0 : i32
    %c0_i32_1 = arith.constant 0 : i32
    return %c0_i32, %c0_i32_0 : i32, i32
  }
  func.func @transform_2(%arg0: i32) -> (i32, i32) {
    %c0_i32 = arith.constant 0 : i32
    %c0_i32_0 = arith.constant 0 : i32
    %c0_i32_1 = arith.constant 0 : i32
    return %c0_i32, %c0_i32_0 : i32, i32
  }
  func.func @transform_3(%arg0: i32) -> (i32, i32) {
    %c0_i32 = arith.constant 0 : i32
    %c0_i32_0 = arith.constant 0 : i32
    return %arg0, %c0_i32 : i32, i32
  }
  func.func @transform_4(%arg0: i32) -> (i32, i32) {
    %c0_i32 = arith.constant 0 : i32
    %c0_i32_0 = arith.constant 0 : i32
    %c0_i32_1 = arith.constant 0 : i32
    return %c0_i32, %c0_i32_0 : i32, i32
  }
  func.func @transform_5(%arg0: i32) -> (i32, i32) {
    %c0_i32 = arith.constant 0 : i32
    %c0_i32_0 = arith.constant 0 : i32
    %c0_i32_1 = arith.constant 0 : i32
    return %c0_i32, %c0_i32_0 : i32, i32
  }
  func.func @transform_6(%arg0: i32) -> (i32, i32) {
    %c0_i32 = arith.constant 0 : i32
    %c0_i32_0 = arith.constant 0 : i32
    return %arg0, %c0_i32 : i32, i32
  }
}

module attributes {stable_mosaic.version = 11 : i64} {
  func.func @_conv_proj_stats_kernel(%arg0: i32, %arg1: memref<64x1152xbf16, #tpu.memory_space<vmem>>, %arg2: memref<1152x128xbf16, #tpu.memory_space<vmem>>, %arg3: memref<1x128xf32, #tpu.memory_space<vmem>>, %arg4: memref<1x128xf32, #tpu.memory_space<vmem>>, %arg5: memref<64x128xbf16, #tpu.memory_space<vmem>>, %arg6: memref<128x128xbf16, #tpu.memory_space<vmem>>, %arg7: memref<1x128xf32, #tpu.memory_space<vmem>>, %arg8: memref<1x128xf32, #tpu.memory_space<vmem>>, %arg9: memref<64x128xf32, #tpu.memory_space<vmem>>, %arg10: memref<64x128xf32, #tpu.memory_space<vmem>>, %arg11: memref<1x128xf32, #tpu.memory_space<vmem>>, %arg12: memref<1x128xf32, #tpu.memory_space<vmem>>, %arg13: memref<1x128xf32, #tpu.memory_space<vmem>>, %arg14: memref<1x128xf32, #tpu.memory_space<vmem>>) attributes {dimension_semantics = [#tpu.dimension_semantics<arbitrary>], iteration_bounds = array<i64: 2>, scalar_prefetch = 0 : i64, scratch_operands = 0 : i64, tpu.core_type = #tpu.core_type<tc>, window_params = [{transform_indices = @transform_0, window_bounds = array<i64: 64, 1152>}, {pipeline_mode = #tpu.pipeline_mode<synchronous>, transform_indices = @transform_1, window_bounds = array<i64: 1152, 128>}, {pipeline_mode = #tpu.pipeline_mode<synchronous>, transform_indices = @transform_2, window_bounds = array<i64: 1, 128>}, {pipeline_mode = #tpu.pipeline_mode<synchronous>, transform_indices = @transform_3, window_bounds = array<i64: 1, 128>}, {transform_indices = @transform_4, window_bounds = array<i64: 64, 128>}, {pipeline_mode = #tpu.pipeline_mode<synchronous>, transform_indices = @transform_5, window_bounds = array<i64: 128, 128>}, {pipeline_mode = #tpu.pipeline_mode<synchronous>, transform_indices = @transform_6, window_bounds = array<i64: 1, 128>}, {pipeline_mode = #tpu.pipeline_mode<synchronous>, transform_indices = @transform_7, window_bounds = array<i64: 1, 128>}, {transform_indices = @transform_8, window_bounds = array<i64: 64, 128>}, {transform_indices = @transform_9, window_bounds = array<i64: 64, 128>}, {pipeline_mode = #tpu.pipeline_mode<synchronous>, transform_indices = @transform_10, window_bounds = array<i64: 1, 128>}, {pipeline_mode = #tpu.pipeline_mode<synchronous>, transform_indices = @transform_11, window_bounds = array<i64: 1, 128>}, {pipeline_mode = #tpu.pipeline_mode<synchronous>, transform_indices = @transform_12, window_bounds = array<i64: 1, 128>}, {pipeline_mode = #tpu.pipeline_mode<synchronous>, transform_indices = @transform_13, window_bounds = array<i64: 1, 128>}]} {
    %c0_i32 = arith.constant 0 : i32
    %0 = arith.cmpi eq, %arg0, %c0_i32 : i32
    %1 = arith.extui %0 : i1 to i32
    %c0_i32_0 = arith.constant 0 : i32
    %2 = arith.cmpi ne, %1, %c0_i32_0 : i32
    scf.if %2 {
      %cst_34 = arith.constant 0.000000e+00 : f32
      %36 = vector.broadcast %cst_34 : f32 to vector<1x128xf32>
      %c0_35 = arith.constant 0 : index
      %c0_36 = arith.constant 0 : index
      %37 = vector.load %arg11[%c0_35, %c0_36] : memref<1x128xf32, #tpu.memory_space<vmem>>, vector<1x128xf32>
      tpu.vector_store %arg11[%c0_35, %c0_36], %36 {strides = array<i32>} : memref<1x128xf32, #tpu.memory_space<vmem>>, vector<1x128xf32>,
      %cst_37 = arith.constant 0.000000e+00 : f32
      %38 = vector.broadcast %cst_37 : f32 to vector<1x128xf32>
      %c0_38 = arith.constant 0 : index
      %c0_39 = arith.constant 0 : index
      %39 = vector.load %arg12[%c0_38, %c0_39] : memref<1x128xf32, #tpu.memory_space<vmem>>, vector<1x128xf32>
      tpu.vector_store %arg12[%c0_38, %c0_39], %38 {strides = array<i32>} : memref<1x128xf32, #tpu.memory_space<vmem>>, vector<1x128xf32>,
      %cst_40 = arith.constant 0.000000e+00 : f32
      %40 = vector.broadcast %cst_40 : f32 to vector<1x128xf32>
      %c0_41 = arith.constant 0 : index
      %c0_42 = arith.constant 0 : index
      %41 = vector.load %arg13[%c0_41, %c0_42] : memref<1x128xf32, #tpu.memory_space<vmem>>, vector<1x128xf32>
      tpu.vector_store %arg13[%c0_41, %c0_42], %40 {strides = array<i32>} : memref<1x128xf32, #tpu.memory_space<vmem>>, vector<1x128xf32>,
      %cst_43 = arith.constant 0.000000e+00 : f32
      %42 = vector.broadcast %cst_43 : f32 to vector<1x128xf32>
      %c0_44 = arith.constant 0 : index
      %c0_45 = arith.constant 0 : index
      %43 = vector.load %arg14[%c0_44, %c0_45] : memref<1x128xf32, #tpu.memory_space<vmem>>, vector<1x128xf32>
      tpu.vector_store %arg14[%c0_44, %c0_45], %42 {strides = array<i32>} : memref<1x128xf32, #tpu.memory_space<vmem>>, vector<1x128xf32>,
    } else {
    }
    %c0 = arith.constant 0 : index
    %c0_1 = arith.constant 0 : index
    %3 = vector.load %arg1[%c0, %c0_1] : memref<64x1152xbf16, #tpu.memory_space<vmem>>, vector<64x1152xbf16>
    %c0_2 = arith.constant 0 : index
    %c0_3 = arith.constant 0 : index
    %4 = vector.load %arg2[%c0_2, %c0_3] : memref<1152x128xbf16, #tpu.memory_space<vmem>>, vector<1152x128xbf16>
    %cst = arith.constant dense<0.000000e+00> : vector<64x128xf32>
    %5 = tpu.matmul %3, %4, %cst {dimension_numbers = #tpu.dot_dimension_numbers<[1], [0], [0], [1], [0, 0, 1, 1], [], []>} : vector<64x1152xbf16>, vector<1152x128xbf16>, vector<64x128xf32> -> vector<64x128xf32>
    %c0_4 = arith.constant 0 : index
    %c0_5 = arith.constant 0 : index
    %6 = vector.load %arg5[%c0_4, %c0_5] : memref<64x128xbf16, #tpu.memory_space<vmem>>, vector<64x128xbf16>
    %c0_6 = arith.constant 0 : index
    %c0_7 = arith.constant 0 : index
    %7 = vector.load %arg6[%c0_6, %c0_7] : memref<128x128xbf16, #tpu.memory_space<vmem>>, vector<128x128xbf16>
    %cst_8 = arith.constant dense<0.000000e+00> : vector<64x128xf32>
    %8 = tpu.matmul %6, %7, %cst_8 {dimension_numbers = #tpu.dot_dimension_numbers<[1], [0], [0], [1], [0, 0, 1, 1], [], []>} : vector<64x128xbf16>, vector<128x128xbf16>, vector<64x128xf32> -> vector<64x128xf32>
    %c0_9 = arith.constant 0 : index
    %c0_10 = arith.constant 0 : index
    %9 = vector.load %arg9[%c0_9, %c0_10] : memref<64x128xf32, #tpu.memory_space<vmem>>, vector<64x128xf32>
    tpu.vector_store %arg9[%c0_9, %c0_10], %5 {strides = array<i32>} : memref<64x128xf32, #tpu.memory_space<vmem>>, vector<64x128xf32>,
    %c0_11 = arith.constant 0 : index
    %c0_12 = arith.constant 0 : index
    %10 = vector.load %arg10[%c0_11, %c0_12] : memref<64x128xf32, #tpu.memory_space<vmem>>, vector<64x128xf32>
    tpu.vector_store %arg10[%c0_11, %c0_12], %8 {strides = array<i32>} : memref<64x128xf32, #tpu.memory_space<vmem>>, vector<64x128xf32>,
    %c0_13 = arith.constant 0 : index
    %c0_14 = arith.constant 0 : index
    %11 = vector.load %arg11[%c0_13, %c0_14] : memref<1x128xf32, #tpu.memory_space<vmem>>, vector<1x128xf32>
    %cst_15 = arith.constant dense<0.000000e+00> : vector<128xf32>
    %12 = vector.multi_reduction <add>, %5, %cst_15 [0] : vector<64x128xf32> to vector<128xf32>
    %13 = vector.shape_cast %12 : vector<128xf32> to vector<1x128xf32>
    %14 = arith.addf %11, %13 : vector<1x128xf32>
    %c0_16 = arith.constant 0 : index
    %c0_17 = arith.constant 0 : index
    %15 = vector.load %arg11[%c0_16, %c0_17] : memref<1x128xf32, #tpu.memory_space<vmem>>, vector<1x128xf32>
    tpu.vector_store %arg11[%c0_16, %c0_17], %14 {strides = array<i32>} : memref<1x128xf32, #tpu.memory_space<vmem>>, vector<1x128xf32>,
    %c0_18 = arith.constant 0 : index
    %c0_19 = arith.constant 0 : index
    %16 = vector.load %arg12[%c0_18, %c0_19] : memref<1x128xf32, #tpu.memory_space<vmem>>, vector<1x128xf32>
    %17 = arith.mulf %5, %5 : vector<64x128xf32>
    %cst_20 = arith.constant dense<0.000000e+00> : vector<128xf32>
    %18 = vector.multi_reduction <add>, %17, %cst_20 [0] : vector<64x128xf32> to vector<128xf32>
    %19 = vector.shape_cast %18 : vector<128xf32> to vector<1x128xf32>
    %20 = arith.addf %16, %19 : vector<1x128xf32>
    %c0_21 = arith.constant 0 : index
    %c0_22 = arith.constant 0 : index
    %21 = vector.load %arg12[%c0_21, %c0_22] : memref<1x128xf32, #tpu.memory_space<vmem>>, vector<1x128xf32>
    tpu.vector_store %arg12[%c0_21, %c0_22], %20 {strides = array<i32>} : memref<1x128xf32, #tpu.memory_space<vmem>>, vector<1x128xf32>,
    %c0_23 = arith.constant 0 : index
    %c0_24 = arith.constant 0 : index
    %22 = vector.load %arg13[%c0_23, %c0_24] : memref<1x128xf32, #tpu.memory_space<vmem>>, vector<1x128xf32>
    %cst_25 = arith.constant dense<0.000000e+00> : vector<128xf32>
    %23 = vector.multi_reduction <add>, %8, %cst_25 [0] : vector<64x128xf32> to vector<128xf32>
    %24 = vector.shape_cast %23 : vector<128xf32> to vector<1x128xf32>
    %25 = arith.addf %22, %24 : vector<1x128xf32>
    %c0_26 = arith.constant 0 : index
    %c0_27 = arith.constant 0 : index
    %26 = vector.load %arg13[%c0_26, %c0_27] : memref<1x128xf32, #tpu.memory_space<vmem>>, vector<1x128xf32>
    tpu.vector_store %arg13[%c0_26, %c0_27], %25 {strides = array<i32>} : memref<1x128xf32, #tpu.memory_space<vmem>>, vector<1x128xf32>,
    %c0_28 = arith.constant 0 : index
    %c0_29 = arith.constant 0 : index
    %27 = vector.load %arg14[%c0_28, %c0_29] : memref<1x128xf32, #tpu.memory_space<vmem>>, vector<1x128xf32>
    %28 = arith.mulf %8, %8 : vector<64x128xf32>
    %cst_30 = arith.constant dense<0.000000e+00> : vector<128xf32>
    %29 = vector.multi_reduction <add>, %28, %cst_30 [0] : vector<64x128xf32> to vector<128xf32>
    %30 = vector.shape_cast %29 : vector<128xf32> to vector<1x128xf32>
    %31 = arith.addf %27, %30 : vector<1x128xf32>
    %c0_31 = arith.constant 0 : index
    %c0_32 = arith.constant 0 : index
    %32 = vector.load %arg14[%c0_31, %c0_32] : memref<1x128xf32, #tpu.memory_space<vmem>>, vector<1x128xf32>
    tpu.vector_store %arg14[%c0_31, %c0_32], %31 {strides = array<i32>} : memref<1x128xf32, #tpu.memory_space<vmem>>, vector<1x128xf32>,
    %c1_i32 = arith.constant 1 : i32
    %33 = arith.cmpi eq, %arg0, %c1_i32 : i32
    %34 = arith.extui %33 : i1 to i32
    %c0_i32_33 = arith.constant 0 : i32
    %35 = arith.cmpi ne, %34, %c0_i32_33 : i32
    scf.if %35 {
      %c0_34 = arith.constant 0 : index
      %c0_35 = arith.constant 0 : index
      %36 = vector.load %arg11[%c0_34, %c0_35] : memref<1x128xf32, #tpu.memory_space<vmem>>, vector<1x128xf32>
      %cst_36 = arith.constant 7.812500e-03 : f32
      %37 = vector.broadcast %cst_36 : f32 to vector<1x128xf32>
      %38 = arith.mulf %36, %37 : vector<1x128xf32>
      %c0_37 = arith.constant 0 : index
      %c0_38 = arith.constant 0 : index
      %39 = vector.load %arg12[%c0_37, %c0_38] : memref<1x128xf32, #tpu.memory_space<vmem>>, vector<1x128xf32>
      %cst_39 = arith.constant 7.812500e-03 : f32
      %40 = vector.broadcast %cst_39 : f32 to vector<1x128xf32>
      %41 = arith.mulf %39, %40 : vector<1x128xf32>
      %42 = arith.mulf %38, %38 : vector<1x128xf32>
      %43 = arith.subf %41, %42 : vector<1x128xf32>
      %cst_40 = arith.constant 0.000000e+00 : f32
      %44 = vector.broadcast %cst_40 : f32 to vector<1x128xf32>
      %45 = arith.maximumf %43, %44 : vector<1x128xf32>
      %c0_41 = arith.constant 0 : index
      %c0_42 = arith.constant 0 : index
      %46 = vector.load %arg3[%c0_41, %c0_42] : memref<1x128xf32, #tpu.memory_space<vmem>>, vector<1x128xf32>
      %cst_43 = arith.constant 9.99999974E-6 : f32
      %47 = vector.broadcast %cst_43 : f32 to vector<1x128xf32>
      %48 = arith.addf %45, %47 : vector<1x128xf32>
      %49 = math.rsqrt %48 : vector<1x128xf32>
      %50 = arith.mulf %46, %49 : vector<1x128xf32>
      %c0_44 = arith.constant 0 : index
      %c0_45 = arith.constant 0 : index
      %51 = vector.load %arg4[%c0_44, %c0_45] : memref<1x128xf32, #tpu.memory_space<vmem>>, vector<1x128xf32>
      %52 = arith.mulf %38, %50 : vector<1x128xf32>
      %53 = arith.subf %51, %52 : vector<1x128xf32>
      %c0_46 = arith.constant 0 : index
      %c0_47 = arith.constant 0 : index
      %54 = vector.load %arg11[%c0_46, %c0_47] : memref<1x128xf32, #tpu.memory_space<vmem>>, vector<1x128xf32>
      tpu.vector_store %arg11[%c0_46, %c0_47], %50 {strides = array<i32>} : memref<1x128xf32, #tpu.memory_space<vmem>>, vector<1x128xf32>,
      %c0_48 = arith.constant 0 : index
      %c0_49 = arith.constant 0 : index
      %55 = vector.load %arg12[%c0_48, %c0_49] : memref<1x128xf32, #tpu.memory_space<vmem>>, vector<1x128xf32>
      tpu.vector_store %arg12[%c0_48, %c0_49], %53 {strides = array<i32>} : memref<1x128xf32, #tpu.memory_space<vmem>>, vector<1x128xf32>,
      %c0_50 = arith.constant 0 : index
      %c0_51 = arith.constant 0 : index
      %56 = vector.load %arg13[%c0_50, %c0_51] : memref<1x128xf32, #tpu.memory_space<vmem>>, vector<1x128xf32>
      %cst_52 = arith.constant 7.812500e-03 : f32
      %57 = vector.broadcast %cst_52 : f32 to vector<1x128xf32>
      %58 = arith.mulf %56, %57 : vector<1x128xf32>
      %c0_53 = arith.constant 0 : index
      %c0_54 = arith.constant 0 : index
      %59 = vector.load %arg14[%c0_53, %c0_54] : memref<1x128xf32, #tpu.memory_space<vmem>>, vector<1x128xf32>
      %cst_55 = arith.constant 7.812500e-03 : f32
      %60 = vector.broadcast %cst_55 : f32 to vector<1x128xf32>
      %61 = arith.mulf %59, %60 : vector<1x128xf32>
      %62 = arith.mulf %58, %58 : vector<1x128xf32>
      %63 = arith.subf %61, %62 : vector<1x128xf32>
      %cst_56 = arith.constant 0.000000e+00 : f32
      %64 = vector.broadcast %cst_56 : f32 to vector<1x128xf32>
      %65 = arith.maximumf %63, %64 : vector<1x128xf32>
      %c0_57 = arith.constant 0 : index
      %c0_58 = arith.constant 0 : index
      %66 = vector.load %arg7[%c0_57, %c0_58] : memref<1x128xf32, #tpu.memory_space<vmem>>, vector<1x128xf32>
      %cst_59 = arith.constant 9.99999974E-6 : f32
      %67 = vector.broadcast %cst_59 : f32 to vector<1x128xf32>
      %68 = arith.addf %65, %67 : vector<1x128xf32>
      %69 = math.rsqrt %68 : vector<1x128xf32>
      %70 = arith.mulf %66, %69 : vector<1x128xf32>
      %c0_60 = arith.constant 0 : index
      %c0_61 = arith.constant 0 : index
      %71 = vector.load %arg8[%c0_60, %c0_61] : memref<1x128xf32, #tpu.memory_space<vmem>>, vector<1x128xf32>
      %72 = arith.mulf %58, %70 : vector<1x128xf32>
      %73 = arith.subf %71, %72 : vector<1x128xf32>
      %c0_62 = arith.constant 0 : index
      %c0_63 = arith.constant 0 : index
      %74 = vector.load %arg13[%c0_62, %c0_63] : memref<1x128xf32, #tpu.memory_space<vmem>>, vector<1x128xf32>
      tpu.vector_store %arg13[%c0_62, %c0_63], %70 {strides = array<i32>} : memref<1x128xf32, #tpu.memory_space<vmem>>, vector<1x128xf32>,
      %c0_64 = arith.constant 0 : index
      %c0_65 = arith.constant 0 : index
      %75 = vector.load %arg14[%c0_64, %c0_65] : memref<1x128xf32, #tpu.memory_space<vmem>>, vector<1x128xf32>
      tpu.vector_store %arg14[%c0_64, %c0_65], %73 {strides = array<i32>} : memref<1x128xf32, #tpu.memory_space<vmem>>, vector<1x128xf32>,
    } else {
    }
    return
  }
  func.func @transform_0(%arg0: i32) -> (i32, i32) {
    %c0_i32 = arith.constant 0 : i32
    %c0_i32_0 = arith.constant 0 : i32
    return %arg0, %c0_i32 : i32, i32
  }
  func.func @transform_1(%arg0: i32) -> (i32, i32) {
    %c0_i32 = arith.constant 0 : i32
    %c0_i32_0 = arith.constant 0 : i32
    %c0_i32_1 = arith.constant 0 : i32
    return %c0_i32, %c0_i32_0 : i32, i32
  }
  func.func @transform_2(%arg0: i32) -> (i32, i32) {
    %c0_i32 = arith.constant 0 : i32
    %c0_i32_0 = arith.constant 0 : i32
    %c0_i32_1 = arith.constant 0 : i32
    return %c0_i32, %c0_i32_0 : i32, i32
  }
  func.func @transform_3(%arg0: i32) -> (i32, i32) {
    %c0_i32 = arith.constant 0 : i32
    %c0_i32_0 = arith.constant 0 : i32
    %c0_i32_1 = arith.constant 0 : i32
    return %c0_i32, %c0_i32_0 : i32, i32
  }
  func.func @transform_4(%arg0: i32) -> (i32, i32) {
    %c0_i32 = arith.constant 0 : i32
    %c0_i32_0 = arith.constant 0 : i32
    return %arg0, %c0_i32 : i32, i32
  }
  func.func @transform_5(%arg0: i32) -> (i32, i32) {
    %c0_i32 = arith.constant 0 : i32
    %c0_i32_0 = arith.constant 0 : i32
    %c0_i32_1 = arith.constant 0 : i32
    return %c0_i32, %c0_i32_0 : i32, i32
  }
  func.func @transform_6(%arg0: i32) -> (i32, i32) {
    %c0_i32 = arith.constant 0 : i32
    %c0_i32_0 = arith.constant 0 : i32
    %c0_i32_1 = arith.constant 0 : i32
    return %c0_i32, %c0_i32_0 : i32, i32
  }
  func.func @transform_7(%arg0: i32) -> (i32, i32) {
    %c0_i32 = arith.constant 0 : i32
    %c0_i32_0 = arith.constant 0 : i32
    %c0_i32_1 = arith.constant 0 : i32
    return %c0_i32, %c0_i32_0 : i32, i32
  }
  func.func @transform_8(%arg0: i32) -> (i32, i32) {
    %c0_i32 = arith.constant 0 : i32
    %c0_i32_0 = arith.constant 0 : i32
    return %arg0, %c0_i32 : i32, i32
  }
  func.func @transform_9(%arg0: i32) -> (i32, i32) {
    %c0_i32 = arith.constant 0 : i32
    %c0_i32_0 = arith.constant 0 : i32
    return %arg0, %c0_i32 : i32, i32
  }
  func.func @transform_10(%arg0: i32) -> (i32, i32) {
    %c0_i32 = arith.constant 0 : i32
    %c0_i32_0 = arith.constant 0 : i32
    %c0_i32_1 = arith.constant 0 : i32
    return %c0_i32, %c0_i32_0 : i32, i32
  }
  func.func @transform_11(%arg0: i32) -> (i32, i32) {
    %c0_i32 = arith.constant 0 : i32
    %c0_i32_0 = arith.constant 0 : i32
    %c0_i32_1 = arith.constant 0 : i32
    return %c0_i32, %c0_i32_0 : i32, i32
  }
  func.func @transform_12(%arg0: i32) -> (i32, i32) {
    %c0_i32 = arith.constant 0 : i32
    %c0_i32_0 = arith.constant 0 : i32
    %c0_i32_1 = arith.constant 0 : i32
    return %c0_i32, %c0_i32_0 : i32, i32
  }
  func.func @transform_13(%arg0: i32) -> (i32, i32) {
    %c0_i32 = arith.constant 0 : i32
    %c0_i32_0 = arith.constant 0 : i32
    %c0_i32_1 = arith.constant 0 : i32
    return %c0_i32, %c0_i32_0 : i32, i32
  }
}

</mosaic_0001>

<llo_original>
// kernel: basic_block_forward.5
$region0: #{basic_block_forward.5}
  #allocation0 [shape = 'u32[]', space=smem, size = 0x4, offset = 0x4, fixed_abs, tag = 'smem constant byte address 0x4 - core index']
  #allocation1 [shape = 'u32[144,128]{1,0:T(1,128)}', space=vmem, size = 0x12000, scoped, tag = 'internal scratch']
  %s0 = inlined_call_operand.vmem [shape: f32[128,128], index: 0, kind: input, shape index: {}]
  %s1 = inlined_call_operand.vmem [shape: f32[1,128], index: 1, kind: input, shape index: {}]
  %s2 = inlined_call_operand.vmem [shape: f32[1,128], index: 2, kind: input, shape index: {}]
  %s3 = inlined_call_operand.vmem [shape: bf16[128,128], index: 3, kind: output, shape index: {}]
  %s4 = sld [smem:[#allocation0]]
  $region45: #{basic_block_forward.5} parent=0
    _
  %s6 = ssub.s32 1, %s4
  %s7 = scalar_select 0, %s6, %s4
  loop: start=0, step=1, limit=4
  $region2: #{basic_block_forward.5} parent=0 // loop_pre_header
    _
  $region3: #{basic_block_forward.5} parent=0 // loop_header
    %s9 = sphi 0, %s13
    %p10 = scmp.ge.s32.totalorder %s9, 4
    %s19 = sphi 0, %s21
    %s22 = sphi 0, %s19
    %s23 = sphi 0, %s22
    %s39 = sphi 0, %s23
    %s43 = sphi 0, %s43
    %s45 = sphi 0, %s43
    %s46 = sphi 0, %s45
    %s60 = sphi 0, %s46
    %s64 = sphi 0, %s64
    %s66 = sphi 0, %s64
    %s67 = sphi 0, %s66
    %s81 = sphi 0, %s67
    %s87 = sphi 0, %s89
    %s90 = sphi 0, %s87
    %s91 = sphi 0, %s90
    %s107 = sphi 0, %s91
  $region4: #{basic_block_forward.5} parent=0 // loop_header_branch
    %12 = sbr.rel (%p10) target = $region8
  $region5: #{basic_block_forward.5} parent=0 // loop_body
    %s14 = ssub.s32 %s9, 1
    %s15 = ssub.s32 %s9, 2
    %s16 = sadd.s32 %s9, 1
    %s17 = ssub.s32 %s9, %s16
    %p18 = scmp.eq.s32.totalorder %s17, 0
    %s20 = sadd.s32 %s19, 1
    %s21 = scalar_select %p18, %s19, %s20
    %p24 = pneg %p18
    %p25 = scmp.eq.s32.totalorder %s9, 1
    %p26 = por %p24, %p25
    %p27 = scmp.ne.s32.totalorder %s19, %s22
    %p28 = scmp.eq.s32.totalorder %s9, 0
    %p29 = por %p27, %p28
    %p30 = scmp.ne.s32.totalorder %s19, %s22
    %p31 = scmp.eq.s32.totalorder %s14, 1
    %p32 = por %p30, %p31
    %p33 = scmp.ne.s32.totalorder %s22, %s23
    %p34 = scmp.eq.s32.totalorder %s14, 0
    %p35 = por %p33, %p34
    %p36 = scmp.ne.s32.totalorder %s22, %s23
    %p37 = scmp.eq.s32.totalorder %s15, 1
    %p38 = por %p36, %p37
    %p40 = scmp.ne.s32.totalorder %s23, %s39
    %p41 = scmp.eq.s32.totalorder %s15, 0
    %p42 = por %p40, %p41
    %s44 = sadd.s32 %s43, 1
    %p47 = scmp.eq.s32.totalorder %s9, 1
    %p48 = scmp.ne.s32.totalorder %s43, %s45
    %p49 = scmp.eq.s32.totalorder %s9, 0
    %p50 = por %p48, %p49
    %p51 = scmp.ne.s32.totalorder %s43, %s45
    %p52 = scmp.eq.s32.totalorder %s14, 1
    %p53 = por %p51, %p52
    %p54 = scmp.ne.s32.totalorder %s45, %s46
    %p55 = scmp.eq.s32.totalorder %s14, 0
    %p56 = por %p54, %p55
    %p57 = scmp.ne.s32.totalorder %s45, %s46
    %p58 = scmp.eq.s32.totalorder %s15, 1
    %p59 = por %p57, %p58
    %p61 = scmp.ne.s32.totalorder %s46, %s60
    %p62 = scmp.eq.s32.totalorder %s15, 0
    %p63 = por %p61, %p62
    %s65 = sadd.s32 %s64, 1
    %p68 = scmp.eq.s32.totalorder %s9, 1
    %p69 = scmp.ne.s32.totalorder %s64, %s66
    %p70 = scmp.eq.s32.totalorder %s9, 0
    %p71 = por %p69, %p70
    %p72 = scmp.ne.s32.totalorder %s64, %s66
    %p73 = scmp.eq.s32.totalorder %s14, 1
    %p74 = por %p72, %p73
    %p75 = scmp.ne.s32.totalorder %s66, %s67
    %p76 = scmp.eq.s32.totalorder %s14, 0
    %p77 = por %p75, %p76
    %p78 = scmp.ne.s32.totalorder %s66, %s67
    %p79 = scmp.eq.s32.totalorder %s15, 1
    %p80 = por %p78, %p79
    %p82 = scmp.ne.s32.totalorder %s67, %s81
    %p83 = scmp.eq.s32.totalorder %s15, 0
    %p84 = por %p82, %p83
    %s85 = ssub.s32 %s9, %s16
    %p86 = scmp.eq.s32.totalorder %s85, 0
    %s88 = sadd.s32 %s87, 1
    %s89 = scalar_select %p86, %s87, %s88
    %p92 = pneg %p86
    %p93 = scmp.eq.s32.totalorder %s9, 1
    %p94 = por %p92, %p93
    %p95 = scmp.ne.s32.totalorder %s87, %s90
    %p96 = scmp.eq.s32.totalorder %s9, 0
    %p97 = por %p95, %p96
    %p98 = scmp.ne.s32.totalorder %s87, %s90
    %p99 = scmp.eq.s32.totalorder %s14, 1
    %p100 = por %p98, %p99
    %p101 = scmp.ne.s32.totalorder %s90, %s91
    %p102 = scmp.eq.s32.totalorder %s14, 0
    %p103 = por %p101, %p102
    %p104 = scmp.ne.s32.totalorder %s90, %s91
    %p105 = scmp.eq.s32.totalorder %s15, 1
    %p106 = por %p104, %p105
    %p108 = scmp.ne.s32.totalorder %s91, %s107
    %p109 = scmp.eq.s32.totalorder %s15, 0
    %p110 = por %p108, %p109
    %p111 = scmp.le.s32.totalorder 1, %s9
    %p112 = scmp.lt.s32.totalorder %s9, 3
    %p113 = pnand %p111, %p112
    %p114 = pneg %p113
    // Predicated region
    $region9: #{basic_block_forward.5} parent=5 // pred_check
      _
    $region10: #{basic_block_forward.5} parent=5 // pred_check_branch
      %116 = sbr.rel (%p113) target = $region12
    $region11: #{basic_block_forward.5} parent=5 // pred_region
      %s117 = ssub.s32 %s9, 1
      // Predicated region
      $region13: #{basic_block_forward.5} parent=11 // pred_check
        %p118 = pneg %p56
      $region14: #{basic_block_forward.5} parent=11 // pred_check_branch
        %120 = sbr.rel (%p118) target = $region16
      $region15: #{basic_block_forward.5} parent=11 // pred_region
        _
      $region16: #{basic_block_forward.5} parent=11 // pred_fallthru
        _
      // Predicated region
      $region17: #{basic_block_forward.5} parent=11 // pred_check
        %p121 = pneg %p77
      $region18: #{basic_block_forward.5} parent=11 // pred_check_branch
        %123 = sbr.rel (%p121) target = $region20
      $region19: #{basic_block_forward.5} parent=11 // pred_region
        _
      $region20: #{basic_block_forward.5} parent=11 // pred_fallthru
        _
    $region12: #{basic_block_forward.5} parent=5 // pred_fallthru
      _
    %p124 = scmp.lt.s32.totalorder %s9, 2
    // Predicated region
    $region21: #{basic_block_forward.5} parent=5 // pred_check
      %p125 = pneg %p124
    $region22: #{basic_block_forward.5} parent=5 // pred_check_branch
      %127 = sbr.rel (%p125) target = $region24
    $region23: #{basic_block_forward.5} parent=5 // pred_region
      // Predicated region
      $region25: #{basic_block_forward.5} parent=23 // pred_check
        %p128 = pneg %p29
      $region26: #{basic_block_forward.5} parent=23 // pred_check_branch
        %130 = sbr.rel (%p128) target = $region28
      $region27: #{basic_block_forward.5} parent=23 // pred_region
        %s131 = smul.u32 8, %s9
        %p132 = scmp.lt.s32.totalorder %s131, 15
        %s133 = scalar_select %p132, %s131, 15
        %s134 = smul.addr %s133, 8
        %s135 = scalar_lea.vmem %s0, %s134
        %s136 = smul.u32 8, %s9
      $region28: #{basic_block_forward.5} parent=23 // pred_fallthru
        _
    $region24: #{basic_block_forward.5} parent=5 // pred_fallthru
      _
    %p137 = scmp.le.s32.totalorder 1, %s9
    %p138 = scmp.lt.s32.totalorder %s9, 3
    %p139 = pnand %p137, %p138
    %p140 = pneg %p139
    // Predicated region
    $region29: #{basic_block_forward.5} parent=5 // pred_check
      _
    $region30: #{basic_block_forward.5} parent=5 // pred_check_branch
      %142 = sbr.rel (%p139) target = $region32
    $region31: #{basic_block_forward.5} parent=5 // pred_region
      %s143 = ssub.s32 %s9, 1
      %s144 = smul.u32 8, %s14
      %p145 = scmp.lt.s32.totalorder %s144, 15
      %s146 = scalar_select %p145, %s144, 15
      %s147 = smul.addr %s146, 8
      %s148 = scalar_lea.vmem %s0, %s147
      %p149 = pneg %p35
      %p150 = pneg %p32
      %p151 = pneg %p56
      %p152 = pneg %p53
      %p153 = pneg %p77
      %p154 = pneg %p74
      %p155 = pneg %p103
      %p156 = pneg %p100
      %s157 = smul.u32 8, %s14
      %p158 = scmp.lt.s32.totalorder %s157, 15
      %s159 = scalar_select %p158, %s157, 15
      %s160 = smul.addr %s159, 4
      %s161 = scalar_lea.vmem %s3, %s160
      %s162 = smul.u32 8, %s14
      %p163 = scmp.lt.s32.totalorder %s162, 15
      %s164 = scalar_select %p163, %s162, 15
      %s165 = smul.addr %s164, 8
      %s166 = scalar_lea.vmem %s0, %s165
      %s167 = smul.u32 8, %s14
      %s168 = smul.u32 8, %s14
      %p169 = scmp.lt.s32.totalorder %s168, 15
      %s170 = scalar_select %p169, %s168, 15
      %s171 = smul.addr %s170, 4
      %s172 = scalar_lea.vmem %s3, %s171
      %s173 = smul.u32 8, %s14
      %v174 = vld [vmem:[%s166] sm:$0xff]
      %v175 = vld [vmem:[%s166 + $0x8] sm:$0xff]
      %v176 = vld [vmem:[%s166 + $0x10] sm:$0xff]
      %v177 = vld [vmem:[%s166 + $0x18] sm:$0xff]
      %v178 = vld [vmem:[%s166 + $0x20] sm:$0xff]
      %v179 = vld [vmem:[%s166 + $0x28] sm:$0xff]
      %v180 = vld [vmem:[%s166 + $0x30] sm:$0xff]
      %v181 = vld [vmem:[%s166 + $0x38] sm:$0xff]
      %v182 = vld [vmem:[%s1] sm:$0x1]
      %v184 = vlaneseq
      %v185 = vshrl.u32 %v184, 7
      %v186 = vsub.s32 0, %v185
      %v187 = vrot.slane %v182, %v186
      %v189 = vmul.f32 %v174, %v187
      %v190 = vmul.f32 %v175, %v187
      %v191 = vmul.f32 %v176, %v187
      %v192 = vmul.f32 %v177, %v187
      %v193 = vmul.f32 %v178, %v187
      %v194 = vmul.f32 %v179, %v187
      %v195 = vmul.f32 %v180, %v187
      %v196 = vmul.f32 %v181, %v187
      %v197 = vld [vmem:[%s2] sm:$0x1]
      %v199 = vlaneseq
      %v200 = vshrl.u32 %v199, 7
      %v201 = vsub.s32 0, %v200
      %v202 = vrot.slane %v197, %v201
      %v204 = vadd.f32 %v189, %v202
      %v205 = vadd.f32 %v190, %v202
      %v206 = vadd.f32 %v191, %v202
      %v207 = vadd.f32 %v192, %v202
      %v208 = vadd.f32 %v193, %v202
      %v209 = vadd.f32 %v194, %v202
      %v210 = vadd.f32 %v195, %v202
      %v211 = vadd.f32 %v196, %v202
      %v212 = vmax.f32 %v204, 0.0
      %v213 = vmax.f32 %v205, 0.0
      %v214 = vmax.f32 %v206, 0.0
      %v215 = vmax.f32 %v207, 0.0
      %v216 = vmax.f32 %v208, 0.0
      %v217 = vmax.f32 %v209, 0.0
      %v218 = vmax.f32 %v210, 0.0
      %v219 = vmax.f32 %v211, 0.0
      %v220 = vpack.c.bf16 %v213, %v212
      %v221 = vpack.c.bf16 %v215, %v214
      %v222 = vpack.c.bf16 %v217, %v216
      %v223 = vpack.c.bf16 %v219, %v218
      %v228 = vunpack.c.l.b16 %v220
      %v229 = vunpack.c.h.b16 %v220
      %v230 = vunpack.c.l.b16 %v221
      %v231 = vunpack.c.h.b16 %v221
      %v232 = vunpack.c.l.b16 %v222
      %v233 = vunpack.c.h.b16 %v222
      %v234 = vunpack.c.l.b16 %v223
      %v235 = vunpack.c.h.b16 %v223
      %v236 = vpack.c.b16 %v228, %v228
      %v237 = vpack.c.b16 %v229, %v229
      %v238 = vpack.c.b16 %v230, %v230
      %v239 = vpack.c.b16 %v231, %v231
      %v240 = vpack.c.b16 %v232, %v232
      %v241 = vpack.c.b16 %v233, %v233
      %v242 = vpack.c.b16 %v234, %v234
      %v243 = vpack.c.b16 %v235, %v235
      %252 = vst [vmem:[%s172] sm:$0xf] %v236
      %253 = vst [vmem:[%s172 + $0x4] sm:$0xf] %v237
      %254 = vst [vmem:[%s172 + $0x8] sm:$0xf] %v238
      %255 = vst [vmem:[%s172 + $0xc] sm:$0xf] %v239
      %256 = vst [vmem:[%s172 + $0x10] sm:$0xf] %v240
      %257 = vst [vmem:[%s172 + $0x14] sm:$0xf] %v241
      %258 = vst [vmem:[%s172 + $0x18] sm:$0xf] %v242
      %259 = vst [vmem:[%s172 + $0x1c] sm:$0xf] %v243
      %s260 = smul.u32 8, %s14
      %p261 = scmp.lt.s32.totalorder %s260, 15
      %s262 = scalar_select %p261, %s260, 15
      %s263 = smul.addr %s262, 4
      %s264 = scalar_lea.vmem %s3, %s263
      // Predicated region
      $region33: #{basic_block_forward.5} parent=31 // pred_check
        %p265 = pneg %p100
      $region34: #{basic_block_forward.5} parent=31 // pred_check_branch
        %267 = sbr.rel (%p265) target = $region36
      $region35: #{basic_block_forward.5} parent=31 // pred_region
        %s268 = smul.u32 8, %s14
      $region36: #{basic_block_forward.5} parent=31 // pred_fallthru
        _
    $region32: #{basic_block_forward.5} parent=5 // pred_fallthru
      _
    %p269 = scmp.le.s32.totalorder 2, %s9
    // Predicated region
    $region37: #{basic_block_forward.5} parent=5 // pred_check
      %p270 = pneg %p269
    $region38: #{basic_block_forward.5} parent=5 // pred_check_branch
      %272 = sbr.rel (%p270) target = $region40
    $region39: #{basic_block_forward.5} parent=5 // pred_region
      %s273 = ssub.s32 %s9, 2
      // Predicated region
      $region41: #{basic_block_forward.5} parent=39 // pred_check
        %p274 = pneg %p106
      $region42: #{basic_block_forward.5} parent=39 // pred_check_branch
        %276 = sbr.rel (%p274) target = $region44
      $region43: #{basic_block_forward.5} parent=39 // pred_region
        %s277 = smul.u32 8, %s15
        %p278 = scmp.lt.s32.totalorder %s277, 15
        %s279 = scalar_select %p278, %s277, 15
        %s280 = smul.addr %s279, 4
        %s281 = scalar_lea.vmem %s3, %s280
      $region44: #{basic_block_forward.5} parent=39 // pred_fallthru
        _
    $region40: #{basic_block_forward.5} parent=5 // pred_fallthru
      _
  $region6: #{basic_block_forward.5} parent=0 // loop_footer
    %s13 = sadd.s32 1, %s9
  $region7: #{basic_block_forward.5} parent=0 // loop_footer_branch
    %8 = sbr.rel target = $region3
  $region8: #{basic_block_forward.5} parent=0 // loop_exit
    _

// kernel: basic_block_forward.4
$region0: #{basic_block_forward.4}
  #allocation0 [shape = 'u32[]', space=smem, size = 0x4, offset = 0x4, fixed_abs, tag = 'smem constant byte address 0x4 - core index']
  #allocation1 [shape = 'u32[144,128]{1,0:T(1,128)}', space=vmem, size = 0x12000, scoped, tag = 'internal scratch']
  %s0 = inlined_call_operand.vmem [shape: bf16[128,1152], index: 0, kind: input, shape index: {}]
  %s1 = inlined_call_operand.vmem [shape: bf16[1152,128], index: 1, kind: input, shape index: {}]
  %s2 = inlined_call_operand.vmem [shape: f32[1,128], index: 2, kind: input, shape index: {}]
  %s3 = inlined_call_operand.vmem [shape: f32[1,128], index: 3, kind: input, shape index: {}]
  %s4 = inlined_call_operand.vmem [shape: f32[128,128], index: 4, kind: output, shape index: {0}]
  %s5 = inlined_call_operand.vmem [shape: f32[1,128], index: 5, kind: output, shape index: {1}]
  %s6 = inlined_call_operand.vmem [shape: f32[1,128], index: 6, kind: output, shape index: {2}]
  %7 = xla_tuple %s4, %s5, %s6
  %s8 = sld [smem:[#allocation0]]
  $region73: #{basic_block_forward.4} parent=0
    _
  %s10 = ssub.s32 1, %s8
  %s11 = scalar_select 0, %s10, %s8
  loop: start=0, step=1, limit=4
  $region2: #{basic_block_forward.4} parent=0 // loop_pre_header
    _
  $region3: #{basic_block_forward.4} parent=0 // loop_header
    %s13 = sphi 0, %s17
    %p14 = scmp.ge.s32.totalorder %s13, 4
    %s23 = sphi 0, %s25
    %s26 = sphi 0, %s23
    %s27 = sphi 0, %s26
    %s43 = sphi 0, %s27
    %s47 = sphi 0, %s47
    %s49 = sphi 0, %s47
    %s50 = sphi 0, %s49
    %s64 = sphi 0, %s50
    %s68 = sphi 0, %s68
    %s70 = sphi 0, %s68
    %s71 = sphi 0, %s70
    %s85 = sphi 0, %s71
    %s89 = sphi 0, %s89
    %s91 = sphi 0, %s89
    %s92 = sphi 0, %s91
    %s106 = sphi 0, %s92
    %s112 = sphi 0, %s114
    %s115 = sphi 0, %s112
    %s116 = sphi 0, %s115
    %s132 = sphi 0, %s116
    %s136 = sphi 0, %s136
    %s138 = sphi 0, %s136
    %s139 = sphi 0, %s138
    %s153 = sphi 0, %s139
    %s157 = sphi 0, %s157
    %s159 = sphi 0, %s157
    %s160 = sphi 0, %s159
    %s174 = sphi 0, %s160
  $region4: #{basic_block_forward.4} parent=0 // loop_header_branch
    %16 = sbr.rel (%p14) target = $region8
  $region5: #{basic_block_forward.4} parent=0 // loop_body
    %s18 = ssub.s32 %s13, 1
    %s19 = ssub.s32 %s13, 2
    %s20 = sadd.s32 %s13, 1
    %s21 = ssub.s32 %s13, %s20
    %p22 = scmp.eq.s32.totalorder %s21, 0
    %s24 = sadd.s32 %s23, 1
    %s25 = scalar_select %p22, %s23, %s24
    %p28 = pneg %p22
    %p29 = scmp.eq.s32.totalorder %s13, 1
    %p30 = por %p28, %p29
    %p31 = scmp.ne.s32.totalorder %s23, %s26
    %p32 = scmp.eq.s32.totalorder %s13, 0
    %p33 = por %p31, %p32
    %p34 = scmp.ne.s32.totalorder %s23, %s26
    %p35 = scmp.eq.s32.totalorder %s18, 1
    %p36 = por %p34, %p35
    %p37 = scmp.ne.s32.totalorder %s26, %s27
    %p38 = scmp.eq.s32.totalorder %s18, 0
    %p39 = por %p37, %p38
    %p40 = scmp.ne.s32.totalorder %s26, %s27
    %p41 = scmp.eq.s32.totalorder %s19, 1
    %p42 = por %p40, %p41
    %p44 = scmp.ne.s32.totalorder %s27, %s43
    %p45 = scmp.eq.s32.totalorder %s19, 0
    %p46 = por %p44, %p45
    %s48 = sadd.s32 %s47, 1
    %p51 = scmp.eq.s32.totalorder %s13, 1
    %p52 = scmp.ne.s32.totalorder %s47, %s49
    %p53 = scmp.eq.s32.totalorder %s13, 0
    %p54 = por %p52, %p53
    %p55 = scmp.ne.s32.totalorder %s47, %s49
    %p56 = scmp.eq.s32.totalorder %s18, 1
    %p57 = por %p55, %p56
    %p58 = scmp.ne.s32.totalorder %s49, %s50
    %p59 = scmp.eq.s32.totalorder %s18, 0
    %p60 = por %p58, %p59
    %p61 = scmp.ne.s32.totalorder %s49, %s50
    %p62 = scmp.eq.s32.totalorder %s19, 1
    %p63 = por %p61, %p62
    %p65 = scmp.ne.s32.totalorder %s50, %s64
    %p66 = scmp.eq.s32.totalorder %s19, 0
    %p67 = por %p65, %p66
    %s69 = sadd.s32 %s68, 1
    %p72 = scmp.eq.s32.totalorder %s13, 1
    %p73 = scmp.ne.s32.totalorder %s68, %s70
    %p74 = scmp.eq.s32.totalorder %s13, 0
    %p75 = por %p73, %p74
    %p76 = scmp.ne.s32.totalorder %s68, %s70
    %p77 = scmp.eq.s32.totalorder %s18, 1
    %p78 = por %p76, %p77
    %p79 = scmp.ne.s32.totalorder %s70, %s71
    %p80 = scmp.eq.s32.totalorder %s18, 0
    %p81 = por %p79, %p80
    %p82 = scmp.ne.s32.totalorder %s70, %s71
    %p83 = scmp.eq.s32.totalorder %s19, 1
    %p84 = por %p82, %p83
    %p86 = scmp.ne.s32.totalorder %s71, %s85
    %p87 = scmp.eq.s32.totalorder %s19, 0
    %p88 = por %p86, %p87
    %s90 = sadd.s32 %s89, 1
    %p93 = scmp.eq.s32.totalorder %s13, 1
    %p94 = scmp.ne.s32.totalorder %s89, %s91
    %p95 = scmp.eq.s32.totalorder %s13, 0
    %p96 = por %p94, %p95
    %p97 = scmp.ne.s32.totalorder %s89, %s91
    %p98 = scmp.eq.s32.totalorder %s18, 1
    %p99 = por %p97, %p98
    %p100 = scmp.ne.s32.totalorder %s91, %s92
    %p101 = scmp.eq.s32.totalorder %s18, 0
    %p102 = por %p100, %p101
    %p103 = scmp.ne.s32.totalorder %s91, %s92
    %p104 = scmp.eq.s32.totalorder %s19, 1
    %p105 = por %p103, %p104
    %p107 = scmp.ne.s32.totalorder %s92, %s106
    %p108 = scmp.eq.s32.totalorder %s19, 0
    %p109 = por %p107, %p108
    %s110 = ssub.s32 %s13, %s20
    %p111 = scmp.eq.s32.totalorder %s110, 0
    %s113 = sadd.s32 %s112, 1
    %s114 = scalar_select %p111, %s112, %s113
    %p117 = pneg %p111
    %p118 = scmp.eq.s32.totalorder %s13, 1
    %p119 = por %p117, %p118
    %p120 = scmp.ne.s32.totalorder %s112, %s115
    %p121 = scmp.eq.s32.totalorder %s13, 0
    %p122 = por %p120, %p121
    %p123 = scmp.ne.s32.totalorder %s112, %s115
    %p124 = scmp.eq.s32.totalorder %s18, 1
    %p125 = por %p123, %p124
    %p126 = scmp.ne.s32.totalorder %s115, %s116
    %p127 = scmp.eq.s32.totalorder %s18, 0
    %p128 = por %p126, %p127
    %p129 = scmp.ne.s32.totalorder %s115, %s116
    %p130 = scmp.eq.s32.totalorder %s19, 1
    %p131 = por %p129, %p130
    %p133 = scmp.ne.s32.totalorder %s116, %s132
    %p134 = scmp.eq.s32.totalorder %s19, 0
    %p135 = por %p133, %p134
    %s137 = sadd.s32 %s136, 1
    %p140 = scmp.eq.s32.totalorder %s13, 1
    %p141 = scmp.ne.s32.totalorder %s136, %s138
    %p142 = scmp.eq.s32.totalorder %s13, 0
    %p143 = por %p141, %p142
    %p144 = scmp.ne.s32.totalorder %s136, %s138
    %p145 = scmp.eq.s32.totalorder %s18, 1
    %p146 = por %p144, %p145
    %p147 = scmp.ne.s32.totalorder %s138, %s139
    %p148 = scmp.eq.s32.totalorder %s18, 0
    %p149 = por %p147, %p148
    %p150 = scmp.ne.s32.totalorder %s138, %s139
    %p151 = scmp.eq.s32.totalorder %s19, 1
    %p152 = por %p150, %p151
    %p154 = scmp.ne.s32.totalorder %s139, %s153
    %p155 = scmp.eq.s32.totalorder %s19, 0
    %p156 = por %p154, %p155
    %s158 = sadd.s32 %s157, 1
    %p161 = scmp.eq.s32.totalorder %s13, 1
    %p162 = scmp.ne.s32.totalorder %s157, %s159
    %p163 = scmp.eq.s32.totalorder %s13, 0
    %p164 = por %p162, %p163
    %p165 = scmp.ne.s32.totalorder %s157, %s159
    %p166 = scmp.eq.s32.totalorder %s18, 1
    %p167 = por %p165, %p166
    %p168 = scmp.ne.s32.totalorder %s159, %s160
    %p169 = scmp.eq.s32.totalorder %s18, 0
    %p170 = por %p168, %p169
    %p171 = scmp.ne.s32.totalorder %s159, %s160
    %p172 = scmp.eq.s32.totalorder %s19, 1
    %p173 = por %p171, %p172
    %p175 = scmp.ne.s32.totalorder %s160, %s174
    %p176 = scmp.eq.s32.totalorder %s19, 0
    %p177 = por %p175, %p176
    %p178 = scmp.le.s32.totalorder 1, %s13
    %p179 = scmp.lt.s32.totalorder %s13, 3
    %p180 = pnand %p178, %p179
    %p181 = pneg %p180
    // Predicated region
    $region9: #{basic_block_forward.4} parent=5 // pred_check
      _
    $region10: #{basic_block_forward.4} parent=5 // pred_check_branch
      %183 = sbr.rel (%p180) target = $region12
    $region11: #{basic_block_forward.4} parent=5 // pred_region
      %s184 = ssub.s32 %s13, 1
      // Predicated region
      $region13: #{basic_block_forward.4} parent=11 // pred_check
        %p185 = pneg %p60
      $region14: #{basic_block_forward.4} parent=11 // pred_check_branch
        %187 = sbr.rel (%p185) target = $region16
      $region15: #{basic_block_forward.4} parent=11 // pred_region
        _
      $region16: #{basic_block_forward.4} parent=11 // pred_fallthru
        _
      // Predicated region
      $region17: #{basic_block_forward.4} parent=11 // pred_check
        %p188 = pneg %p81
      $region18: #{basic_block_forward.4} parent=11 // pred_check_branch
        %190 = sbr.rel (%p188) target = $region20
      $region19: #{basic_block_forward.4} parent=11 // pred_region
        _
      $region20: #{basic_block_forward.4} parent=11 // pred_fallthru
        _
      // Predicated region
      $region21: #{basic_block_forward.4} parent=11 // pred_check
        %p191 = pneg %p102
      $region22: #{basic_block_forward.4} parent=11 // pred_check_branch
        %193 = sbr.rel (%p191) target = $region24
      $region23: #{basic_block_forward.4} parent=11 // pred_region
        _
      $region24: #{basic_block_forward.4} parent=11 // pred_fallthru
        _
    $region12: #{basic_block_forward.4} parent=5 // pred_fallthru
      _
    %p194 = scmp.lt.s32.totalorder %s13, 2
    // Predicated region
    $region25: #{basic_block_forward.4} parent=5 // pred_check
      %p195 = pneg %p194
    $region26: #{basic_block_forward.4} parent=5 // pred_check_branch
      %197 = sbr.rel (%p195) target = $region28
    $region27: #{basic_block_forward.4} parent=5 // pred_region
      // Predicated region
      $region29: #{basic_block_forward.4} parent=27 // pred_check
        %p198 = pneg %p33
      $region30: #{basic_block_forward.4} parent=27 // pred_check_branch
        %200 = sbr.rel (%p198) target = $region32
      $region31: #{basic_block_forward.4} parent=27 // pred_region
        %s201 = smul.u32 8, %s13
        %p202 = scmp.lt.s32.totalorder %s201, 15
        %s203 = scalar_select %p202, %s201, 15
        %s204 = smul.addr %s203, 9
        %s205 = smul.addr %s204, 4
        %s206 = scalar_lea.vmem %s0, %s205
        %s207 = smul.u32 8, %s13
      $region32: #{basic_block_forward.4} parent=27 // pred_fallthru
        _
    $region28: #{basic_block_forward.4} parent=5 // pred_fallthru
      _
    %p208 = scmp.le.s32.totalorder 1, %s13
    %p209 = scmp.lt.s32.totalorder %s13, 3
    %p210 = pnand %p208, %p209
    %p211 = pneg %p210
    // Predicated region
    $region33: #{basic_block_forward.4} parent=5 // pred_check
      _
    $region34: #{basic_block_forward.4} parent=5 // pred_check_branch
      %213 = sbr.rel (%p210) target = $region36
    $region35: #{basic_block_forward.4} parent=5 // pred_region
      %s214 = ssub.s32 %s13, 1
      %s215 = smul.u32 8, %s18
      %p216 = scmp.lt.s32.totalorder %s215, 15
      %s217 = scalar_select %p216, %s215, 15
      %s218 = smul.addr %s217, 9
      %s219 = smul.addr %s218, 4
      %s220 = scalar_lea.vmem %s0, %s219
      %p221 = pneg %p39
      %p222 = pneg %p36
      %p223 = pneg %p60
      %p224 = pneg %p57
      %p225 = pneg %p81
      %p226 = pneg %p78
      %p227 = pneg %p102
      %p228 = pneg %p99
      %p229 = pneg %p128
      %p230 = pneg %p125
      %s231 = smul.u32 8, %s18
      %p232 = scmp.lt.s32.totalorder %s231, 15
      %s233 = scalar_select %p232, %s231, 15
      %s234 = smul.addr %s233, 8
      %s235 = scalar_lea.vmem %s4, %s234
      %p236 = pneg %p149
      %p237 = pneg %p146
      %p238 = pneg %p170
      %p239 = pneg %p167
      %s240 = smul.u32 8, %s18
      %p241 = scmp.lt.s32.totalorder %s240, 15
      %s242 = scalar_select %p241, %s240, 15
      %s243 = smul.addr %s242, 9
      %s244 = smul.addr %s243, 4
      %s245 = scalar_lea.vmem %s0, %s244
      %s246 = smul.u32 8, %s18
      %s247 = smul.u32 8, %s18
      %p248 = scmp.lt.s32.totalorder %s247, 15
      %s249 = scalar_select %p248, %s247, 15
      %s250 = smul.addr %s249, 8
      %s251 = scalar_lea.vmem %s4, %s250
      %s252 = smul.u32 8, %s18
      %p254 = scmp.eq.s32.totalorder %s18, 0
      // Predicated region
      $region37: #{basic_block_forward.4} parent=35 // pred_check
        %p255 = pneg %p254
      $region38: #{basic_block_forward.4} parent=35 // pred_check_branch
        %257 = sbr.rel (%p255) target = $region40
      $region39: #{basic_block_forward.4} parent=35 // pred_region
        %258 = vst [vmem:[%s5] sm:$0x1] 0.0
        %259 = vst [vmem:[%s6] sm:$0x1] 0.0
      $region40: #{basic_block_forward.4} parent=35 // pred_fallthru
        _
      %v260 = vld [vmem:[%s245] sm:$0xff]
      %v261 = vld [vmem:[%s245 + $0x8] sm:$0xff]
      %v262 = vld [vmem:[%s245 + $0x10] sm:$0xff]
      %v263 = vld [vmem:[%s245 + $0x18] sm:$0xff]
      %v264 = vld [vmem:[%s245 + $0x20] sm:$0xf]
      %v265 = vld [vmem:[%s245 + $0x24] sm:$0xff]
      %v266 = vld [vmem:[%s245 + $0x2c] sm:$0xff]
      %v267 = vld [vmem:[%s245 + $0x34] sm:$0xff]
      %v268 = vld [vmem:[%s245 + $0x3c] sm:$0xff]
      %v269 = vld [vmem:[%s245 + $0x44] sm:$0xf]
      %v270 = vld [vmem:[%s245 + $0x48] sm:$0xff]
      %v271 = vld [vmem:[%s245 + $0x50] sm:$0xff]
      %v272 = vld [vmem:[%s245 + $0x58] sm:$0xff]
      %v273 = vld [vmem:[%s245 + $0x60] sm:$0xff]
      %v274 = vld [vmem:[%s245 + $0x68] sm:$0xf]
      %v275 = vld [vmem:[%s245 + $0x6c] sm:$0xff]
      %v276 = vld [vmem:[%s245 + $0x74] sm:$0xff]
      %v277 = vld [vmem:[%s245 + $0x7c] sm:$0xff]
      %v278 = vld [vmem:[%s245 + $0x84] sm:$0xff]
      %v279 = vld [vmem:[%s245 + $0x8c] sm:$0xf]
      %v280 = vld [vmem:[%s245 + $0x90] sm:$0xff]
      %v281 = vld [vmem:[%s245 + $0x98] sm:$0xff]
      %v282 = vld [vmem:[%s245 + $0xa0] sm:$0xff]
      %v283 = vld [vmem:[%s245 + $0xa8] sm:$0xff]
      %v284 = vld [vmem:[%s245 + $0xb0] sm:$0xf]
      %v285 = vld [vmem:[%s245 + $0xb4] sm:$0xff]
      %v286 = vld [vmem:[%s245 + $0xbc] sm:$0xff]
      %v287 = vld [vmem:[%s245 + $0xc4] sm:$0xff]
      %v288 = vld [vmem:[%s245 + $0xcc] sm:$0xff]
      %v289 = vld [vmem:[%s245 + $0xd4] sm:$0xf]
      %v290 = vld [vmem:[%s245 + $0xd8] sm:$0xff]
      %v291 = vld [vmem:[%s245 + $0xe0] sm:$0xff]
      %v292 = vld [vmem:[%s245 + $0xe8] sm:$0xff]
      %v293 = vld [vmem:[%s245 + $0xf0] sm:$0xff]
      %v294 = vld [vmem:[%s245 + $0xf8] sm:$0xf]
      %v295 = vld [vmem:[%s245 + $0xfc] sm:$0xff]
      %v296 = vld [vmem:[%s245 + $0x104] sm:$0xff]
      %v297 = vld [vmem:[%s245 + $0x10c] sm:$0xff]
      %v298 = vld [vmem:[%s245 + $0x114] sm:$0xff]
      %v299 = vld [vmem:[%s245 + $0x11c] sm:$0xf]
      %v300 = vld [vmem:[%s1] sm:$0xf]
      %v301 = vld [vmem:[%s1 + $0x4] sm:$0xf]
      %v302 = vld [vmem:[%s1 + $0x8] sm:$0xf]
      %v303 = vld [vmem:[%s1 + $0xc] sm:$0xf]
      %v304 = vld [vmem:[%s1 + $0x10] sm:$0xf]
      %v305 = vld [vmem:[%s1 + $0x14] sm:$0xf]
      %v306 = vld [vmem:[%s1 + $0x18] sm:$0xf]
      %v307 = vld [vmem:[%s1 + $0x1c] sm:$0xf]
      %v308 = vld [vmem:[%s1 + $0x20] sm:$0xf]
      %v309 = vld [vmem:[%s1 + $0x24] sm:$0xf]
      %v310 = vld [vmem:[%s1 + $0x28] sm:$0xf]
      %v311 = vld [vmem:[%s1 + $0x2c] sm:$0xf]
      %v312 = vld [vmem:[%s1 + $0x30] sm:$0xf]
      %v313 = vld [vmem:[%s1 + $0x34] sm:$0xf]
      %v314 = vld [vmem:[%s1 + $0x38] sm:$0xf]
      %v315 = vld [vmem:[%s1 + $0x3c] sm:$0xf]
      %v316 = vld [vmem:[%s1 + $0x40] sm:$0xf]
      %v317 = vld [vmem:[%s1 + $0x44] sm:$0xf]
      %v318 = vld [vmem:[%s1 + $0x48] sm:$0xf]
      %v319 = vld [vmem:[%s1 + $0x4c] sm:$0xf]
      %v320 = vld [vmem:[%s1 + $0x50] sm:$0xf]
      %v321 = vld [vmem:[%s1 + $0x54] sm:$0xf]
      %v322 = vld [vmem:[%s1 + $0x58] sm:$0xf]
      %v323 = vld [vmem:[%s1 + $0x5c] sm:$0xf]
      %v324 = vld [vmem:[%s1 + $0x60] sm:$0xf]
      %v325 = vld [vmem:[%s1 + $0x64] sm:$0xf]
      %v326 = vld [vmem:[%s1 + $0x68] sm:$0xf]
      %v327 = vld [vmem:[%s1 + $0x6c] sm:$0xf]
      %v328 = vld [vmem:[%s1 + $0x70] sm:$0xf]
      %v329 = vld [vmem:[%s1 + $0x74] sm:$0xf]
      %v330 = vld [vmem:[%s1 + $0x78] sm:$0xf]
      %v331 = vld [vmem:[%s1 + $0x7c] sm:$0xf]
      %v332 = vld [vmem:[%s1 + $0x80] sm:$0xf]
      %v333 = vld [vmem:[%s1 + $0x84] sm:$0xf]
      %v334 = vld [vmem:[%s1 + $0x88] sm:$0xf]
      %v335 = vld [vmem:[%s1 + $0x8c] sm:$0xf]
      %v336 = vld [vmem:[%s1 + $0x90] sm:$0xf]
      %v337 = vld [vmem:[%s1 + $0x94] sm:$0xf]
      %v338 = vld [vmem:[%s1 + $0x98] sm:$0xf]
      %v339 = vld [vmem:[%s1 + $0x9c] sm:$0xf]
      %v340 = vld [vmem:[%s1 + $0xa0] sm:$0xf]
      %v341 = vld [vmem:[%s1 + $0xa4] sm:$0xf]
      %v342 = vld [vmem:[%s1 + $0xa8] sm:$0xf]
      %v343 = vld [vmem:[%s1 + $0xac] sm:$0xf]
      %v344 = vld [vmem:[%s1 + $0xb0] sm:$0xf]
      %v345 = vld [vmem:[%s1 + $0xb4] sm:$0xf]
      %v346 = vld [vmem:[%s1 + $0xb8] sm:$0xf]
      %v347 = vld [vmem:[%s1 + $0xbc] sm:$0xf]
      %v348 = vld [vmem:[%s1 + $0xc0] sm:$0xf]
      %v349 = vld [vmem:[%s1 + $0xc4] sm:$0xf]
      %v350 = vld [vmem:[%s1 + $0xc8] sm:$0xf]
      %v351 = vld [vmem:[%s1 + $0xcc] sm:$0xf]
      %v352 = vld [vmem:[%s1 + $0xd0] sm:$0xf]
      %v353 = vld [vmem:[%s1 + $0xd4] sm:$0xf]
      %v354 = vld [vmem:[%s1 + $0xd8] sm:$0xf]
      %v355 = vld [vmem:[%s1 + $0xdc] sm:$0xf]
      %v356 = vld [vmem:[%s1 + $0xe0] sm:$0xf]
      %v357 = vld [vmem:[%s1 + $0xe4] sm:$0xf]
      %v358 = vld [vmem:[%s1 + $0xe8] sm:$0xf]
      %v359 = vld [vmem:[%s1 + $0xec] sm:$0xf]
      %v360 = vld [vmem:[%s1 + $0xf0] sm:$0xf]
      %v361 = vld [vmem:[%s1 + $0xf4] sm:$0xf]
      %v362 = vld [vmem:[%s1 + $0xf8] sm:$0xf]
      %v363 = vld [vmem:[%s1 + $0xfc] sm:$0xf]
      %v364 = vld [vmem:[%s1 + $0x100] sm:$0xf]
      %v365 = vld [vmem:[%s1 + $0x104] sm:$0xf]
      %v366 = vld [vmem:[%s1 + $0x108] sm:$0xf]
      %v367 = vld [vmem:[%s1 + $0x10c] sm:$0xf]
      %v368 = vld [vmem:[%s1 + $0x110] sm:$0xf]
      %v369 = vld [vmem:[%s1 + $0x114] sm:$0xf]
      %v370 = vld [vmem:[%s1 + $0x118] sm:$0xf]
      %v371 = vld [vmem:[%s1 + $0x11c] sm:$0xf]
      %v372 = vld [vmem:[%s1 + $0x120] sm:$0xf]
      %v373 = vld [vmem:[%s1 + $0x124] sm:$0xf]
      %v374 = vld [vmem:[%s1 + $0x128] sm:$0xf]
      %v375 = vld [vmem:[%s1 + $0x12c] sm:$0xf]
      %v376 = vld [vmem:[%s1 + $0x130] sm:$0xf]
      %v377 = vld [vmem:[%s1 + $0x134] sm:$0xf]
      %v378 = vld [vmem:[%s1 + $0x138] sm:$0xf]
      %v379 = vld [vmem:[%s1 + $0x13c] sm:$0xf]
      %v380 = vld [vmem:[%s1 + $0x140] sm:$0xf]
      %v381 = vld [vmem:[%s1 + $0x144] sm:$0xf]
      %v382 = vld [vmem:[%s1 + $0x148] sm:$0xf]
      %v383 = vld [vmem:[%s1 + $0x14c] sm:$0xf]
      %v384 = vld [vmem:[%s1 + $0x150] sm:$0xf]
      %v385 = vld [vmem:[%s1 + $0x154] sm:$0xf]
      %v386 = vld [vmem:[%s1 + $0x158] sm:$0xf]
      %v387 = vld [vmem:[%s1 + $0x15c] sm:$0xf]
      %v388 = vld [vmem:[%s1 + $0x160] sm:$0xf]
      %v389 = vld [vmem:[%s1 + $0x164] sm:$0xf]
      %v390 = vld [vmem:[%s1 + $0x168] sm:$0xf]
      %v391 = vld [vmem:[%s1 + $0x16c] sm:$0xf]
      %v392 = vld [vmem:[%s1 + $0x170] sm:$0xf]
      %v393 = vld [vmem:[%s1 + $0x174] sm:$0xf]
      %v394 = vld [vmem:[%s1 + $0x178] sm:$0xf]
      %v395 = vld [vmem:[%s1 + $0x17c] sm:$0xf]
      %v396 = vld [vmem:[%s1 + $0x180] sm:$0xf]
      %v397 = vld [vmem:[%s1 + $0x184] sm:$0xf]
      %v398 = vld [vmem:[%s1 + $0x188] sm:$0xf]
      %v399 = vld [vmem:[%s1 + $0x18c] sm:$0xf]
      %v400 = vld [vmem:[%s1 + $0x190] sm:$0xf]
      %v401 = vld [vmem:[%s1 + $0x194] sm:$0xf]
      %v402 = vld [vmem:[%s1 + $0x198] sm:$0xf]
      %v403 = vld [vmem:[%s1 + $0x19c] sm:$0xf]
      %v404 = vld [vmem:[%s1 + $0x1a0] sm:$0xf]
      %v405 = vld [vmem:[%s1 + $0x1a4] sm:$0xf]
      %v406 = vld [vmem:[%s1 + $0x1a8] sm:$0xf]
      %v407 = vld [vmem:[%s1 + $0x1ac] sm:$0xf]
      %v408 = vld [vmem:[%s1 + $0x1b0] sm:$0xf]
      %v409 = vld [vmem:[%s1 + $0x1b4] sm:$0xf]
      %v410 = vld [vmem:[%s1 + $0x1b8] sm:$0xf]
      %v411 = vld [vmem:[%s1 + $0x1bc] sm:$0xf]
      %v412 = vld [vmem:[%s1 + $0x1c0] sm:$0xf]
      %v413 = vld [vmem:[%s1 + $0x1c4] sm:$0xf]
      %v414 = vld [vmem:[%s1 + $0x1c8] sm:$0xf]
      %v415 = vld [vmem:[%s1 + $0x1cc] sm:$0xf]
      %v416 = vld [vmem:[%s1 + $0x1d0] sm:$0xf]
      %v417 = vld [vmem:[%s1 + $0x1d4] sm:$0xf]
      %v418 = vld [vmem:[%s1 + $0x1d8] sm:$0xf]
      %v419 = vld [vmem:[%s1 + $0x1dc] sm:$0xf]
      %v420 = vld [vmem:[%s1 + $0x1e0] sm:$0xf]
      %v421 = vld [vmem:[%s1 + $0x1e4] sm:$0xf]
      %v422 = vld [vmem:[%s1 + $0x1e8] sm:$0xf]
      %v423 = vld [vmem:[%s1 + $0x1ec] sm:$0xf]
      %v424 = vld [vmem:[%s1 + $0x1f0] sm:$0xf]
      %v425 = vld [vmem:[%s1 + $0x1f4] sm:$0xf]
      %v426 = vld [vmem:[%s1 + $0x1f8] sm:$0xf]
      %v427 = vld [vmem:[%s1 + $0x1fc] sm:$0xf]
      %v428 = vld [vmem:[%s1 + $0x200] sm:$0xf]
      %v429 = vld [vmem:[%s1 + $0x204] sm:$0xf]
      %v430 = vld [vmem:[%s1 + $0x208] sm:$0xf]
      %v431 = vld [vmem:[%s1 + $0x20c] sm:$0xf]
      %v432 = vld [vmem:[%s1 + $0x210] sm:$0xf]
      %v433 = vld [vmem:[%s1 + $0x214] sm:$0xf]
      %v434 = vld [vmem:[%s1 + $0x218] sm:$0xf]
      %v435 = vld [vmem:[%s1 + $0x21c] sm:$0xf]
      %v436 = vld [vmem:[%s1 + $0x220] sm:$0xf]
      %v437 = vld [vmem:[%s1 + $0x224] sm:$0xf]
      %v438 = vld [vmem:[%s1 + $0x228] sm:$0xf]
      %v439 = vld [vmem:[%s1 + $0x22c] sm:$0xf]
      %v440 = vld [vmem:[%s1 + $0x230] sm:$0xf]
      %v441 = vld [vmem:[%s1 + $0x234] sm:$0xf]
      %v442 = vld [vmem:[%s1 + $0x238] sm:$0xf]
      %v443 = vld [vmem:[%s1 + $0x23c] sm:$0xf]
      %v484 = vunpack.c.l.b16 %v260
      %v485 = vunpack.c.h.b16 %v260
      %v486 = vunpack.c.l.b16 %v261
      %v487 = vunpack.c.h.b16 %v261
      %v488 = vunpack.c.l.b16 %v262
      %v489 = vunpack.c.h.b16 %v262
      %v490 = vunpack.c.l.b16 %v263
      %v491 = vunpack.c.h.b16 %v263
      %v492 = vunpack.c.l.b16 %v264
      %v493 = vunpack.c.l.b16 %v265
      %v494 = vunpack.c.h.b16 %v265
      %v495 = vunpack.c.l.b16 %v266
      %v496 = vunpack.c.h.b16 %v266
      %v497 = vunpack.c.l.b16 %v267
      %v498 = vunpack.c.h.b16 %v267
      %v499 = vunpack.c.l.b16 %v268
      %v500 = vunpack.c.h.b16 %v268
      %v501 = vunpack.c.l.b16 %v269
      %v502 = vunpack.c.l.b16 %v270
      %v503 = vunpack.c.h.b16 %v270
      %v504 = vunpack.c.l.b16 %v271
      %v505 = vunpack.c.h.b16 %v271
      %v506 = vunpack.c.l.b16 %v272
      %v507 = vunpack.c.h.b16 %v272
      %v508 = vunpack.c.l.b16 %v273
      %v509 = vunpack.c.h.b16 %v273
      %v510 = vunpack.c.l.b16 %v274
      %v511 = vunpack.c.l.b16 %v275
      %v512 = vunpack.c.h.b16 %v275
      %v513 = vunpack.c.l.b16 %v276
      %v514 = vunpack.c.h.b16 %v276
      %v515 = vunpack.c.l.b16 %v277
      %v516 = vunpack.c.h.b16 %v277
      %v517 = vunpack.c.l.b16 %v278
      %v518 = vunpack.c.h.b16 %v278
      %v519 = vunpack.c.l.b16 %v279
      %v520 = vunpack.c.l.b16 %v280
      %v521 = vunpack.c.h.b16 %v280
      %v522 = vunpack.c.l.b16 %v281
      %v523 = vunpack.c.h.b16 %v281
      %v524 = vunpack.c.l.b16 %v282
      %v525 = vunpack.c.h.b16 %v282
      %v526 = vunpack.c.l.b16 %v283
      %v527 = vunpack.c.h.b16 %v283
      %v528 = vunpack.c.l.b16 %v284
      %v529 = vunpack.c.l.b16 %v285
      %v530 = vunpack.c.h.b16 %v285
      %v531 = vunpack.c.l.b16 %v286
      %v532 = vunpack.c.h.b16 %v286
      %v533 = vunpack.c.l.b16 %v287
      %v534 = vunpack.c.h.b16 %v287
      %v535 = vunpack.c.l.b16 %v288
      %v536 = vunpack.c.h.b16 %v288
      %v537 = vunpack.c.l.b16 %v289
      %v538 = vunpack.c.l.b16 %v290
      %v539 = vunpack.c.h.b16 %v290
      %v540 = vunpack.c.l.b16 %v291
      %v541 = vunpack.c.h.b16 %v291
      %v542 = vunpack.c.l.b16 %v292
      %v543 = vunpack.c.h.b16 %v292
      %v544 = vunpack.c.l.b16 %v293
      %v545 = vunpack.c.h.b16 %v293
      %v546 = vunpack.c.l.b16 %v294
      %v547 = vunpack.c.l.b16 %v295
      %v548 = vunpack.c.h.b16 %v295
      %v549 = vunpack.c.l.b16 %v296
      %v550 = vunpack.c.h.b16 %v296
      %v551 = vunpack.c.l.b16 %v297
      %v552 = vunpack.c.h.b16 %v297
      %v553 = vunpack.c.l.b16 %v298
      %v554 = vunpack.c.h.b16 %v298
      %v555 = vunpack.c.l.b16 %v299
      %v556 = vpack.c.b16 %v493, %v484
      %v557 = vpack.c.b16 %v494, %v485
      %v558 = vpack.c.b16 %v495, %v486
      %v559 = vpack.c.b16 %v496, %v487
      %v560 = vpack.c.b16 %v497, %v488
      %v561 = vpack.c.b16 %v498, %v489
      %v562 = vpack.c.b16 %v499, %v490
      %v563 = vpack.c.b16 %v500, %v491
      %v564 = vpack.c.b16 %v501, %v492
      %v565 = vpack.c.b16 %v511, %v502
      %v566 = vpack.c.b16 %v512, %v503
      %v567 = vpack.c.b16 %v513, %v504
      %v568 = vpack.c.b16 %v514, %v505
      %v569 = vpack.c.b16 %v515, %v506
      %v570 = vpack.c.b16 %v516, %v507
      %v571 = vpack.c.b16 %v517, %v508
      %v572 = vpack.c.b16 %v518, %v509
      %v573 = vpack.c.b16 %v519, %v510
      %v574 = vpack.c.b16 %v529, %v520
      %v575 = vpack.c.b16 %v530, %v521
      %v576 = vpack.c.b16 %v531, %v522
      %v577 = vpack.c.b16 %v532, %v523
      %v578 = vpack.c.b16 %v533, %v524
      %v579 = vpack.c.b16 %v534, %v525
      %v580 = vpack.c.b16 %v535, %v526
      %v581 = vpack.c.b16 %v536, %v527
      %v582 = vpack.c.b16 %v537, %v528
      %v583 = vpack.c.b16 %v547, %v538
      %v584 = vpack.c.b16 %v548, %v539
      %v585 = vpack.c.b16 %v549, %v540
      %v586 = vpack.c.b16 %v550, %v541
      %v587 = vpack.c.b16 %v551, %v542
      %v588 = vpack.c.b16 %v552, %v543
      %v589 = vpack.c.b16 %v553, %v544
      %v590 = vpack.c.b16 %v554, %v545
      %v591 = vpack.c.b16 %v555, %v546
      %v772 = vunpack.c.l.b16 %v300
      %v773 = vunpack.c.l.b16 %v301
      %v774 = vunpack.c.l.b16 %v302
      %v775 = vunpack.c.l.b16 %v303
      %v776 = vunpack.c.l.b16 %v304
      %v777 = vunpack.c.l.b16 %v305
      %v778 = vunpack.c.l.b16 %v306
      %v779 = vunpack.c.l.b16 %v307
      %v780 = vunpack.c.l.b16 %v308
      %v781 = vunpack.c.l.b16 %v309
      %v782 = vunpack.c.l.b16 %v310
      %v783 = vunpack.c.l.b16 %v311
      %v784 = vunpack.c.l.b16 %v312
      %v785 = vunpack.c.l.b16 %v313
      %v786 = vunpack.c.l.b16 %v314
      %v787 = vunpack.c.l.b16 %v315
      %v788 = vunpack.c.l.b16 %v316
      %v789 = vunpack.c.l.b16 %v317
      %v790 = vunpack.c.l.b16 %v318
      %v791 = vunpack.c.l.b16 %v319
      %v792 = vunpack.c.l.b16 %v320
      %v793 = vunpack.c.l.b16 %v321
      %v794 = vunpack.c.l.b16 %v322
      %v795 = vunpack.c.l.b16 %v323
      %v796 = vunpack.c.l.b16 %v324
      %v797 = vunpack.c.l.b16 %v325
      %v798 = vunpack.c.l.b16 %v326
      %v799 = vunpack.c.l.b16 %v327
      %v800 = vunpack.c.l.b16 %v328
      %v801 = vunpack.c.l.b16 %v329
      %v802 = vunpack.c.l.b16 %v330
      %v803 = vunpack.c.l.b16 %v331
      %v804 = vunpack.c.l.b16 %v332
      %v805 = vunpack.c.l.b16 %v333
      %v806 = vunpack.c.l.b16 %v334
      %v807 = vunpack.c.l.b16 %v335
      %v808 = vunpack.c.l.b16 %v336
      %v809 = vunpack.c.l.b16 %v337
      %v810 = vunpack.c.l.b16 %v338
      %v811 = vunpack.c.l.b16 %v339
      %v812 = vunpack.c.l.b16 %v340
      %v813 = vunpack.c.l.b16 %v341
      %v814 = vunpack.c.l.b16 %v342
      %v815 = vunpack.c.l.b16 %v343
      %v816 = vunpack.c.l.b16 %v344
      %v817 = vunpack.c.l.b16 %v345
      %v818 = vunpack.c.l.b16 %v346
      %v819 = vunpack.c.l.b16 %v347
      %v820 = vunpack.c.l.b16 %v348
      %v821 = vunpack.c.l.b16 %v349
      %v822 = vunpack.c.l.b16 %v350
      %v823 = vunpack.c.l.b16 %v351
      %v824 = vunpack.c.l.b16 %v352
      %v825 = vunpack.c.l.b16 %v353
      %v826 = vunpack.c.l.b16 %v354
      %v827 = vunpack.c.l.b16 %v355
      %v828 = vunpack.c.l.b16 %v356
      %v829 = vunpack.c.l.b16 %v357
      %v830 = vunpack.c.l.b16 %v358
      %v831 = vunpack.c.l.b16 %v359
      %v832 = vunpack.c.l.b16 %v360
      %v833 = vunpack.c.l.b16 %v361
      %v834 = vunpack.c.l.b16 %v362
      %v835 = vunpack.c.l.b16 %v363
      %v836 = vunpack.c.l.b16 %v364
      %v837 = vunpack.c.l.b16 %v365
      %v838 = vunpack.c.l.b16 %v366
      %v839 = vunpack.c.l.b16 %v367
      %v840 = vunpack.c.l.b16 %v368
      %v841 = vunpack.c.l.b16 %v369
      %v842 = vunpack.c.l.b16 %v370
      %v843 = vunpack.c.l.b16 %v371
      %v844 = vunpack.c.l.b16 %v372
      %v845 = vunpack.c.l.b16 %v373
      %v846 = vunpack.c.l.b16 %v374
      %v847 = vunpack.c.l.b16 %v375
      %v848 = vunpack.c.l.b16 %v376
      %v849 = vunpack.c.l.b16 %v377
      %v850 = vunpack.c.l.b16 %v378
      %v851 = vunpack.c.l.b16 %v379
      %v852 = vunpack.c.l.b16 %v380
      %v853 = vunpack.c.l.b16 %v381
      %v854 = vunpack.c.l.b16 %v382
      %v855 = vunpack.c.l.b16 %v383
      %v856 = vunpack.c.l.b16 %v384
      %v857 = vunpack.c.l.b16 %v385
      %v858 = vunpack.c.l.b16 %v386
      %v859 = vunpack.c.l.b16 %v387
      %v860 = vunpack.c.l.b16 %v388
      %v861 = vunpack.c.l.b16 %v389
      %v862 = vunpack.c.l.b16 %v390
      %v863 = vunpack.c.l.b16 %v391
      %v864 = vunpack.c.l.b16 %v392
      %v865 = vunpack.c.l.b16 %v393
      %v866 = vunpack.c.l.b16 %v394
      %v867 = vunpack.c.l.b16 %v395
      %v868 = vunpack.c.l.b16 %v396
      %v869 = vunpack.c.l.b16 %v397
      %v870 = vunpack.c.l.b16 %v398
      %v871 = vunpack.c.l.b16 %v399
      %v872 = vunpack.c.l.b16 %v400
      %v873 = vunpack.c.l.b16 %v401
      %v874 = vunpack.c.l.b16 %v402
      %v875 = vunpack.c.l.b16 %v403
      %v876 = vunpack.c.l.b16 %v404
      %v877 = vunpack.c.l.b16 %v405
      %v878 = vunpack.c.l.b16 %v406
      %v879 = vunpack.c.l.b16 %v407
      %v880 = vunpack.c.l.b16 %v408
      %v881 = vunpack.c.l.b16 %v409
      %v882 = vunpack.c.l.b16 %v410
      %v883 = vunpack.c.l.b16 %v411
      %v884 = vunpack.c.l.b16 %v412
      %v885 = vunpack.c.l.b16 %v413
      %v886 = vunpack.c.l.b16 %v414
      %v887 = vunpack.c.l.b16 %v415
      %v888 = vunpack.c.l.b16 %v416
      %v889 = vunpack.c.l.b16 %v417
      %v890 = vunpack.c.l.b16 %v418
      %v891 = vunpack.c.l.b16 %v419
      %v892 = vunpack.c.l.b16 %v420
      %v893 = vunpack.c.l.b16 %v421
      %v894 = vunpack.c.l.b16 %v422
      %v895 = vunpack.c.l.b16 %v423
      %v896 = vunpack.c.l.b16 %v424
      %v897 = vunpack.c.l.b16 %v425
      %v898 = vunpack.c.l.b16 %v426
      %v899 = vunpack.c.l.b16 %v427
      %v900 = vunpack.c.l.b16 %v428
      %v901 = vunpack.c.l.b16 %v429
      %v902 = vunpack.c.l.b16 %v430
      %v903 = vunpack.c.l.b16 %v431
      %v904 = vunpack.c.l.b16 %v432
      %v905 = vunpack.c.l.b16 %v433
      %v906 = vunpack.c.l.b16 %v434
      %v907 = vunpack.c.l.b16 %v435
      %v908 = vunpack.c.l.b16 %v436
      %v909 = vunpack.c.l.b16 %v437
      %v910 = vunpack.c.l.b16 %v438
      %v911 = vunpack.c.l.b16 %v439
      %v912 = vunpack.c.l.b16 %v440
      %v913 = vunpack.c.l.b16 %v441
      %v914 = vunpack.c.l.b16 %v442
      %v915 = vunpack.c.l.b16 %v443
      %v916 = vpack.c.b16 %v773, %v772
      %v917 = vpack.c.b16 %v775, %v774
      %v918 = vpack.c.b16 %v777, %v776
      %v919 = vpack.c.b16 %v779, %v778
      %v920 = vpack.c.b16 %v781, %v780
      %v921 = vpack.c.b16 %v783, %v782
      %v922 = vpack.c.b16 %v785, %v784
      %v923 = vpack.c.b16 %v787, %v786
      %v924 = vpack.c.b16 %v789, %v788
      %v925 = vpack.c.b16 %v791, %v790
      %v926 = vpack.c.b16 %v793, %v792
      %v927 = vpack.c.b16 %v795, %v794
      %v928 = vpack.c.b16 %v797, %v796
      %v929 = vpack.c.b16 %v799, %v798
      %v930 = vpack.c.b16 %v801, %v800
      %v931 = vpack.c.b16 %v803, %v802
      %v932 = vpack.c.b16 %v805, %v804
      %v933 = vpack.c.b16 %v807, %v806
      %v934 = vpack.c.b16 %v809, %v808
      %v935 = vpack.c.b16 %v811, %v810
      %v936 = vpack.c.b16 %v813, %v812
      %v937 = vpack.c.b16 %v815, %v814
      %v938 = vpack.c.b16 %v817, %v816
      %v939 = vpack.c.b16 %v819, %v818
      %v940 = vpack.c.b16 %v821, %v820
      %v941 = vpack.c.b16 %v823, %v822
      %v942 = vpack.c.b16 %v825, %v824
      %v943 = vpack.c.b16 %v827, %v826
      %v944 = vpack.c.b16 %v829, %v828
      %v945 = vpack.c.b16 %v831, %v830
      %v946 = vpack.c.b16 %v833, %v832
      %v947 = vpack.c.b16 %v835, %v834
      %v948 = vpack.c.b16 %v837, %v836
      %v949 = vpack.c.b16 %v839, %v838
      %v950 = vpack.c.b16 %v841, %v840
      %v951 = vpack.c.b16 %v843, %v842
      %v952 = vpack.c.b16 %v845, %v844
      %v953 = vpack.c.b16 %v847, %v846
      %v954 = vpack.c.b16 %v849, %v848
      %v955 = vpack.c.b16 %v851, %v850
      %v956 = vpack.c.b16 %v853, %v852
      %v957 = vpack.c.b16 %v855, %v854
      %v958 = vpack.c.b16 %v857, %v856
      %v959 = vpack.c.b16 %v859, %v858
      %v960 = vpack.c.b16 %v861, %v860
      %v961 = vpack.c.b16 %v863, %v862
      %v962 = vpack.c.b16 %v865, %v864
      %v963 = vpack.c.b16 %v867, %v866
      %v964 = vpack.c.b16 %v869, %v868
      %v965 = vpack.c.b16 %v871, %v870
      %v966 = vpack.c.b16 %v873, %v872
      %v967 = vpack.c.b16 %v875, %v874
      %v968 = vpack.c.b16 %v877, %v876
      %v969 = vpack.c.b16 %v879, %v878
      %v970 = vpack.c.b16 %v881, %v880
      %v971 = vpack.c.b16 %v883, %v882
      %v972 = vpack.c.b16 %v885, %v884
      %v973 = vpack.c.b16 %v887, %v886
      %v974 = vpack.c.b16 %v889, %v888
      %v975 = vpack.c.b16 %v891, %v890
      %v976 = vpack.c.b16 %v893, %v892
      %v977 = vpack.c.b16 %v895, %v894
      %v978 = vpack.c.b16 %v897, %v896
      %v979 = vpack.c.b16 %v899, %v898
      %v980 = vpack.c.b16 %v901, %v900
      %v981 = vpack.c.b16 %v903, %v902
      %v982 = vpack.c.b16 %v905, %v904
      %v983 = vpack.c.b16 %v907, %v906
      %v984 = vpack.c.b16 %v909, %v908
      %v985 = vpack.c.b16 %v911, %v910
      %v986 = vpack.c.b16 %v913, %v912
      %v987 = vpack.c.b16 %v915, %v914
      %1060 = vmatprep.subr.bf16.mxu0 0
      %1061 = vmatpush1.bf16.msra.mxu0 %v916
      %1062 = vmatprep.subr.bf16.mxu0 0
      %1063 = vmatpush1.bf16.msra.mxu0 %v917
      %1064 = vmatprep.subr.bf16.mxu0 0
      %1065 = vmatpush1.bf16.msra.mxu0 %v918
      %1066 = vmatprep.subr.bf16.mxu0 0
      %1067 = vmatpush1.bf16.msra.mxu0 %v919
      %1068 = vmatprep.subr.bf16.mxu0 0
      %1069 = vmatpush1.bf16.msra.mxu0 %v920
      %1070 = vmatprep.subr.bf16.mxu0 0
      %1071 = vmatpush1.bf16.msra.mxu0 %v921
      %1072 = vmatprep.subr.bf16.mxu0 0
      %1073 = vmatpush1.bf16.msra.mxu0 %v922
      %1074 = vmatprep.subr.bf16.mxu0 0
      %1075 = vmatpush1.bf16.msra.mxu0 %v923
      %1076 = vmatprep.subr.bf16.mxu0 0
      %1077 = vmatpush1.bf16.msra.mxu0 %v924
      %1078 = vmatprep.subr.bf16.mxu0 0
      %1079 = vmatpush1.bf16.msra.mxu0 %v925
      %1080 = vmatprep.subr.bf16.mxu0 0
      %1081 = vmatpush1.bf16.msra.mxu0 %v926
      %1082 = vmatprep.subr.bf16.mxu0 0
      %1083 = vmatpush1.bf16.msra.mxu0 %v927
      %1084 = vmatprep.subr.bf16.mxu0 0
      %1085 = vmatpush1.bf16.msra.mxu0 %v928
      %1086 = vmatprep.subr.bf16.mxu0 0
      %1087 = vmatpush1.bf16.msra.mxu0 %v929
      %1088 = vmatprep.subr.bf16.mxu0 0
      %1089 = vmatpush1.bf16.msra.mxu0 %v930
      %1090 = vmatprep.subr.bf16.mxu0 0
      %1091 = vmatpush1.bf16.msra.mxu0 %v931
      %1092 = vmatprep.mubr.bf16.mxu0 %v557
      %1093 = vmatmul.mubr.bf16.gmra.mrb[0].mxu0 %v556
      %v1094 = vpop.f32.mrb[0].mxu0
      %v1095 = vadd.f32 0.0, %v1094
      %v1096 = vpop.f32.mrb[0].mxu0
      %v1097 = vpop.f32.mrb[0].mxu0
      %v1098 = vadd.f32 0.0, %v1097
      %v1099 = vpop.f32.mrb[0].mxu0
      %1100 = vmatprep.mubr.bf16.mxu0 %v566
      %1101 = vmatmul.mubr.bf16.gmra.mrb[0].mxu0 %v565
      %v1102 = vpop.f32.mrb[0].mxu0
      %v1103 = vadd.f32 0.0, %v1102
      %v1104 = vpop.f32.mrb[0].mxu0
      %v1105 = vpop.f32.mrb[0].mxu0
      %v1106 = vadd.f32 0.0, %v1105
      %v1107 = vpop.f32.mrb[0].mxu0
      %1108 = vmatprep.mubr.bf16.mxu0 %v575
      %1109 = vmatmul.mubr.bf16.gmra.mrb[0].mxu0 %v574
      %v1110 = vpop.f32.mrb[0].mxu0
      %v1111 = vadd.f32 0.0, %v1110
      %v1112 = vpop.f32.mrb[0].mxu0
      %v1113 = vpop.f32.mrb[0].mxu0
      %v1114 = vadd.f32 0.0, %v1113
      %v1115 = vpop.f32.mrb[0].mxu0
      %1116 = vmatprep.mubr.bf16.mxu0 %v584
      %1117 = vmatmul.mubr.bf16.gmra.mrb[0].mxu0 %v583
      %v1118 = vpop.f32.mrb[0].mxu0
      %v1119 = vadd.f32 0.0, %v1118
      %v1120 = vpop.f32.mrb[0].mxu0
      %v1121 = vpop.f32.mrb[0].mxu0
      %v1122 = vadd.f32 0.0, %v1121
      %v1123 = vpop.f32.mrb[0].mxu0
      %1124 = vdwg.mxu0
      %1125 = vmatprep.subr.bf16.mxu0 0
      %1126 = vmatpush1.bf16.msra.mxu0 %v932
      %1127 = vmatprep.subr.bf16.mxu0 0
      %1128 = vmatpush1.bf16.msra.mxu0 %v933
      %1129 = vmatprep.subr.bf16.mxu0 0
      %1130 = vmatpush1.bf16.msra.mxu0 %v934
      %1131 = vmatprep.subr.bf16.mxu0 0
      %1132 = vmatpush1.bf16.msra.mxu0 %v935
      %1133 = vmatprep.subr.bf16.mxu0 0
      %1134 = vmatpush1.bf16.msra.mxu0 %v936
      %1135 = vmatprep.subr.bf16.mxu0 0
      %1136 = vmatpush1.bf16.msra.mxu0 %v937
      %1137 = vmatprep.subr.bf16.mxu0 0
      %1138 = vmatpush1.bf16.msra.mxu0 %v938
      %1139 = vmatprep.subr.bf16.mxu0 0
      %1140 = vmatpush1.bf16.msra.mxu0 %v939
      %1141 = vmatprep.subr.bf16.mxu0 0
      %1142 = vmatpush1.bf16.msra.mxu0 %v940
      %1143 = vmatprep.subr.bf16.mxu0 0
      %1144 = vmatpush1.bf16.msra.mxu0 %v941
      %1145 = vmatprep.subr.bf16.mxu0 0
      %1146 = vmatpush1.bf16.msra.mxu0 %v942
      %1147 = vmatprep.subr.bf16.mxu0 0
      %1148 = vmatpush1.bf16.msra.mxu0 %v943
      %1149 = vmatprep.subr.bf16.mxu0 0
      %1150 = vmatpush1.bf16.msra.mxu0 %v944
      %1151 = vmatprep.subr.bf16.mxu0 0
      %1152 = vmatpush1.bf16.msra.mxu0 %v945
      %1153 = vmatprep.subr.bf16.mxu0 0
      %1154 = vmatpush1.bf16.msra.mxu0 %v946
      %1155 = vmatprep.subr.bf16.mxu0 0
      %1156 = vmatpush1.bf16.msra.mxu0 %v947
      %1157 = vmatprep.mubr.bf16.mxu0 %v559
      %1158 = vmatmul.mubr.bf16.gmra.mrb[0].mxu0 %v558
      %v1159 = vpop.f32.mrb[0].mxu0
      %v1160 = vadd.f32 %v1095, %v1159
      %v1161 = vpop.f32.mrb[0].mxu0
      %v1162 = vpop.f32.mrb[0].mxu0
      %v1163 = vadd.f32 %v1098, %v1162
      %v1164 = vpop.f32.mrb[0].mxu0
      %1165 = vmatprep.mubr.bf16.mxu0 %v568
      %1166 = vmatmul.mubr.bf16.gmra.mrb[0].mxu0 %v567
      %v1167 = vpop.f32.mrb[0].mxu0
      %v1168 = vadd.f32 %v1103, %v1167
      %v1169 = vpop.f32.mrb[0].mxu0
      %v1170 = vpop.f32.mrb[0].mxu0
      %v1171 = vadd.f32 %v1106, %v1170
      %v1172 = vpop.f32.mrb[0].mxu0
      %1173 = vmatprep.mubr.bf16.mxu0 %v577
      %1174 = vmatmul.mubr.bf16.gmra.mrb[0].mxu0 %v576
      %v1175 = vpop.f32.mrb[0].mxu0
      %v1176 = vadd.f32 %v1111, %v1175
      %v1177 = vpop.f32.mrb[0].mxu0
      %v1178 = vpop.f32.mrb[0].mxu0
      %v1179 = vadd.f32 %v1114, %v1178
      %v1180 = vpop.f32.mrb[0].mxu0
      %1181 = vmatprep.mubr.bf16.mxu0 %v586
      %1182 = vmatmul.mubr.bf16.gmra.mrb[0].mxu0 %v585
      %v1183 = vpop.f32.mrb[0].mxu0
      %v1184 = vadd.f32 %v1119, %v1183
      %v1185 = vpop.f32.mrb[0].mxu0
      %v1186 = vpop.f32.mrb[0].mxu0
      %v1187 = vadd.f32 %v1122, %v1186
      %v1188 = vpop.f32.mrb[0].mxu0
      %1189 = vdwg.mxu0
      %1190 = vmatprep.subr.bf16.mxu0 0
      %1191 = vmatpush1.bf16.msra.mxu0 %v948
      %1192 = vmatprep.subr.bf16.mxu0 0
      %1193 = vmatpush1.bf16.msra.mxu0 %v949
      %1194 = vmatprep.subr.bf16.mxu0 0
      %1195 = vmatpush1.bf16.msra.mxu0 %v950
      %1196 = vmatprep.subr.bf16.mxu0 0
      %1197 = vmatpush1.bf16.msra.mxu0 %v951
      %1198 = vmatprep.subr.bf16.mxu0 0
      %1199 = vmatpush1.bf16.msra.mxu0 %v952
      %1200 = vmatprep.subr.bf16.mxu0 0
      %1201 = vmatpush1.bf16.msra.mxu0 %v953
      %1202 = vmatprep.subr.bf16.mxu0 0
      %1203 = vmatpush1.bf16.msra.mxu0 %v954
      %1204 = vmatprep.subr.bf16.mxu0 0
      %1205 = vmatpush1.bf16.msra.mxu0 %v955
      %1206 = vmatprep.subr.bf16.mxu0 0
      %1207 = vmatpush1.bf16.msra.mxu0 %v956
      %1208 = vmatprep.subr.bf16.mxu0 0
      %1209 = vmatpush1.bf16.msra.mxu0 %v957
      %1210 = vmatprep.subr.bf16.mxu0 0
      %1211 = vmatpush1.bf16.msra.mxu0 %v958
      %1212 = vmatprep.subr.bf16.mxu0 0
      %1213 = vmatpush1.bf16.msra.mxu0 %v959
      %1214 = vmatprep.subr.bf16.mxu0 0
      %1215 = vmatpush1.bf16.msra.mxu0 %v960
      %1216 = vmatprep.subr.bf16.mxu0 0
      %1217 = vmatpush1.bf16.msra.mxu0 %v961
      %1218 = vmatprep.subr.bf16.mxu0 0
      %1219 = vmatpush1.bf16.msra.mxu0 %v962
      %1220 = vmatprep.subr.bf16.mxu0 0
      %1221 = vmatpush1.bf16.msra.mxu0 %v963
      %1222 = vmatprep.mubr.bf16.mxu0 %v561
      %1223 = vmatmul.mubr.bf16.gmra.mrb[0].mxu0 %v560
      %v1224 = vpop.f32.mrb[0].mxu0
      %v1225 = vadd.f32 %v1160, %v1224
      %v1226 = vpop.f32.mrb[0].mxu0
      %v1227 = vpop.f32.mrb[0].mxu0
      %v1228 = vadd.f32 %v1163, %v1227
      %v1229 = vpop.f32.mrb[0].mxu0
      %1230 = vmatprep.mubr.bf16.mxu0 %v570
      %1231 = vmatmul.mubr.bf16.gmra.mrb[0].mxu0 %v569
      %v1232 = vpop.f32.mrb[0].mxu0
      %v1233 = vadd.f32 %v1168, %v1232
      %v1234 = vpop.f32.mrb[0].mxu0
      %v1235 = vpop.f32.mrb[0].mxu0
      %v1236 = vadd.f32 %v1171, %v1235
      %v1237 = vpop.f32.mrb[0].mxu0
      %1238 = vmatprep.mubr.bf16.mxu0 %v579
      %1239 = vmatmul.mubr.bf16.gmra.mrb[0].mxu0 %v578
      %v1240 = vpop.f32.mrb[0].mxu0
      %v1241 = vadd.f32 %v1176, %v1240
      %v1242 = vpop.f32.mrb[0].mxu0
      %v1243 = vpop.f32.mrb[0].mxu0
      %v1244 = vadd.f32 %v1179, %v1243
      %v1245 = vpop.f32.mrb[0].mxu0
      %1246 = vmatprep.mubr.bf16.mxu0 %v588
      %1247 = vmatmul.mubr.bf16.gmra.mrb[0].mxu0 %v587
      %v1248 = vpop.f32.mrb[0].mxu0
      %v1249 = vadd.f32 %v1184, %v1248
      %v1250 = vpop.f32.mrb[0].mxu0
      %v1251 = vpop.f32.mrb[0].mxu0
      %v1252 = vadd.f32 %v1187, %v1251
      %v1253 = vpop.f32.mrb[0].mxu0
      %1254 = vdwg.mxu0
      %1255 = vmatprep.subr.bf16.mxu0 0
      %1256 = vmatpush1.bf16.msra.mxu0 %v964
      %1257 = vmatprep.subr.bf16.mxu0 0
      %1258 = vmatpush1.bf16.msra.mxu0 %v965
      %1259 = vmatprep.subr.bf16.mxu0 0
      %1260 = vmatpush1.bf16.msra.mxu0 %v966
      %1261 = vmatprep.subr.bf16.mxu0 0
      %1262 = vmatpush1.bf16.msra.mxu0 %v967
      %1263 = vmatprep.subr.bf16.mxu0 0
      %1264 = vmatpush1.bf16.msra.mxu0 %v968
      %1265 = vmatprep.subr.bf16.mxu0 0
      %1266 = vmatpush1.bf16.msra.mxu0 %v969
      %1267 = vmatprep.subr.bf16.mxu0 0
      %1268 = vmatpush1.bf16.msra.mxu0 %v970
      %1269 = vmatprep.subr.bf16.mxu0 0
      %1270 = vmatpush1.bf16.msra.mxu0 %v971
      %1271 = vmatprep.subr.bf16.mxu0 0
      %1272 = vmatpush1.bf16.msra.mxu0 %v972
      %1273 = vmatprep.subr.bf16.mxu0 0
      %1274 = vmatpush1.bf16.msra.mxu0 %v973
      %1275 = vmatprep.subr.bf16.mxu0 0
      %1276 = vmatpush1.bf16.msra.mxu0 %v974
      %1277 = vmatprep.subr.bf16.mxu0 0
      %1278 = vmatpush1.bf16.msra.mxu0 %v975
      %1279 = vmatprep.subr.bf16.mxu0 0
      %1280 = vmatpush1.bf16.msra.mxu0 %v976
      %1281 = vmatprep.subr.bf16.mxu0 0
      %1282 = vmatpush1.bf16.msra.mxu0 %v977
      %1283 = vmatprep.subr.bf16.mxu0 0
      %1284 = vmatpush1.bf16.msra.mxu0 %v978
      %1285 = vmatprep.subr.bf16.mxu0 0
      %1286 = vmatpush1.bf16.msra.mxu0 %v979
      %1287 = vmatprep.mubr.bf16.mxu0 %v563
      %1288 = vmatmul.mubr.bf16.gmra.mrb[0].mxu0 %v562
      %v1289 = vpop.f32.mrb[0].mxu0
      %v1290 = vadd.f32 %v1225, %v1289
      %v1291 = vpop.f32.mrb[0].mxu0
      %v1292 = vpop.f32.mrb[0].mxu0
      %v1293 = vadd.f32 %v1228, %v1292
      %v1294 = vpop.f32.mrb[0].mxu0
      %1295 = vmatprep.mubr.bf16.mxu0 %v572
      %1296 = vmatmul.mubr.bf16.gmra.mrb[0].mxu0 %v571
      %v1297 = vpop.f32.mrb[0].mxu0
      %v1298 = vadd.f32 %v1233, %v1297
      %v1299 = vpop.f32.mrb[0].mxu0
      %v1300 = vpop.f32.mrb[0].mxu0
      %v1301 = vadd.f32 %v1236, %v1300
      %v1302 = vpop.f32.mrb[0].mxu0
      %1303 = vmatprep.mubr.bf16.mxu0 %v581
      %1304 = vmatmul.mubr.bf16.gmra.mrb[0].mxu0 %v580
      %v1305 = vpop.f32.mrb[0].mxu0
      %v1306 = vadd.f32 %v1241, %v1305
      %v1307 = vpop.f32.mrb[0].mxu0
      %v1308 = vpop.f32.mrb[0].mxu0
      %v1309 = vadd.f32 %v1244, %v1308
      %v1310 = vpop.f32.mrb[0].mxu0
      %1311 = vmatprep.mubr.bf16.mxu0 %v590
      %1312 = vmatmul.mubr.bf16.gmra.mrb[0].mxu0 %v589
      %v1313 = vpop.f32.mrb[0].mxu0
      %v1314 = vadd.f32 %v1249, %v1313
      %v1315 = vpop.f32.mrb[0].mxu0
      %v1316 = vpop.f32.mrb[0].mxu0
      %v1317 = vadd.f32 %v1252, %v1316
      %v1318 = vpop.f32.mrb[0].mxu0
      %1319 = vdwg.mxu0
      %1320 = vmatprep.subr.bf16.mxu0 0
      %1321 = vmatpush1.bf16.msra.mxu0 %v980
      %1322 = vmatprep.subr.bf16.mxu0 0
      %1323 = vmatpush1.bf16.msra.mxu0 %v981
      %1324 = vmatprep.subr.bf16.mxu0 0
      %1325 = vmatpush1.bf16.msra.mxu0 %v982
      %1326 = vmatprep.subr.bf16.mxu0 0
      %1327 = vmatpush1.bf16.msra.mxu0 %v983
      %1328 = vmatprep.subr.bf16.mxu0 0
      %1329 = vmatpush1.bf16.msra.mxu0 %v984
      %1330 = vmatprep.subr.bf16.mxu0 0
      %1331 = vmatpush1.bf16.msra.mxu0 %v985
      %1332 = vmatprep.subr.bf16.mxu0 0
      %1333 = vmatpush1.bf16.msra.mxu0 %v986
      %1334 = vmatprep.subr.bf16.mxu0 0
      %1335 = vmatpush1.bf16.msra.mxu0 %v987
      %1336 = vmatprep.subr.bf16.mxu0 0
      %1337 = vmatpush1.bf16.msra.mxu0 0
      %1338 = vmatprep.subr.bf16.mxu0 0
      %1339 = vmatpush1.bf16.msra.mxu0 0
      %1340 = vmatprep.subr.bf16.mxu0 0
      %1341 = vmatpush1.bf16.msra.mxu0 0
      %1342 = vmatprep.subr.bf16.mxu0 0
      %1343 = vmatpush1.bf16.msra.mxu0 0
      %1344 = vmatprep.subr.bf16.mxu0 0
      %1345 = vmatpush1.bf16.msra.mxu0 0
      %1346 = vmatprep.subr.bf16.mxu0 0
      %1347 = vmatpush1.bf16.msra.mxu0 0
      %1348 = vmatprep.subr.bf16.mxu0 0
      %1349 = vmatpush1.bf16.msra.mxu0 0
      %1350 = vmatprep.subr.bf16.mxu0 0
      %1351 = vmatpush1.bf16.msra.mxu0 0
      %1352 = vmatprep.mubr.bf16.mxu0 0
      %1353 = vmatmul.mubr.bf16.gmra.mrb[0].mxu0 %v564
      %v1354 = vpop.f32.mrb[0].mxu0
      %v1355 = vadd.f32 %v1290, %v1354
      %v1356 = vpop.f32.mrb[0].mxu0
      %v1357 = vpop.f32.mrb[0].mxu0
      %v1358 = vadd.f32 %v1293, %v1357
      %v1359 = vpop.f32.mrb[0].mxu0
      %1360 = vmatprep.mubr.bf16.mxu0 0
      %1361 = vmatmul.mubr.bf16.gmra.mrb[0].mxu0 %v573
      %v1362 = vpop.f32.mrb[0].mxu0
      %v1363 = vadd.f32 %v1298, %v1362
      %v1364 = vpop.f32.mrb[0].mxu0
      %v1365 = vpop.f32.mrb[0].mxu0
      %v1366 = vadd.f32 %v1301, %v1365
      %v1367 = vpop.f32.mrb[0].mxu0
      %1368 = vmatprep.mubr.bf16.mxu0 0
      %1369 = vmatmul.mubr.bf16.gmra.mrb[0].mxu0 %v582
      %v1370 = vpop.f32.mrb[0].mxu0
      %v1371 = vadd.f32 %v1306, %v1370
      %v1372 = vpop.f32.mrb[0].mxu0
      %v1373 = vpop.f32.mrb[0].mxu0
      %v1374 = vadd.f32 %v1309, %v1373
      %v1375 = vpop.f32.mrb[0].mxu0
      %1376 = vmatprep.mubr.bf16.mxu0 0
      %1377 = vmatmul.mubr.bf16.gmra.mrb[0].mxu0 %v591
      %v1378 = vpop.f32.mrb[0].mxu0
      %v1379 = vadd.f32 %v1314, %v1378
      %v1380 = vpop.f32.mrb[0].mxu0
      %v1381 = vpop.f32.mrb[0].mxu0
      %v1382 = vadd.f32 %v1317, %v1381
      %v1383 = vpop.f32.mrb[0].mxu0
      %1384 = vdwg.mxu0
      %1385 = vst [vmem:[%s251] sm:$0xff] %v1355
      %1386 = vst [vmem:[%s251 + $0x8] sm:$0xff] %v1358
      %1387 = vst [vmem:[%s251 + $0x10] sm:$0xff] %v1363
      %1388 = vst [vmem:[%s251 + $0x18] sm:$0xff] %v1366
      %1389 = vst [vmem:[%s251 + $0x20] sm:$0xff] %v1371
      %1390 = vst [vmem:[%s251 + $0x28] sm:$0xff] %v1374
      %1391 = vst [vmem:[%s251 + $0x30] sm:$0xff] %v1379
      %1392 = vst [vmem:[%s251 + $0x38] sm:$0xff] %v1382
      %v1393 = vld [vmem:[%s5] sm:$0x1]
      %v1394 = vadd.f32 %v1355, %v1358
      %v1395 = vadd.f32 %v1394, %v1363
      %v1396 = vadd.f32 %v1395, %v1366
      %v1397 = vadd.f32 %v1396, %v1371
      %v1398 = vadd.f32 %v1397, %v1374
      %v1399 = vadd.f32 %v1398, %v1379
      %v1400 = vadd.f32 %v1399, %v1382
      %v1401 = vrot.slane %v1400, 4
      %v1402 = vadd.f32 %v1400, %v1401
      %v1403 = vrot.slane %v1402, 2
      %v1404 = vadd.f32 %v1402, %v1403
      %v1405 = vrot.slane %v1404, 1
      %v1406 = vadd.f32 %v1404, %v1405
      %v1407 = vadd.f32 %v1393, %v1406
      %1408 = vst [vmem:[%s5] sm:$0x1] %v1407
      %v1409 = vld [vmem:[%s6] sm:$0x1]
      %v1410 = vmul.f32 %v1355, %v1355
      %v1411 = vmul.f32 %v1358, %v1358
      %v1412 = vmul.f32 %v1363, %v1363
      %v1413 = vmul.f32 %v1366, %v1366
      %v1414 = vmul.f32 %v1371, %v1371
      %v1415 = vmul.f32 %v1374, %v1374
      %v1416 = vmul.f32 %v1379, %v1379
      %v1417 = vmul.f32 %v1382, %v1382
      %v1418 = vadd.f32 %v1410, %v1411
      %v1419 = vadd.f32 %v1418, %v1412
      %v1420 = vadd.f32 %v1419, %v1413
      %v1421 = vadd.f32 %v1420, %v1414
      %v1422 = vadd.f32 %v1421, %v1415
      %v1423 = vadd.f32 %v1422, %v1416
      %v1424 = vadd.f32 %v1423, %v1417
      %v1425 = vrot.slane %v1424, 4
      %v1426 = vadd.f32 %v1424, %v1425
      %v1427 = vrot.slane %v1426, 2
      %v1428 = vadd.f32 %v1426, %v1427
      %v1429 = vrot.slane %v1428, 1
      %v1430 = vadd.f32 %v1428, %v1429
      %v1431 = vadd.f32 %v1409, %v1430
      %1432 = vst [vmem:[%s6] sm:$0x1] %v1431
      %p1433 = scmp.eq.s32.totalorder %s18, 1
      // Predicated region
      $region41: #{basic_block_forward.4} parent=35 // pred_check
        %p1434 = pneg %p1433
      $region42: #{basic_block_forward.4} parent=35 // pred_check_branch
        %1436 = sbr.rel (%p1434) target = $region44
      $region43: #{basic_block_forward.4} parent=35 // pred_region
        %v1437 = vld [vmem:[%s5] sm:$0x1]
        %v1438 = vmul.f32 %v1437, 0.0078125
        %v1439 = vld [vmem:[%s6] sm:$0x1]
        %v1440 = vmul.f32 %v1439, 0.0078125
        %v1441 = vmul.f32 %v1438, %v1438
        %v1442 = vsub.f32 %v1440, %v1441
        %v1443 = vmax.f32 %v1442, 0.0
        %v1444 = vld [vmem:[%s2] sm:$0x1]
        %v1445 = vadd.f32 %v1443, 1e-05
        %v1446 = vrsqrt.pop %v1445
        %v1447 = vmul.f32 %v1444, %v1446
        %v1448 = vld [vmem:[%s3] sm:$0x1]
        %v1449 = vmul.f32 %v1438, %v1447
        %v1450 = vsub.f32 %v1448, %v1449
        %1451 = vst [vmem:[%s5] sm:$0x1] %v1447
        %1452 = vst [vmem:[%s6] sm:$0x1] %v1450
      $region44: #{basic_block_forward.4} parent=35 // pred_fallthru
        _
      %s1453 = smul.u32 8, %s18
      %p1454 = scmp.lt.s32.totalorder %s1453, 15
      %s1455 = scalar_select %p1454, %s1453, 15
      %s1456 = smul.addr %s1455, 8
      %s1457 = scalar_lea.vmem %s4, %s1456
      // Predicated region
      $region45: #{basic_block_forward.4} parent=35 // pred_check
        %p1458 = pneg %p125
      $region46: #{basic_block_forward.4} parent=35 // pred_check_branch
        %1460 = sbr.rel (%p1458) target = $region48
      $region47: #{basic_block_forward.4} parent=35 // pred_region
        %s1461 = smul.u32 8, %s18
      $region48: #{basic_block_forward.4} parent=35 // pred_fallthru
        _
      // Predicated region
      $region49: #{basic_block_forward.4} parent=35 // pred_check
        %p1462 = pneg %p146
      $region50: #{basic_block_forward.4} parent=35 // pred_check_branch
        %1464 = sbr.rel (%p1462) target = $region52
      $region51: #{basic_block_forward.4} parent=35 // pred_region
        _
      $region52: #{basic_block_forward.4} parent=35 // pred_fallthru
        _
      // Predicated region
      $region53: #{basic_block_forward.4} parent=35 // pred_check
        %p1465 = pneg %p167
      $region54: #{basic_block_forward.4} parent=35 // pred_check_branch
        %1467 = sbr.rel (%p1465) target = $region56
      $region55: #{basic_block_forward.4} parent=35 // pred_region
        _
      $region56: #{basic_block_forward.4} parent=35 // pred_fallthru
        _
      // Predicated region
      $region57: #{basic_block_forward.4} parent=35 // pred_check
        %p1468 = pneg %p146
      $region58: #{basic_block_forward.4} parent=35 // pred_check_branch
        %1470 = sbr.rel (%p1468) target = $region60
      $region59: #{basic_block_forward.4} parent=35 // pred_region
        _
      $region60: #{basic_block_forward.4} parent=35 // pred_fallthru
        _
      // Predicated region
      $region61: #{basic_block_forward.4} parent=35 // pred_check
        %p1471 = pneg %p167
      $region62: #{basic_block_forward.4} parent=35 // pred_check_branch
        %1473 = sbr.rel (%p1471) target = $region64
      $region63: #{basic_block_forward.4} parent=35 // pred_region
        _
      $region64: #{basic_block_forward.4} parent=35 // pred_fallthru
        _
    $region36: #{basic_block_forward.4} parent=5 // pred_fallthru
      _
    %p1474 = scmp.le.s32.totalorder 2, %s13
    // Predicated region
    $region65: #{basic_block_forward.4} parent=5 // pred_check
      %p1475 = pneg %p1474
    $region66: #{basic_block_forward.4} parent=5 // pred_check_branch
      %1477 = sbr.rel (%p1475) target = $region68
    $region67: #{basic_block_forward.4} parent=5 // pred_region
      %s1478 = ssub.s32 %s13, 2
      // Predicated region
      $region69: #{basic_block_forward.4} parent=67 // pred_check
        %p1479 = pneg %p131
      $region70: #{basic_block_forward.4} parent=67 // pred_check_branch
        %1481 = sbr.rel (%p1479) target = $region72
      $region71: #{basic_block_forward.4} parent=67 // pred_region
        %s1482 = smul.u32 8, %s19
        %p1483 = scmp.lt.s32.totalorder %s1482, 15
        %s1484 = scalar_select %p1483, %s1482, 15
        %s1485 = smul.addr %s1484, 8
        %s1486 = scalar_lea.vmem %s4, %s1485
      $region72: #{basic_block_forward.4} parent=67 // pred_fallthru
        _
    $region68: #{basic_block_forward.4} parent=5 // pred_fallthru
      _
  $region6: #{basic_block_forward.4} parent=0 // loop_footer
    %s17 = sadd.s32 1, %s13
  $region7: #{basic_block_forward.4} parent=0 // loop_footer_branch
    %12 = sbr.rel target = $region3
  $region8: #{basic_block_forward.4} parent=0 // loop_exit
    _

// kernel: basic_block_forward.7
$region0: #{basic_block_forward.7}
  #allocation0 [shape = 'u32[]', space=smem, size = 0x4, offset = 0x4, fixed_abs, tag = 'smem constant byte address 0x4 - core index']
  #allocation1 [shape = 'u32[144,128]{1,0:T(1,128)}', space=vmem, size = 0x12000, scoped, tag = 'internal scratch']
  %s0 = inlined_call_operand.vmem [shape: f32[128,128], index: 0, kind: input, shape index: {}]
  %s1 = inlined_call_operand.vmem [shape: f32[1,128], index: 1, kind: input, shape index: {}]
  %s2 = inlined_call_operand.vmem [shape: f32[1,128], index: 2, kind: input, shape index: {}]
  %s3 = inlined_call_operand.vmem [shape: f32[128,128], index: 3, kind: input, shape index: {}]
  %s4 = inlined_call_operand.vmem [shape: f32[1,128], index: 4, kind: input, shape index: {}]
  %s5 = inlined_call_operand.vmem [shape: f32[1,128], index: 5, kind: input, shape index: {}]
  %s6 = inlined_call_operand.vmem [shape: f32[128,128], index: 6, kind: output, shape index: {}]
  %s7 = sld [smem:[#allocation0]]
  $region57: #{basic_block_forward.7} parent=0
    _
  %s9 = ssub.s32 1, %s7
  %s10 = scalar_select 0, %s9, %s7
  loop: start=0, step=1, limit=4
  $region2: #{basic_block_forward.7} parent=0 // loop_pre_header
    _
  $region3: #{basic_block_forward.7} parent=0 // loop_header
    %s12 = sphi 0, %s16
    %p13 = scmp.ge.s32.totalorder %s12, 4
    %s22 = sphi 0, %s24
    %s25 = sphi 0, %s22
    %s26 = sphi 0, %s25
    %s42 = sphi 0, %s26
    %s46 = sphi 0, %s46
    %s48 = sphi 0, %s46
    %s49 = sphi 0, %s48
    %s63 = sphi 0, %s49
    %s67 = sphi 0, %s67
    %s69 = sphi 0, %s67
    %s70 = sphi 0, %s69
    %s84 = sphi 0, %s70
    %s90 = sphi 0, %s92
    %s93 = sphi 0, %s90
    %s94 = sphi 0, %s93
    %s110 = sphi 0, %s94
    %s114 = sphi 0, %s114
    %s116 = sphi 0, %s114
    %s117 = sphi 0, %s116
    %s131 = sphi 0, %s117
    %s135 = sphi 0, %s135
    %s137 = sphi 0, %s135
    %s138 = sphi 0, %s137
    %s152 = sphi 0, %s138
    %s158 = sphi 0, %s160
    %s161 = sphi 0, %s158
    %s162 = sphi 0, %s161
    %s178 = sphi 0, %s162
  $region4: #{basic_block_forward.7} parent=0 // loop_header_branch
    %15 = sbr.rel (%p13) target = $region8
  $region5: #{basic_block_forward.7} parent=0 // loop_body
    %s17 = ssub.s32 %s12, 1
    %s18 = ssub.s32 %s12, 2
    %s19 = sadd.s32 %s12, 1
    %s20 = ssub.s32 %s12, %s19
    %p21 = scmp.eq.s32.totalorder %s20, 0
    %s23 = sadd.s32 %s22, 1
    %s24 = scalar_select %p21, %s22, %s23
    %p27 = pneg %p21
    %p28 = scmp.eq.s32.totalorder %s12, 1
    %p29 = por %p27, %p28
    %p30 = scmp.ne.s32.totalorder %s22, %s25
    %p31 = scmp.eq.s32.totalorder %s12, 0
    %p32 = por %p30, %p31
    %p33 = scmp.ne.s32.totalorder %s22, %s25
    %p34 = scmp.eq.s32.totalorder %s17, 1
    %p35 = por %p33, %p34
    %p36 = scmp.ne.s32.totalorder %s25, %s26
    %p37 = scmp.eq.s32.totalorder %s17, 0
    %p38 = por %p36, %p37
    %p39 = scmp.ne.s32.totalorder %s25, %s26
    %p40 = scmp.eq.s32.totalorder %s18, 1
    %p41 = por %p39, %p40
    %p43 = scmp.ne.s32.totalorder %s26, %s42
    %p44 = scmp.eq.s32.totalorder %s18, 0
    %p45 = por %p43, %p44
    %s47 = sadd.s32 %s46, 1
    %p50 = scmp.eq.s32.totalorder %s12, 1
    %p51 = scmp.ne.s32.totalorder %s46, %s48
    %p52 = scmp.eq.s32.totalorder %s12, 0
    %p53 = por %p51, %p52
    %p54 = scmp.ne.s32.totalorder %s46, %s48
    %p55 = scmp.eq.s32.totalorder %s17, 1
    %p56 = por %p54, %p55
    %p57 = scmp.ne.s32.totalorder %s48, %s49
    %p58 = scmp.eq.s32.totalorder %s17, 0
    %p59 = por %p57, %p58
    %p60 = scmp.ne.s32.totalorder %s48, %s49
    %p61 = scmp.eq.s32.totalorder %s18, 1
    %p62 = por %p60, %p61
    %p64 = scmp.ne.s32.totalorder %s49, %s63
    %p65 = scmp.eq.s32.totalorder %s18, 0
    %p66 = por %p64, %p65
    %s68 = sadd.s32 %s67, 1
    %p71 = scmp.eq.s32.totalorder %s12, 1
    %p72 = scmp.ne.s32.totalorder %s67, %s69
    %p73 = scmp.eq.s32.totalorder %s12, 0
    %p74 = por %p72, %p73
    %p75 = scmp.ne.s32.totalorder %s67, %s69
    %p76 = scmp.eq.s32.totalorder %s17, 1
    %p77 = por %p75, %p76
    %p78 = scmp.ne.s32.totalorder %s69, %s70
    %p79 = scmp.eq.s32.totalorder %s17, 0
    %p80 = por %p78, %p79
    %p81 = scmp.ne.s32.totalorder %s69, %s70
    %p82 = scmp.eq.s32.totalorder %s18, 1
    %p83 = por %p81, %p82
    %p85 = scmp.ne.s32.totalorder %s70, %s84
    %p86 = scmp.eq.s32.totalorder %s18, 0
    %p87 = por %p85, %p86
    %s88 = ssub.s32 %s12, %s19
    %p89 = scmp.eq.s32.totalorder %s88, 0
    %s91 = sadd.s32 %s90, 1
    %s92 = scalar_select %p89, %s90, %s91
    %p95 = pneg %p89
    %p96 = scmp.eq.s32.totalorder %s12, 1
    %p97 = por %p95, %p96
    %p98 = scmp.ne.s32.totalorder %s90, %s93
    %p99 = scmp.eq.s32.totalorder %s12, 0
    %p100 = por %p98, %p99
    %p101 = scmp.ne.s32.totalorder %s90, %s93
    %p102 = scmp.eq.s32.totalorder %s17, 1
    %p103 = por %p101, %p102
    %p104 = scmp.ne.s32.totalorder %s93, %s94
    %p105 = scmp.eq.s32.totalorder %s17, 0
    %p106 = por %p104, %p105
    %p107 = scmp.ne.s32.totalorder %s93, %s94
    %p108 = scmp.eq.s32.totalorder %s18, 1
    %p109 = por %p107, %p108
    %p111 = scmp.ne.s32.totalorder %s94, %s110
    %p112 = scmp.eq.s32.totalorder %s18, 0
    %p113 = por %p111, %p112
    %s115 = sadd.s32 %s114, 1
    %p118 = scmp.eq.s32.totalorder %s12, 1
    %p119 = scmp.ne.s32.totalorder %s114, %s116
    %p120 = scmp.eq.s32.totalorder %s12, 0
    %p121 = por %p119, %p120
    %p122 = scmp.ne.s32.totalorder %s114, %s116
    %p123 = scmp.eq.s32.totalorder %s17, 1
    %p124 = por %p122, %p123
    %p125 = scmp.ne.s32.totalorder %s116, %s117
    %p126 = scmp.eq.s32.totalorder %s17, 0
    %p127 = por %p125, %p126
    %p128 = scmp.ne.s32.totalorder %s116, %s117
    %p129 = scmp.eq.s32.totalorder %s18, 1
    %p130 = por %p128, %p129
    %p132 = scmp.ne.s32.totalorder %s117, %s131
    %p133 = scmp.eq.s32.totalorder %s18, 0
    %p134 = por %p132, %p133
    %s136 = sadd.s32 %s135, 1
    %p139 = scmp.eq.s32.totalorder %s12, 1
    %p140 = scmp.ne.s32.totalorder %s135, %s137
    %p141 = scmp.eq.s32.totalorder %s12, 0
    %p142 = por %p140, %p141
    %p143 = scmp.ne.s32.totalorder %s135, %s137
    %p144 = scmp.eq.s32.totalorder %s17, 1
    %p145 = por %p143, %p144
    %p146 = scmp.ne.s32.totalorder %s137, %s138
    %p147 = scmp.eq.s32.totalorder %s17, 0
    %p148 = por %p146, %p147
    %p149 = scmp.ne.s32.totalorder %s137, %s138
    %p150 = scmp.eq.s32.totalorder %s18, 1
    %p151 = por %p149, %p150
    %p153 = scmp.ne.s32.totalorder %s138, %s152
    %p154 = scmp.eq.s32.totalorder %s18, 0
    %p155 = por %p153, %p154
    %s156 = ssub.s32 %s12, %s19
    %p157 = scmp.eq.s32.totalorder %s156, 0
    %s159 = sadd.s32 %s158, 1
    %s160 = scalar_select %p157, %s158, %s159
    %p163 = pneg %p157
    %p164 = scmp.eq.s32.totalorder %s12, 1
    %p165 = por %p163, %p164
    %p166 = scmp.ne.s32.totalorder %s158, %s161
    %p167 = scmp.eq.s32.totalorder %s12, 0
    %p168 = por %p166, %p167
    %p169 = scmp.ne.s32.totalorder %s158, %s161
    %p170 = scmp.eq.s32.totalorder %s17, 1
    %p171 = por %p169, %p170
    %p172 = scmp.ne.s32.totalorder %s161, %s162
    %p173 = scmp.eq.s32.totalorder %s17, 0
    %p174 = por %p172, %p173
    %p175 = scmp.ne.s32.totalorder %s161, %s162
    %p176 = scmp.eq.s32.totalorder %s18, 1
    %p177 = por %p175, %p176
    %p179 = scmp.ne.s32.totalorder %s162, %s178
    %p180 = scmp.eq.s32.totalorder %s18, 0
    %p181 = por %p179, %p180
    %p182 = scmp.le.s32.totalorder 1, %s12
    %p183 = scmp.lt.s32.totalorder %s12, 3
    %p184 = pnand %p182, %p183
    %p185 = pneg %p184
    // Predicated region
    $region9: #{basic_block_forward.7} parent=5 // pred_check
      _
    $region10: #{basic_block_forward.7} parent=5 // pred_check_branch
      %187 = sbr.rel (%p184) target = $region12
    $region11: #{basic_block_forward.7} parent=5 // pred_region
      %s188 = ssub.s32 %s12, 1
      // Predicated region
      $region13: #{basic_block_forward.7} parent=11 // pred_check
        %p189 = pneg %p59
      $region14: #{basic_block_forward.7} parent=11 // pred_check_branch
        %191 = sbr.rel (%p189) target = $region16
      $region15: #{basic_block_forward.7} parent=11 // pred_region
        _
      $region16: #{basic_block_forward.7} parent=11 // pred_fallthru
        _
      // Predicated region
      $region17: #{basic_block_forward.7} parent=11 // pred_check
        %p192 = pneg %p80
      $region18: #{basic_block_forward.7} parent=11 // pred_check_branch
        %194 = sbr.rel (%p192) target = $region20
      $region19: #{basic_block_forward.7} parent=11 // pred_region
        _
      $region20: #{basic_block_forward.7} parent=11 // pred_fallthru
        _
      // Predicated region
      $region21: #{basic_block_forward.7} parent=11 // pred_check
        %p195 = pneg %p127
      $region22: #{basic_block_forward.7} parent=11 // pred_check_branch
        %197 = sbr.rel (%p195) target = $region24
      $region23: #{basic_block_forward.7} parent=11 // pred_region
        _
      $region24: #{basic_block_forward.7} parent=11 // pred_fallthru
        _
      // Predicated region
      $region25: #{basic_block_forward.7} parent=11 // pred_check
        %p198 = pneg %p148
      $region26: #{basic_block_forward.7} parent=11 // pred_check_branch
        %200 = sbr.rel (%p198) target = $region28
      $region27: #{basic_block_forward.7} parent=11 // pred_region
        _
      $region28: #{basic_block_forward.7} parent=11 // pred_fallthru
        _
    $region12: #{basic_block_forward.7} parent=5 // pred_fallthru
      _
    %p201 = scmp.lt.s32.totalorder %s12, 2
    // Predicated region
    $region29: #{basic_block_forward.7} parent=5 // pred_check
      %p202 = pneg %p201
    $region30: #{basic_block_forward.7} parent=5 // pred_check_branch
      %204 = sbr.rel (%p202) target = $region32
    $region31: #{basic_block_forward.7} parent=5 // pred_region
      // Predicated region
      $region33: #{basic_block_forward.7} parent=31 // pred_check
        %p205 = pneg %p32
      $region34: #{basic_block_forward.7} parent=31 // pred_check_branch
        %207 = sbr.rel (%p205) target = $region36
      $region35: #{basic_block_forward.7} parent=31 // pred_region
        %s208 = smul.u32 8, %s12
        %p209 = scmp.lt.s32.totalorder %s208, 15
        %s210 = scalar_select %p209, %s208, 15
        %s211 = smul.addr %s210, 8
        %s212 = scalar_lea.vmem %s0, %s211
        %s213 = smul.u32 8, %s12
      $region36: #{basic_block_forward.7} parent=31 // pred_fallthru
        _
      // Predicated region
      $region37: #{basic_block_forward.7} parent=31 // pred_check
        %p214 = pneg %p100
      $region38: #{basic_block_forward.7} parent=31 // pred_check_branch
        %216 = sbr.rel (%p214) target = $region40
      $region39: #{basic_block_forward.7} parent=31 // pred_region
        %s217 = smul.u32 8, %s12
        %p218 = scmp.lt.s32.totalorder %s217, 15
        %s219 = scalar_select %p218, %s217, 15
        %s220 = smul.addr %s219, 8
        %s221 = scalar_lea.vmem %s3, %s220
        %s222 = smul.u32 8, %s12
      $region40: #{basic_block_forward.7} parent=31 // pred_fallthru
        _
    $region32: #{basic_block_forward.7} parent=5 // pred_fallthru
      _
    %p223 = scmp.le.s32.totalorder 1, %s12
    %p224 = scmp.lt.s32.totalorder %s12, 3
    %p225 = pnand %p223, %p224
    %p226 = pneg %p225
    // Predicated region
    $region41: #{basic_block_forward.7} parent=5 // pred_check
      _
    $region42: #{basic_block_forward.7} parent=5 // pred_check_branch
      %228 = sbr.rel (%p225) target = $region44
    $region43: #{basic_block_forward.7} parent=5 // pred_region
      %s229 = ssub.s32 %s12, 1
      %s230 = smul.u32 8, %s17
      %p231 = scmp.lt.s32.totalorder %s230, 15
      %s232 = scalar_select %p231, %s230, 15
      %s233 = smul.addr %s232, 8
      %s234 = scalar_lea.vmem %s0, %s233
      %p235 = pneg %p38
      %p236 = pneg %p35
      %p237 = pneg %p59
      %p238 = pneg %p56
      %p239 = pneg %p80
      %p240 = pneg %p77
      %s241 = smul.u32 8, %s17
      %p242 = scmp.lt.s32.totalorder %s241, 15
      %s243 = scalar_select %p242, %s241, 15
      %s244 = smul.addr %s243, 8
      %s245 = scalar_lea.vmem %s3, %s244
      %p246 = pneg %p106
      %p247 = pneg %p103
      %p248 = pneg %p127
      %p249 = pneg %p124
      %p250 = pneg %p148
      %p251 = pneg %p145
      %p252 = pneg %p174
      %p253 = pneg %p171
      %s254 = smul.u32 8, %s17
      %p255 = scmp.lt.s32.totalorder %s254, 15
      %s256 = scalar_select %p255, %s254, 15
      %s257 = smul.addr %s256, 8
      %s258 = scalar_lea.vmem %s6, %s257
      %s259 = smul.u32 8, %s17
      %p260 = scmp.lt.s32.totalorder %s259, 15
      %s261 = scalar_select %p260, %s259, 15
      %s262 = smul.addr %s261, 8
      %s263 = scalar_lea.vmem %s0, %s262
      %s264 = smul.u32 8, %s17
      %s265 = smul.u32 8, %s17
      %p266 = scmp.lt.s32.totalorder %s265, 15
      %s267 = scalar_select %p266, %s265, 15
      %s268 = smul.addr %s267, 8
      %s269 = scalar_lea.vmem %s3, %s268
      %s270 = smul.u32 8, %s17
      %s271 = smul.u32 8, %s17
      %p272 = scmp.lt.s32.totalorder %s271, 15
      %s273 = scalar_select %p272, %s271, 15
      %s274 = smul.addr %s273, 8
      %s275 = scalar_lea.vmem %s6, %s274
      %s276 = smul.u32 8, %s17
      %v277 = vld [vmem:[%s263] sm:$0xff]
      %v278 = vld [vmem:[%s263 + $0x8] sm:$0xff]
      %v279 = vld [vmem:[%s263 + $0x10] sm:$0xff]
      %v280 = vld [vmem:[%s263 + $0x18] sm:$0xff]
      %v281 = vld [vmem:[%s263 + $0x20] sm:$0xff]
      %v282 = vld [vmem:[%s263 + $0x28] sm:$0xff]
      %v283 = vld [vmem:[%s263 + $0x30] sm:$0xff]
      %v284 = vld [vmem:[%s263 + $0x38] sm:$0xff]
      %v285 = vld [vmem:[%s1] sm:$0x1]
      %v287 = vlaneseq
      %v288 = vshrl.u32 %v287, 7
      %v289 = vsub.s32 0, %v288
      %v290 = vrot.slane %v285, %v289
      %v292 = vmul.f32 %v277, %v290
      %v293 = vmul.f32 %v278, %v290
      %v294 = vmul.f32 %v279, %v290
      %v295 = vmul.f32 %v280, %v290
      %v296 = vmul.f32 %v281, %v290
      %v297 = vmul.f32 %v282, %v290
      %v298 = vmul.f32 %v283, %v290
      %v299 = vmul.f32 %v284, %v290
      %v300 = vld [vmem:[%s2] sm:$0x1]
      %v302 = vlaneseq
      %v303 = vshrl.u32 %v302, 7
      %v304 = vsub.s32 0, %v303
      %v305 = vrot.slane %v300, %v304
      %v307 = vadd.f32 %v292, %v305
      %v308 = vadd.f32 %v293, %v305
      %v309 = vadd.f32 %v294, %v305
      %v310 = vadd.f32 %v295, %v305
      %v311 = vadd.f32 %v296, %v305
      %v312 = vadd.f32 %v297, %v305
      %v313 = vadd.f32 %v298, %v305
      %v314 = vadd.f32 %v299, %v305
      %v315 = vld [vmem:[%s269] sm:$0xff]
      %v316 = vld [vmem:[%s269 + $0x8] sm:$0xff]
      %v317 = vld [vmem:[%s269 + $0x10] sm:$0xff]
      %v318 = vld [vmem:[%s269 + $0x18] sm:$0xff]
      %v319 = vld [vmem:[%s269 + $0x20] sm:$0xff]
      %v320 = vld [vmem:[%s269 + $0x28] sm:$0xff]
      %v321 = vld [vmem:[%s269 + $0x30] sm:$0xff]
      %v322 = vld [vmem:[%s269 + $0x38] sm:$0xff]
      %v323 = vld [vmem:[%s4] sm:$0x1]
      %v325 = vlaneseq
      %v326 = vshrl.u32 %v325, 7
      %v327 = vsub.s32 0, %v326
      %v328 = vrot.slane %v323, %v327
      %v330 = vmul.f32 %v315, %v328
      %v331 = vmul.f32 %v316, %v328
      %v332 = vmul.f32 %v317, %v328
      %v333 = vmul.f32 %v318, %v328
      %v334 = vmul.f32 %v319, %v328
      %v335 = vmul.f32 %v320, %v328
      %v336 = vmul.f32 %v321, %v328
      %v337 = vmul.f32 %v322, %v328
      %v338 = vadd.f32 %v307, %v330
      %v339 = vadd.f32 %v308, %v331
      %v340 = vadd.f32 %v309, %v332
      %v341 = vadd.f32 %v310, %v333
      %v342 = vadd.f32 %v311, %v334
      %v343 = vadd.f32 %v312, %v335
      %v344 = vadd.f32 %v313, %v336
      %v345 = vadd.f32 %v314, %v337
      %v346 = vld [vmem:[%s5] sm:$0x1]
      %v348 = vlaneseq
      %v349 = vshrl.u32 %v348, 7
      %v350 = vsub.s32 0, %v349
      %v351 = vrot.slane %v346, %v350
      %v353 = vadd.f32 %v338, %v351
      %v354 = vadd.f32 %v339, %v351
      %v355 = vadd.f32 %v340, %v351
      %v356 = vadd.f32 %v341, %v351
      %v357 = vadd.f32 %v342, %v351
      %v358 = vadd.f32 %v343, %v351
      %v359 = vadd.f32 %v344, %v351
      %v360 = vadd.f32 %v345, %v351
      %v361 = vmax.f32 %v353, 0.0
      %v362 = vmax.f32 %v354, 0.0
      %v363 = vmax.f32 %v355, 0.0
      %v364 = vmax.f32 %v356, 0.0
      %v365 = vmax.f32 %v357, 0.0
      %v366 = vmax.f32 %v358, 0.0
      %v367 = vmax.f32 %v359, 0.0
      %v368 = vmax.f32 %v360, 0.0
      %369 = vst [vmem:[%s275] sm:$0xff] %v361
      %370 = vst [vmem:[%s275 + $0x8] sm:$0xff] %v362
      %371 = vst [vmem:[%s275 + $0x10] sm:$0xff] %v363
      %372 = vst [vmem:[%s275 + $0x18] sm:$0xff] %v364
      %373 = vst [vmem:[%s275 + $0x20] sm:$0xff] %v365
      %374 = vst [vmem:[%s275 + $0x28] sm:$0xff] %v366
      %375 = vst [vmem:[%s275 + $0x30] sm:$0xff] %v367
      %376 = vst [vmem:[%s275 + $0x38] sm:$0xff] %v368
      %s377 = smul.u32 8, %s17
      %p378 = scmp.lt.s32.totalorder %s377, 15
      %s379 = scalar_select %p378, %s377, 15
      %s380 = smul.addr %s379, 8
      %s381 = scalar_lea.vmem %s6, %s380
      // Predicated region
      $region45: #{basic_block_forward.7} parent=43 // pred_check
        %p382 = pneg %p171
      $region46: #{basic_block_forward.7} parent=43 // pred_check_branch
        %384 = sbr.rel (%p382) target = $region48
      $region47: #{basic_block_forward.7} parent=43 // pred_region
        %s385 = smul.u32 8, %s17
      $region48: #{basic_block_forward.7} parent=43 // pred_fallthru
        _
    $region44: #{basic_block_forward.7} parent=5 // pred_fallthru
      _
    %p386 = scmp.le.s32.totalorder 2, %s12
    // Predicated region
    $region49: #{basic_block_forward.7} parent=5 // pred_check
      %p387 = pneg %p386
    $region50: #{basic_block_forward.7} parent=5 // pred_check_branch
      %389 = sbr.rel (%p387) target = $region52
    $region51: #{basic_block_forward.7} parent=5 // pred_region
      %s390 = ssub.s32 %s12, 2
      // Predicated region
      $region53: #{basic_block_forward.7} parent=51 // pred_check
        %p391 = pneg %p177
      $region54: #{basic_block_forward.7} parent=51 // pred_check_branch
        %393 = sbr.rel (%p391) target = $region56
      $region55: #{basic_block_forward.7} parent=51 // pred_region
        %s394 = smul.u32 8, %s18
        %p395 = scmp.lt.s32.totalorder %s394, 15
        %s396 = scalar_select %p395, %s394, 15
        %s397 = smul.addr %s396, 8
        %s398 = scalar_lea.vmem %s6, %s397
      $region56: #{basic_block_forward.7} parent=51 // pred_fallthru
        _
    $region52: #{basic_block_forward.7} parent=5 // pred_fallthru
      _
  $region6: #{basic_block_forward.7} parent=0 // loop_footer
    %s16 = sadd.s32 1, %s12
  $region7: #{basic_block_forward.7} parent=0 // loop_footer_branch
    %11 = sbr.rel target = $region3
  $region8: #{basic_block_forward.7} parent=0 // loop_exit
    _

// kernel: basic_block_forward.6
$region0: #{basic_block_forward.6}
  #allocation0 [shape = 'u32[]', space=smem, size = 0x4, offset = 0x4, fixed_abs, tag = 'smem constant byte address 0x4 - core index']
  #allocation1 [shape = 'u32[144,128]{1,0:T(1,128)}', space=vmem, size = 0x12000, scoped, tag = 'internal scratch']
  %s0 = inlined_call_operand.vmem [shape: bf16[128,1152], index: 0, kind: input, shape index: {}]
  %s1 = inlined_call_operand.vmem [shape: bf16[1152,128], index: 1, kind: input, shape index: {}]
  %s2 = inlined_call_operand.vmem [shape: f32[1,128], index: 2, kind: input, shape index: {}]
  %s3 = inlined_call_operand.vmem [shape: f32[1,128], index: 3, kind: input, shape index: {}]
  %s4 = inlined_call_operand.vmem [shape: bf16[128,128], index: 4, kind: input, shape index: {}]
  %s5 = inlined_call_operand.vmem [shape: bf16[128,128], index: 5, kind: input, shape index: {}]
  %s6 = inlined_call_operand.vmem [shape: f32[1,128], index: 6, kind: input, shape index: {}]
  %s7 = inlined_call_operand.vmem [shape: f32[1,128], index: 7, kind: input, shape index: {}]
  %s8 = inlined_call_operand.vmem [shape: f32[128,128], index: 8, kind: output, shape index: {0}]
  %s9 = inlined_call_operand.vmem [shape: f32[128,128], index: 9, kind: output, shape index: {1}]
  %s10 = inlined_call_operand.vmem [shape: f32[1,128], index: 10, kind: output, shape index: {2}]
  %s11 = inlined_call_operand.vmem [shape: f32[1,128], index: 11, kind: output, shape index: {3}]
  %s12 = inlined_call_operand.vmem [shape: f32[1,128], index: 12, kind: output, shape index: {4}]
  %s13 = inlined_call_operand.vmem [shape: f32[1,128], index: 13, kind: output, shape index: {5}]
  %14 = xla_tuple %s8, %s9, %s10, %s11, %s12, %s13
  %s15 = sld [smem:[#allocation0]]
  $region113: #{basic_block_forward.6} parent=0
    _
  %s17 = ssub.s32 1, %s15
  %s18 = scalar_select 0, %s17, %s15
  loop: start=0, step=1, limit=4
  $region2: #{basic_block_forward.6} parent=0 // loop_pre_header
    _
  $region3: #{basic_block_forward.6} parent=0 // loop_header
    %s20 = sphi 0, %s24
    %p21 = scmp.ge.s32.totalorder %s20, 4
    %s30 = sphi 0, %s32
    %s33 = sphi 0, %s30
    %s34 = sphi 0, %s33
    %s50 = sphi 0, %s34
    %s54 = sphi 0, %s54
    %s56 = sphi 0, %s54
    %s57 = sphi 0, %s56
    %s71 = sphi 0, %s57
    %s75 = sphi 0, %s75
    %s77 = sphi 0, %s75
    %s78 = sphi 0, %s77
    %s92 = sphi 0, %s78
    %s96 = sphi 0, %s96
    %s98 = sphi 0, %s96
    %s99 = sphi 0, %s98
    %s113 = sphi 0, %s99
    %s119 = sphi 0, %s121
    %s122 = sphi 0, %s119
    %s123 = sphi 0, %s122
    %s139 = sphi 0, %s123
    %s143 = sphi 0, %s143
    %s145 = sphi 0, %s143
    %s146 = sphi 0, %s145
    %s160 = sphi 0, %s146
    %s164 = sphi 0, %s164
    %s166 = sphi 0, %s164
    %s167 = sphi 0, %s166
    %s181 = sphi 0, %s167
    %s185 = sphi 0, %s185
    %s187 = sphi 0, %s185
    %s188 = sphi 0, %s187
    %s202 = sphi 0, %s188
    %s208 = sphi 0, %s210
    %s211 = sphi 0, %s208
    %s212 = sphi 0, %s211
    %s228 = sphi 0, %s212
    %s234 = sphi 0, %s236
    %s237 = sphi 0, %s234
    %s238 = sphi 0, %s237
    %s254 = sphi 0, %s238
    %s258 = sphi 0, %s258
    %s260 = sphi 0, %s258
    %s261 = sphi 0, %s260
    %s275 = sphi 0, %s261
    %s279 = sphi 0, %s279
    %s281 = sphi 0, %s279
    %s282 = sphi 0, %s281
    %s296 = sphi 0, %s282
    %s300 = sphi 0, %s300
    %s302 = sphi 0, %s300
    %s303 = sphi 0, %s302
    %s317 = sphi 0, %s303
    %s321 = sphi 0, %s321
    %s323 = sphi 0, %s321
    %s324 = sphi 0, %s323
    %s338 = sphi 0, %s324
  $region4: #{basic_block_forward.6} parent=0 // loop_header_branch
    %23 = sbr.rel (%p21) target = $region8
  $region5: #{basic_block_forward.6} parent=0 // loop_body
    %s25 = ssub.s32 %s20, 1
    %s26 = ssub.s32 %s20, 2
    %s27 = sadd.s32 %s20, 1
    %s28 = ssub.s32 %s20, %s27
    %p29 = scmp.eq.s32.totalorder %s28, 0
    %s31 = sadd.s32 %s30, 1
    %s32 = scalar_select %p29, %s30, %s31
    %p35 = pneg %p29
    %p36 = scmp.eq.s32.totalorder %s20, 1
    %p37 = por %p35, %p36
    %p38 = scmp.ne.s32.totalorder %s30, %s33
    %p39 = scmp.eq.s32.totalorder %s20, 0
    %p40 = por %p38, %p39
    %p41 = scmp.ne.s32.totalorder %s30, %s33
    %p42 = scmp.eq.s32.totalorder %s25, 1
    %p43 = por %p41, %p42
    %p44 = scmp.ne.s32.totalorder %s33, %s34
    %p45 = scmp.eq.s32.totalorder %s25, 0
    %p46 = por %p44, %p45
    %p47 = scmp.ne.s32.totalorder %s33, %s34
    %p48 = scmp.eq.s32.totalorder %s26, 1
    %p49 = por %p47, %p48
    %p51 = scmp.ne.s32.totalorder %s34, %s50
    %p52 = scmp.eq.s32.totalorder %s26, 0
    %p53 = por %p51, %p52
    %s55 = sadd.s32 %s54, 1
    %p58 = scmp.eq.s32.totalorder %s20, 1
    %p59 = scmp.ne.s32.totalorder %s54, %s56
    %p60 = scmp.eq.s32.totalorder %s20, 0
    %p61 = por %p59, %p60
    %p62 = scmp.ne.s32.totalorder %s54, %s56
    %p63 = scmp.eq.s32.totalorder %s25, 1
    %p64 = por %p62, %p63
    %p65 = scmp.ne.s32.totalorder %s56, %s57
    %p66 = scmp.eq.s32.totalorder %s25, 0
    %p67 = por %p65, %p66
    %p68 = scmp.ne.s32.totalorder %s56, %s57
    %p69 = scmp.eq.s32.totalorder %s26, 1
    %p70 = por %p68, %p69
    %p72 = scmp.ne.s32.totalorder %s57, %s71
    %p73 = scmp.eq.s32.totalorder %s26, 0
    %p74 = por %p72, %p73
    %s76 = sadd.s32 %s75, 1
    %p79 = scmp.eq.s32.totalorder %s20, 1
    %p80 = scmp.ne.s32.totalorder %s75, %s77
    %p81 = scmp.eq.s32.totalorder %s20, 0
    %p82 = por %p80, %p81
    %p83 = scmp.ne.s32.totalorder %s75, %s77
    %p84 = scmp.eq.s32.totalorder %s25, 1
    %p85 = por %p83, %p84
    %p86 = scmp.ne.s32.totalorder %s77, %s78
    %p87 = scmp.eq.s32.totalorder %s25, 0
    %p88 = por %p86, %p87
    %p89 = scmp.ne.s32.totalorder %s77, %s78
    %p90 = scmp.eq.s32.totalorder %s26, 1
    %p91 = por %p89, %p90
    %p93 = scmp.ne.s32.totalorder %s78, %s92
    %p94 = scmp.eq.s32.totalorder %s26, 0
    %p95 = por %p93, %p94
    %s97 = sadd.s32 %s96, 1
    %p100 = scmp.eq.s32.totalorder %s20, 1
    %p101 = scmp.ne.s32.totalorder %s96, %s98
    %p102 = scmp.eq.s32.totalorder %s20, 0
    %p103 = por %p101, %p102
    %p104 = scmp.ne.s32.totalorder %s96, %s98
    %p105 = scmp.eq.s32.totalorder %s25, 1
    %p106 = por %p104, %p105
    %p107 = scmp.ne.s32.totalorder %s98, %s99
    %p108 = scmp.eq.s32.totalorder %s25, 0
    %p109 = por %p107, %p108
    %p110 = scmp.ne.s32.totalorder %s98, %s99
    %p111 = scmp.eq.s32.totalorder %s26, 1
    %p112 = por %p110, %p111
    %p114 = scmp.ne.s32.totalorder %s99, %s113
    %p115 = scmp.eq.s32.totalorder %s26, 0
    %p116 = por %p114, %p115
    %s117 = ssub.s32 %s20, %s27
    %p118 = scmp.eq.s32.totalorder %s117, 0
    %s120 = sadd.s32 %s119, 1
    %s121 = scalar_select %p118, %s119, %s120
    %p124 = pneg %p118
    %p125 = scmp.eq.s32.totalorder %s20, 1
    %p126 = por %p124, %p125
    %p127 = scmp.ne.s32.totalorder %s119, %s122
    %p128 = scmp.eq.s32.totalorder %s20, 0
    %p129 = por %p127, %p128
    %p130 = scmp.ne.s32.totalorder %s119, %s122
    %p131 = scmp.eq.s32.totalorder %s25, 1
    %p132 = por %p130, %p131
    %p133 = scmp.ne.s32.totalorder %s122, %s123
    %p134 = scmp.eq.s32.totalorder %s25, 0
    %p135 = por %p133, %p134
    %p136 = scmp.ne.s32.totalorder %s122, %s123
    %p137 = scmp.eq.s32.totalorder %s26, 1
    %p138 = por %p136, %p137
    %p140 = scmp.ne.s32.totalorder %s123, %s139
    %p141 = scmp.eq.s32.totalorder %s26, 0
    %p142 = por %p140, %p141
    %s144 = sadd.s32 %s143, 1
    %p147 = scmp.eq.s32.totalorder %s20, 1
    %p148 = scmp.ne.s32.totalorder %s143, %s145
    %p149 = scmp.eq.s32.totalorder %s20, 0
    %p150 = por %p148, %p149
    %p151 = scmp.ne.s32.totalorder %s143, %s145
    %p152 = scmp.eq.s32.totalorder %s25, 1
    %p153 = por %p151, %p152
    %p154 = scmp.ne.s32.totalorder %s145, %s146
    %p155 = scmp.eq.s32.totalorder %s25, 0
    %p156 = por %p154, %p155
    %p157 = scmp.ne.s32.totalorder %s145, %s146
    %p158 = scmp.eq.s32.totalorder %s26, 1
    %p159 = por %p157, %p158
    %p161 = scmp.ne.s32.totalorder %s146, %s160
    %p162 = scmp.eq.s32.totalorder %s26, 0
    %p163 = por %p161, %p162
    %s165 = sadd.s32 %s164, 1
    %p168 = scmp.eq.s32.totalorder %s20, 1
    %p169 = scmp.ne.s32.totalorder %s164, %s166
    %p170 = scmp.eq.s32.totalorder %s20, 0
    %p171 = por %p169, %p170
    %p172 = scmp.ne.s32.totalorder %s164, %s166
    %p173 = scmp.eq.s32.totalorder %s25, 1
    %p174 = por %p172, %p173
    %p175 = scmp.ne.s32.totalorder %s166, %s167
    %p176 = scmp.eq.s32.totalorder %s25, 0
    %p177 = por %p175, %p176
    %p178 = scmp.ne.s32.totalorder %s166, %s167
    %p179 = scmp.eq.s32.totalorder %s26, 1
    %p180 = por %p178, %p179
    %p182 = scmp.ne.s32.totalorder %s167, %s181
    %p183 = scmp.eq.s32.totalorder %s26, 0
    %p184 = por %p182, %p183
    %s186 = sadd.s32 %s185, 1
    %p189 = scmp.eq.s32.totalorder %s20, 1
    %p190 = scmp.ne.s32.totalorder %s185, %s187
    %p191 = scmp.eq.s32.totalorder %s20, 0
    %p192 = por %p190, %p191
    %p193 = scmp.ne.s32.totalorder %s185, %s187
    %p194 = scmp.eq.s32.totalorder %s25, 1
    %p195 = por %p193, %p194
    %p196 = scmp.ne.s32.totalorder %s187, %s188
    %p197 = scmp.eq.s32.totalorder %s25, 0
    %p198 = por %p196, %p197
    %p199 = scmp.ne.s32.totalorder %s187, %s188
    %p200 = scmp.eq.s32.totalorder %s26, 1
    %p201 = por %p199, %p200
    %p203 = scmp.ne.s32.totalorder %s188, %s202
    %p204 = scmp.eq.s32.totalorder %s26, 0
    %p205 = por %p203, %p204
    %s206 = ssub.s32 %s20, %s27
    %p207 = scmp.eq.s32.totalorder %s206, 0
    %s209 = sadd.s32 %s208, 1
    %s210 = scalar_select %p207, %s208, %s209
    %p213 = pneg %p207
    %p214 = scmp.eq.s32.totalorder %s20, 1
    %p215 = por %p213, %p214
    %p216 = scmp.ne.s32.totalorder %s208, %s211
    %p217 = scmp.eq.s32.totalorder %s20, 0
    %p218 = por %p216, %p217
    %p219 = scmp.ne.s32.totalorder %s208, %s211
    %p220 = scmp.eq.s32.totalorder %s25, 1
    %p221 = por %p219, %p220
    %p222 = scmp.ne.s32.totalorder %s211, %s212
    %p223 = scmp.eq.s32.totalorder %s25, 0
    %p224 = por %p222, %p223
    %p225 = scmp.ne.s32.totalorder %s211, %s212
    %p226 = scmp.eq.s32.totalorder %s26, 1
    %p227 = por %p225, %p226
    %p229 = scmp.ne.s32.totalorder %s212, %s228
    %p230 = scmp.eq.s32.totalorder %s26, 0
    %p231 = por %p229, %p230
    %s232 = ssub.s32 %s20, %s27
    %p233 = scmp.eq.s32.totalorder %s232, 0
    %s235 = sadd.s32 %s234, 1
    %s236 = scalar_select %p233, %s234, %s235
    %p239 = pneg %p233
    %p240 = scmp.eq.s32.totalorder %s20, 1
    %p241 = por %p239, %p240
    %p242 = scmp.ne.s32.totalorder %s234, %s237
    %p243 = scmp.eq.s32.totalorder %s20, 0
    %p244 = por %p242, %p243
    %p245 = scmp.ne.s32.totalorder %s234, %s237
    %p246 = scmp.eq.s32.totalorder %s25, 1
    %p247 = por %p245, %p246
    %p248 = scmp.ne.s32.totalorder %s237, %s238
    %p249 = scmp.eq.s32.totalorder %s25, 0
    %p250 = por %p248, %p249
    %p251 = scmp.ne.s32.totalorder %s237, %s238
    %p252 = scmp.eq.s32.totalorder %s26, 1
    %p253 = por %p251, %p252
    %p255 = scmp.ne.s32.totalorder %s238, %s254
    %p256 = scmp.eq.s32.totalorder %s26, 0
    %p257 = por %p255, %p256
    %s259 = sadd.s32 %s258, 1
    %p262 = scmp.eq.s32.totalorder %s20, 1
    %p263 = scmp.ne.s32.totalorder %s258, %s260
    %p264 = scmp.eq.s32.totalorder %s20, 0
    %p265 = por %p263, %p264
    %p266 = scmp.ne.s32.totalorder %s258, %s260
    %p267 = scmp.eq.s32.totalorder %s25, 1
    %p268 = por %p266, %p267
    %p269 = scmp.ne.s32.totalorder %s260, %s261
    %p270 = scmp.eq.s32.totalorder %s25, 0
    %p271 = por %p269, %p270
    %p272 = scmp.ne.s32.totalorder %s260, %s261
    %p273 = scmp.eq.s32.totalorder %s26, 1
    %p274 = por %p272, %p273
    %p276 = scmp.ne.s32.totalorder %s261, %s275
    %p277 = scmp.eq.s32.totalorder %s26, 0
    %p278 = por %p276, %p277
    %s280 = sadd.s32 %s279, 1
    %p283 = scmp.eq.s32.totalorder %s20, 1
    %p284 = scmp.ne.s32.totalorder %s279, %s281
    %p285 = scmp.eq.s32.totalorder %s20, 0
    %p286 = por %p284, %p285
    %p287 = scmp.ne.s32.totalorder %s279, %s281
    %p288 = scmp.eq.s32.totalorder %s25, 1
    %p289 = por %p287, %p288
    %p290 = scmp.ne.s32.totalorder %s281, %s282
    %p291 = scmp.eq.s32.totalorder %s25, 0
    %p292 = por %p290, %p291
    %p293 = scmp.ne.s32.totalorder %s281, %s282
    %p294 = scmp.eq.s32.totalorder %s26, 1
    %p295 = por %p293, %p294
    %p297 = scmp.ne.s32.totalorder %s282, %s296
    %p298 = scmp.eq.s32.totalorder %s26, 0
    %p299 = por %p297, %p298
    %s301 = sadd.s32 %s300, 1
    %p304 = scmp.eq.s32.totalorder %s20, 1
    %p305 = scmp.ne.s32.totalorder %s300, %s302
    %p306 = scmp.eq.s32.totalorder %s20, 0
    %p307 = por %p305, %p306
    %p308 = scmp.ne.s32.totalorder %s300, %s302
    %p309 = scmp.eq.s32.totalorder %s25, 1
    %p310 = por %p308, %p309
    %p311 = scmp.ne.s32.totalorder %s302, %s303
    %p312 = scmp.eq.s32.totalorder %s25, 0
    %p313 = por %p311, %p312
    %p314 = scmp.ne.s32.totalorder %s302, %s303
    %p315 = scmp.eq.s32.totalorder %s26, 1
    %p316 = por %p314, %p315
    %p318 = scmp.ne.s32.totalorder %s303, %s317
    %p319 = scmp.eq.s32.totalorder %s26, 0
    %p320 = por %p318, %p319
    %s322 = sadd.s32 %s321, 1
    %p325 = scmp.eq.s32.totalorder %s20, 1
    %p326 = scmp.ne.s32.totalorder %s321, %s323
    %p327 = scmp.eq.s32.totalorder %s20, 0
    %p328 = por %p326, %p327
    %p329 = scmp.ne.s32.totalorder %s321, %s323
    %p330 = scmp.eq.s32.totalorder %s25, 1
    %p331 = por %p329, %p330
    %p332 = scmp.ne.s32.totalorder %s323, %s324
    %p333 = scmp.eq.s32.totalorder %s25, 0
    %p334 = por %p332, %p333
    %p335 = scmp.ne.s32.totalorder %s323, %s324
    %p336 = scmp.eq.s32.totalorder %s26, 1
    %p337 = por %p335, %p336
    %p339 = scmp.ne.s32.totalorder %s324, %s338
    %p340 = scmp.eq.s32.totalorder %s26, 0
    %p341 = por %p339, %p340
    %p342 = scmp.le.s32.totalorder 1, %s20
    %p343 = scmp.lt.s32.totalorder %s20, 3
    %p344 = pnand %p342, %p343
    %p345 = pneg %p344
    // Predicated region
    $region9: #{basic_block_forward.6} parent=5 // pred_check
      _
    $region10: #{basic_block_forward.6} parent=5 // pred_check_branch
      %347 = sbr.rel (%p344) target = $region12
    $region11: #{basic_block_forward.6} parent=5 // pred_region
      %s348 = ssub.s32 %s20, 1
      // Predicated region
      $region13: #{basic_block_forward.6} parent=11 // pred_check
        %p349 = pneg %p67
      $region14: #{basic_block_forward.6} parent=11 // pred_check_branch
        %351 = sbr.rel (%p349) target = $region16
      $region15: #{basic_block_forward.6} parent=11 // pred_region
        _
      $region16: #{basic_block_forward.6} parent=11 // pred_fallthru
        _
      // Predicated region
      $region17: #{basic_block_forward.6} parent=11 // pred_check
        %p352 = pneg %p88
      $region18: #{basic_block_forward.6} parent=11 // pred_check_branch
        %354 = sbr.rel (%p352) target = $region20
      $region19: #{basic_block_forward.6} parent=11 // pred_region
        _
      $region20: #{basic_block_forward.6} parent=11 // pred_fallthru
        _
      // Predicated region
      $region21: #{basic_block_forward.6} parent=11 // pred_check
        %p355 = pneg %p109
      $region22: #{basic_block_forward.6} parent=11 // pred_check_branch
        %357 = sbr.rel (%p355) target = $region24
      $region23: #{basic_block_forward.6} parent=11 // pred_region
        _
      $region24: #{basic_block_forward.6} parent=11 // pred_fallthru
        _
      // Predicated region
      $region25: #{basic_block_forward.6} parent=11 // pred_check
        %p358 = pneg %p156
      $region26: #{basic_block_forward.6} parent=11 // pred_check_branch
        %360 = sbr.rel (%p358) target = $region28
      $region27: #{basic_block_forward.6} parent=11 // pred_region
        _
      $region28: #{basic_block_forward.6} parent=11 // pred_fallthru
        _
      // Predicated region
      $region29: #{basic_block_forward.6} parent=11 // pred_check
        %p361 = pneg %p177
      $region30: #{basic_block_forward.6} parent=11 // pred_check_branch
        %363 = sbr.rel (%p361) target = $region32
      $region31: #{basic_block_forward.6} parent=11 // pred_region
        _
      $region32: #{basic_block_forward.6} parent=11 // pred_fallthru
        _
      // Predicated region
      $region33: #{basic_block_forward.6} parent=11 // pred_check
        %p364 = pneg %p198
      $region34: #{basic_block_forward.6} parent=11 // pred_check_branch
        %366 = sbr.rel (%p364) target = $region36
      $region35: #{basic_block_forward.6} parent=11 // pred_region
        _
      $region36: #{basic_block_forward.6} parent=11 // pred_fallthru
        _
    $region12: #{basic_block_forward.6} parent=5 // pred_fallthru
      _
    %p367 = scmp.lt.s32.totalorder %s20, 2
    // Predicated region
    $region37: #{basic_block_forward.6} parent=5 // pred_check
      %p368 = pneg %p367
    $region38: #{basic_block_forward.6} parent=5 // pred_check_branch
      %370 = sbr.rel (%p368) target = $region40
    $region39: #{basic_block_forward.6} parent=5 // pred_region
      // Predicated region
      $region41: #{basic_block_forward.6} parent=39 // pred_check
        %p371 = pneg %p40
      $region42: #{basic_block_forward.6} parent=39 // pred_check_branch
        %373 = sbr.rel (%p371) target = $region44
      $region43: #{basic_block_forward.6} parent=39 // pred_region
        %s374 = smul.u32 8, %s20
        %p375 = scmp.lt.s32.totalorder %s374, 15
        %s376 = scalar_select %p375, %s374, 15
        %s377 = smul.addr %s376, 9
        %s378 = smul.addr %s377, 4
        %s379 = scalar_lea.vmem %s0, %s378
        %s380 = smul.u32 8, %s20
      $region44: #{basic_block_forward.6} parent=39 // pred_fallthru
        _
      // Predicated region
      $region45: #{basic_block_forward.6} parent=39 // pred_check
        %p381 = pneg %p129
      $region46: #{basic_block_forward.6} parent=39 // pred_check_branch
        %383 = sbr.rel (%p381) target = $region48
      $region47: #{basic_block_forward.6} parent=39 // pred_region
        %s384 = smul.u32 8, %s20
        %p385 = scmp.lt.s32.totalorder %s384, 15
        %s386 = scalar_select %p385, %s384, 15
        %s387 = smul.addr %s386, 4
        %s388 = scalar_lea.vmem %s4, %s387
        %s389 = smul.u32 8, %s20
      $region48: #{basic_block_forward.6} parent=39 // pred_fallthru
        _
    $region40: #{basic_block_forward.6} parent=5 // pred_fallthru
      _
    %p390 = scmp.le.s32.totalorder 1, %s20
    %p391 = scmp.lt.s32.totalorder %s20, 3
    %p392 = pnand %p390, %p391
    %p393 = pneg %p392
    // Predicated region
    $region49: #{basic_block_forward.6} parent=5 // pred_check
      _
    $region50: #{basic_block_forward.6} parent=5 // pred_check_branch
      %395 = sbr.rel (%p392) target = $region52
    $region51: #{basic_block_forward.6} parent=5 // pred_region
      %s396 = ssub.s32 %s20, 1
      %s397 = smul.u32 8, %s25
      %p398 = scmp.lt.s32.totalorder %s397, 15
      %s399 = scalar_select %p398, %s397, 15
      %s400 = smul.addr %s399, 9
      %s401 = smul.addr %s400, 4
      %s402 = scalar_lea.vmem %s0, %s401
      %p403 = pneg %p46
      %p404 = pneg %p43
      %p405 = pneg %p67
      %p406 = pneg %p64
      %p407 = pneg %p88
      %p408 = pneg %p85
      %p409 = pneg %p109
      %p410 = pneg %p106
      %s411 = smul.u32 8, %s25
      %p412 = scmp.lt.s32.totalorder %s411, 15
      %s413 = scalar_select %p412, %s411, 15
      %s414 = smul.addr %s413, 4
      %s415 = scalar_lea.vmem %s4, %s414
      %p416 = pneg %p135
      %p417 = pneg %p132
      %p418 = pneg %p156
      %p419 = pneg %p153
      %p420 = pneg %p177
      %p421 = pneg %p174
      %p422 = pneg %p198
      %p423 = pneg %p195
      %p424 = pneg %p224
      %p425 = pneg %p221
      %s426 = smul.u32 8, %s25
      %p427 = scmp.lt.s32.totalorder %s426, 15
      %s428 = scalar_select %p427, %s426, 15
      %s429 = smul.addr %s428, 8
      %s430 = scalar_lea.vmem %s8, %s429
      %p431 = pneg %p250
      %p432 = pneg %p247
      %s433 = smul.u32 8, %s25
      %p434 = scmp.lt.s32.totalorder %s433, 15
      %s435 = scalar_select %p434, %s433, 15
      %s436 = smul.addr %s435, 8
      %s437 = scalar_lea.vmem %s9, %s436
      %p438 = pneg %p271
      %p439 = pneg %p268
      %p440 = pneg %p292
      %p441 = pneg %p289
      %p442 = pneg %p313
      %p443 = pneg %p310
      %p444 = pneg %p334
      %p445 = pneg %p331
      %s446 = smul.u32 8, %s25
      %p447 = scmp.lt.s32.totalorder %s446, 15
      %s448 = scalar_select %p447, %s446, 15
      %s449 = smul.addr %s448, 9
      %s450 = smul.addr %s449, 4
      %s451 = scalar_lea.vmem %s0, %s450
      %s452 = smul.u32 8, %s25
      %s453 = smul.u32 8, %s25
      %p454 = scmp.lt.s32.totalorder %s453, 15
      %s455 = scalar_select %p454, %s453, 15
      %s456 = smul.addr %s455, 4
      %s457 = scalar_lea.vmem %s4, %s456
      %s458 = smul.u32 8, %s25
      %s459 = smul.u32 8, %s25
      %p460 = scmp.lt.s32.totalorder %s459, 15
      %s461 = scalar_select %p460, %s459, 15
      %s462 = smul.addr %s461, 8
      %s463 = scalar_lea.vmem %s8, %s462
      %s464 = smul.u32 8, %s25
      %s465 = smul.u32 8, %s25
      %p466 = scmp.lt.s32.totalorder %s465, 15
      %s467 = scalar_select %p466, %s465, 15
      %s468 = smul.addr %s467, 8
      %s469 = scalar_lea.vmem %s9, %s468
      %s470 = smul.u32 8, %s25
      %p472 = scmp.eq.s32.totalorder %s25, 0
      // Predicated region
      $region53: #{basic_block_forward.6} parent=51 // pred_check
        %p473 = pneg %p472
      $region54: #{basic_block_forward.6} parent=51 // pred_check_branch
        %475 = sbr.rel (%p473) target = $region56
      $region55: #{basic_block_forward.6} parent=51 // pred_region
        %476 = vst [vmem:[%s10] sm:$0x1] 0.0
        %477 = vst [vmem:[%s11] sm:$0x1] 0.0
        %478 = vst [vmem:[%s12] sm:$0x1] 0.0
        %479 = vst [vmem:[%s13] sm:$0x1] 0.0
      $region56: #{basic_block_forward.6} parent=51 // pred_fallthru
        _
      %v480 = vld [vmem:[%s451] sm:$0xff]
      %v481 = vld [vmem:[%s451 + $0x8] sm:$0xff]
      %v482 = vld [vmem:[%s451 + $0x10] sm:$0xff]
      %v483 = vld [vmem:[%s451 + $0x18] sm:$0xff]
      %v484 = vld [vmem:[%s451 + $0x20] sm:$0xf]
      %v485 = vld [vmem:[%s451 + $0x24] sm:$0xff]
      %v486 = vld [vmem:[%s451 + $0x2c] sm:$0xff]
      %v487 = vld [vmem:[%s451 + $0x34] sm:$0xff]
      %v488 = vld [vmem:[%s451 + $0x3c] sm:$0xff]
      %v489 = vld [vmem:[%s451 + $0x44] sm:$0xf]
      %v490 = vld [vmem:[%s451 + $0x48] sm:$0xff]
      %v491 = vld [vmem:[%s451 + $0x50] sm:$0xff]
      %v492 = vld [vmem:[%s451 + $0x58] sm:$0xff]
      %v493 = vld [vmem:[%s451 + $0x60] sm:$0xff]
      %v494 = vld [vmem:[%s451 + $0x68] sm:$0xf]
      %v495 = vld [vmem:[%s451 + $0x6c] sm:$0xff]
      %v496 = vld [vmem:[%s451 + $0x74] sm:$0xff]
      %v497 = vld [vmem:[%s451 + $0x7c] sm:$0xff]
      %v498 = vld [vmem:[%s451 + $0x84] sm:$0xff]
      %v499 = vld [vmem:[%s451 + $0x8c] sm:$0xf]
      %v500 = vld [vmem:[%s451 + $0x90] sm:$0xff]
      %v501 = vld [vmem:[%s451 + $0x98] sm:$0xff]
      %v502 = vld [vmem:[%s451 + $0xa0] sm:$0xff]
      %v503 = vld [vmem:[%s451 + $0xa8] sm:$0xff]
      %v504 = vld [vmem:[%s451 + $0xb0] sm:$0xf]
      %v505 = vld [vmem:[%s451 + $0xb4] sm:$0xff]
      %v506 = vld [vmem:[%s451 + $0xbc] sm:$0xff]
      %v507 = vld [vmem:[%s451 + $0xc4] sm:$0xff]
      %v508 = vld [vmem:[%s451 + $0xcc] sm:$0xff]
      %v509 = vld [vmem:[%s451 + $0xd4] sm:$0xf]
      %v510 = vld [vmem:[%s451 + $0xd8] sm:$0xff]
      %v511 = vld [vmem:[%s451 + $0xe0] sm:$0xff]
      %v512 = vld [vmem:[%s451 + $0xe8] sm:$0xff]
      %v513 = vld [vmem:[%s451 + $0xf0] sm:$0xff]
      %v514 = vld [vmem:[%s451 + $0xf8] sm:$0xf]
      %v515 = vld [vmem:[%s451 + $0xfc] sm:$0xff]
      %v516 = vld [vmem:[%s451 + $0x104] sm:$0xff]
      %v517 = vld [vmem:[%s451 + $0x10c] sm:$0xff]
      %v518 = vld [vmem:[%s451 + $0x114] sm:$0xff]
      %v519 = vld [vmem:[%s451 + $0x11c] sm:$0xf]
      %v520 = vld [vmem:[%s1] sm:$0xf]
      %v521 = vld [vmem:[%s1 + $0x4] sm:$0xf]
      %v522 = vld [vmem:[%s1 + $0x8] sm:$0xf]
      %v523 = vld [vmem:[%s1 + $0xc] sm:$0xf]
      %v524 = vld [vmem:[%s1 + $0x10] sm:$0xf]
      %v525 = vld [vmem:[%s1 + $0x14] sm:$0xf]
      %v526 = vld [vmem:[%s1 + $0x18] sm:$0xf]
      %v527 = vld [vmem:[%s1 + $0x1c] sm:$0xf]
      %v528 = vld [vmem:[%s1 + $0x20] sm:$0xf]
      %v529 = vld [vmem:[%s1 + $0x24] sm:$0xf]
      %v530 = vld [vmem:[%s1 + $0x28] sm:$0xf]
      %v531 = vld [vmem:[%s1 + $0x2c] sm:$0xf]
      %v532 = vld [vmem:[%s1 + $0x30] sm:$0xf]
      %v533 = vld [vmem:[%s1 + $0x34] sm:$0xf]
      %v534 = vld [vmem:[%s1 + $0x38] sm:$0xf]
      %v535 = vld [vmem:[%s1 + $0x3c] sm:$0xf]
      %v536 = vld [vmem:[%s1 + $0x40] sm:$0xf]
      %v537 = vld [vmem:[%s1 + $0x44] sm:$0xf]
      %v538 = vld [vmem:[%s1 + $0x48] sm:$0xf]
      %v539 = vld [vmem:[%s1 + $0x4c] sm:$0xf]
      %v540 = vld [vmem:[%s1 + $0x50] sm:$0xf]
      %v541 = vld [vmem:[%s1 + $0x54] sm:$0xf]
      %v542 = vld [vmem:[%s1 + $0x58] sm:$0xf]
      %v543 = vld [vmem:[%s1 + $0x5c] sm:$0xf]
      %v544 = vld [vmem:[%s1 + $0x60] sm:$0xf]
      %v545 = vld [vmem:[%s1 + $0x64] sm:$0xf]
      %v546 = vld [vmem:[%s1 + $0x68] sm:$0xf]
      %v547 = vld [vmem:[%s1 + $0x6c] sm:$0xf]
      %v548 = vld [vmem:[%s1 + $0x70] sm:$0xf]
      %v549 = vld [vmem:[%s1 + $0x74] sm:$0xf]
      %v550 = vld [vmem:[%s1 + $0x78] sm:$0xf]
      %v551 = vld [vmem:[%s1 + $0x7c] sm:$0xf]
      %v552 = vld [vmem:[%s1 + $0x80] sm:$0xf]
      %v553 = vld [vmem:[%s1 + $0x84] sm:$0xf]
      %v554 = vld [vmem:[%s1 + $0x88] sm:$0xf]
      %v555 = vld [vmem:[%s1 + $0x8c] sm:$0xf]
      %v556 = vld [vmem:[%s1 + $0x90] sm:$0xf]
      %v557 = vld [vmem:[%s1 + $0x94] sm:$0xf]
      %v558 = vld [vmem:[%s1 + $0x98] sm:$0xf]
      %v559 = vld [vmem:[%s1 + $0x9c] sm:$0xf]
      %v560 = vld [vmem:[%s1 + $0xa0] sm:$0xf]
      %v561 = vld [vmem:[%s1 + $0xa4] sm:$0xf]
      %v562 = vld [vmem:[%s1 + $0xa8] sm:$0xf]
      %v563 = vld [vmem:[%s1 + $0xac] sm:$0xf]
      %v564 = vld [vmem:[%s1 + $0xb0] sm:$0xf]
      %v565 = vld [vmem:[%s1 + $0xb4] sm:$0xf]
      %v566 = vld [vmem:[%s1 + $0xb8] sm:$0xf]
      %v567 = vld [vmem:[%s1 + $0xbc] sm:$0xf]
      %v568 = vld [vmem:[%s1 + $0xc0] sm:$0xf]
      %v569 = vld [vmem:[%s1 + $0xc4] sm:$0xf]
      %v570 = vld [vmem:[%s1 + $0xc8] sm:$0xf]
      %v571 = vld [vmem:[%s1 + $0xcc] sm:$0xf]
      %v572 = vld [vmem:[%s1 + $0xd0] sm:$0xf]
      %v573 = vld [vmem:[%s1 + $0xd4] sm:$0xf]
      %v574 = vld [vmem:[%s1 + $0xd8] sm:$0xf]
      %v575 = vld [vmem:[%s1 + $0xdc] sm:$0xf]
      %v576 = vld [vmem:[%s1 + $0xe0] sm:$0xf]
      %v577 = vld [vmem:[%s1 + $0xe4] sm:$0xf]
      %v578 = vld [vmem:[%s1 + $0xe8] sm:$0xf]
      %v579 = vld [vmem:[%s1 + $0xec] sm:$0xf]
      %v580 = vld [vmem:[%s1 + $0xf0] sm:$0xf]
      %v581 = vld [vmem:[%s1 + $0xf4] sm:$0xf]
      %v582 = vld [vmem:[%s1 + $0xf8] sm:$0xf]
      %v583 = vld [vmem:[%s1 + $0xfc] sm:$0xf]
      %v584 = vld [vmem:[%s1 + $0x100] sm:$0xf]
      %v585 = vld [vmem:[%s1 + $0x104] sm:$0xf]
      %v586 = vld [vmem:[%s1 + $0x108] sm:$0xf]
      %v587 = vld [vmem:[%s1 + $0x10c] sm:$0xf]
      %v588 = vld [vmem:[%s1 + $0x110] sm:$0xf]
      %v589 = vld [vmem:[%s1 + $0x114] sm:$0xf]
      %v590 = vld [vmem:[%s1 + $0x118] sm:$0xf]
      %v591 = vld [vmem:[%s1 + $0x11c] sm:$0xf]
      %v592 = vld [vmem:[%s1 + $0x120] sm:$0xf]
      %v593 = vld [vmem:[%s1 + $0x124] sm:$0xf]
      %v594 = vld [vmem:[%s1 + $0x128] sm:$0xf]
      %v595 = vld [vmem:[%s1 + $0x12c] sm:$0xf]
      %v596 = vld [vmem:[%s1 + $0x130] sm:$0xf]
      %v597 = vld [vmem:[%s1 + $0x134] sm:$0xf]
      %v598 = vld [vmem:[%s1 + $0x138] sm:$0xf]
      %v599 = vld [vmem:[%s1 + $0x13c] sm:$0xf]
      %v600 = vld [vmem:[%s1 + $0x140] sm:$0xf]
      %v601 = vld [vmem:[%s1 + $0x144] sm:$0xf]
      %v602 = vld [vmem:[%s1 + $0x148] sm:$0xf]
      %v603 = vld [vmem:[%s1 + $0x14c] sm:$0xf]
      %v604 = vld [vmem:[%s1 + $0x150] sm:$0xf]
      %v605 = vld [vmem:[%s1 + $0x154] sm:$0xf]
      %v606 = vld [vmem:[%s1 + $0x158] sm:$0xf]
      %v607 = vld [vmem:[%s1 + $0x15c] sm:$0xf]
      %v608 = vld [vmem:[%s1 + $0x160] sm:$0xf]
      %v609 = vld [vmem:[%s1 + $0x164] sm:$0xf]
      %v610 = vld [vmem:[%s1 + $0x168] sm:$0xf]
      %v611 = vld [vmem:[%s1 + $0x16c] sm:$0xf]
      %v612 = vld [vmem:[%s1 + $0x170] sm:$0xf]
      %v613 = vld [vmem:[%s1 + $0x174] sm:$0xf]
      %v614 = vld [vmem:[%s1 + $0x178] sm:$0xf]
      %v615 = vld [vmem:[%s1 + $0x17c] sm:$0xf]
      %v616 = vld [vmem:[%s1 + $0x180] sm:$0xf]
      %v617 = vld [vmem:[%s1 + $0x184] sm:$0xf]
      %v618 = vld [vmem:[%s1 + $0x188] sm:$0xf]
      %v619 = vld [vmem:[%s1 + $0x18c] sm:$0xf]
      %v620 = vld [vmem:[%s1 + $0x190] sm:$0xf]
      %v621 = vld [vmem:[%s1 + $0x194] sm:$0xf]
      %v622 = vld [vmem:[%s1 + $0x198] sm:$0xf]
      %v623 = vld [vmem:[%s1 + $0x19c] sm:$0xf]
      %v624 = vld [vmem:[%s1 + $0x1a0] sm:$0xf]
      %v625 = vld [vmem:[%s1 + $0x1a4] sm:$0xf]
      %v626 = vld [vmem:[%s1 + $0x1a8] sm:$0xf]
      %v627 = vld [vmem:[%s1 + $0x1ac] sm:$0xf]
      %v628 = vld [vmem:[%s1 + $0x1b0] sm:$0xf]
      %v629 = vld [vmem:[%s1 + $0x1b4] sm:$0xf]
      %v630 = vld [vmem:[%s1 + $0x1b8] sm:$0xf]
      %v631 = vld [vmem:[%s1 + $0x1bc] sm:$0xf]
      %v632 = vld [vmem:[%s1 + $0x1c0] sm:$0xf]
      %v633 = vld [vmem:[%s1 + $0x1c4] sm:$0xf]
      %v634 = vld [vmem:[%s1 + $0x1c8] sm:$0xf]
      %v635 = vld [vmem:[%s1 + $0x1cc] sm:$0xf]
      %v636 = vld [vmem:[%s1 + $0x1d0] sm:$0xf]
      %v637 = vld [vmem:[%s1 + $0x1d4] sm:$0xf]
      %v638 = vld [vmem:[%s1 + $0x1d8] sm:$0xf]
      %v639 = vld [vmem:[%s1 + $0x1dc] sm:$0xf]
      %v640 = vld [vmem:[%s1 + $0x1e0] sm:$0xf]
      %v641 = vld [vmem:[%s1 + $0x1e4] sm:$0xf]
      %v642 = vld [vmem:[%s1 + $0x1e8] sm:$0xf]
      %v643 = vld [vmem:[%s1 + $0x1ec] sm:$0xf]
      %v644 = vld [vmem:[%s1 + $0x1f0] sm:$0xf]
      %v645 = vld [vmem:[%s1 + $0x1f4] sm:$0xf]
      %v646 = vld [vmem:[%s1 + $0x1f8] sm:$0xf]
      %v647 = vld [vmem:[%s1 + $0x1fc] sm:$0xf]
      %v648 = vld [vmem:[%s1 + $0x200] sm:$0xf]
      %v649 = vld [vmem:[%s1 + $0x204] sm:$0xf]
      %v650 = vld [vmem:[%s1 + $0x208] sm:$0xf]
      %v651 = vld [vmem:[%s1 + $0x20c] sm:$0xf]
      %v652 = vld [vmem:[%s1 + $0x210] sm:$0xf]
      %v653 = vld [vmem:[%s1 + $0x214] sm:$0xf]
      %v654 = vld [vmem:[%s1 + $0x218] sm:$0xf]
      %v655 = vld [vmem:[%s1 + $0x21c] sm:$0xf]
      %v656 = vld [vmem:[%s1 + $0x220] sm:$0xf]
      %v657 = vld [vmem:[%s1 + $0x224] sm:$0xf]
      %v658 = vld [vmem:[%s1 + $0x228] sm:$0xf]
      %v659 = vld [vmem:[%s1 + $0x22c] sm:$0xf]
      %v660 = vld [vmem:[%s1 + $0x230] sm:$0xf]
      %v661 = vld [vmem:[%s1 + $0x234] sm:$0xf]
      %v662 = vld [vmem:[%s1 + $0x238] sm:$0xf]
      %v663 = vld [vmem:[%s1 + $0x23c] sm:$0xf]
      %v704 = vunpack.c.l.b16 %v480
      %v705 = vunpack.c.h.b16 %v480
      %v706 = vunpack.c.l.b16 %v481
      %v707 = vunpack.c.h.b16 %v481
      %v708 = vunpack.c.l.b16 %v482
      %v709 = vunpack.c.h.b16 %v482
      %v710 = vunpack.c.l.b16 %v483
      %v711 = vunpack.c.h.b16 %v483
      %v712 = vunpack.c.l.b16 %v484
      %v713 = vunpack.c.l.b16 %v485
      %v714 = vunpack.c.h.b16 %v485
      %v715 = vunpack.c.l.b16 %v486
      %v716 = vunpack.c.h.b16 %v486
      %v717 = vunpack.c.l.b16 %v487
      %v718 = vunpack.c.h.b16 %v487
      %v719 = vunpack.c.l.b16 %v488
      %v720 = vunpack.c.h.b16 %v488
      %v721 = vunpack.c.l.b16 %v489
      %v722 = vunpack.c.l.b16 %v490
      %v723 = vunpack.c.h.b16 %v490
      %v724 = vunpack.c.l.b16 %v491
      %v725 = vunpack.c.h.b16 %v491
      %v726 = vunpack.c.l.b16 %v492
      %v727 = vunpack.c.h.b16 %v492
      %v728 = vunpack.c.l.b16 %v493
      %v729 = vunpack.c.h.b16 %v493
      %v730 = vunpack.c.l.b16 %v494
      %v731 = vunpack.c.l.b16 %v495
      %v732 = vunpack.c.h.b16 %v495
      %v733 = vunpack.c.l.b16 %v496
      %v734 = vunpack.c.h.b16 %v496
      %v735 = vunpack.c.l.b16 %v497
      %v736 = vunpack.c.h.b16 %v497
      %v737 = vunpack.c.l.b16 %v498
      %v738 = vunpack.c.h.b16 %v498
      %v739 = vunpack.c.l.b16 %v499
      %v740 = vunpack.c.l.b16 %v500
      %v741 = vunpack.c.h.b16 %v500
      %v742 = vunpack.c.l.b16 %v501
      %v743 = vunpack.c.h.b16 %v501
      %v744 = vunpack.c.l.b16 %v502
      %v745 = vunpack.c.h.b16 %v502
      %v746 = vunpack.c.l.b16 %v503
      %v747 = vunpack.c.h.b16 %v503
      %v748 = vunpack.c.l.b16 %v504
      %v749 = vunpack.c.l.b16 %v505
      %v750 = vunpack.c.h.b16 %v505
      %v751 = vunpack.c.l.b16 %v506
      %v752 = vunpack.c.h.b16 %v506
      %v753 = vunpack.c.l.b16 %v507
      %v754 = vunpack.c.h.b16 %v507
      %v755 = vunpack.c.l.b16 %v508
      %v756 = vunpack.c.h.b16 %v508
      %v757 = vunpack.c.l.b16 %v509
      %v758 = vunpack.c.l.b16 %v510
      %v759 = vunpack.c.h.b16 %v510
      %v760 = vunpack.c.l.b16 %v511
      %v761 = vunpack.c.h.b16 %v511
      %v762 = vunpack.c.l.b16 %v512
      %v763 = vunpack.c.h.b16 %v512
      %v764 = vunpack.c.l.b16 %v513
      %v765 = vunpack.c.h.b16 %v513
      %v766 = vunpack.c.l.b16 %v514
      %v767 = vunpack.c.l.b16 %v515
      %v768 = vunpack.c.h.b16 %v515
      %v769 = vunpack.c.l.b16 %v516
      %v770 = vunpack.c.h.b16 %v516
      %v771 = vunpack.c.l.b16 %v517
      %v772 = vunpack.c.h.b16 %v517
      %v773 = vunpack.c.l.b16 %v518
      %v774 = vunpack.c.h.b16 %v518
      %v775 = vunpack.c.l.b16 %v519
      %v776 = vpack.c.b16 %v713, %v704
      %v777 = vpack.c.b16 %v714, %v705
      %v778 = vpack.c.b16 %v715, %v706
      %v779 = vpack.c.b16 %v716, %v707
      %v780 = vpack.c.b16 %v717, %v708
      %v781 = vpack.c.b16 %v718, %v709
      %v782 = vpack.c.b16 %v719, %v710
      %v783 = vpack.c.b16 %v720, %v711
      %v784 = vpack.c.b16 %v721, %v712
      %v785 = vpack.c.b16 %v731, %v722
      %v786 = vpack.c.b16 %v732, %v723
      %v787 = vpack.c.b16 %v733, %v724
      %v788 = vpack.c.b16 %v734, %v725
      %v789 = vpack.c.b16 %v735, %v726
      %v790 = vpack.c.b16 %v736, %v727
      %v791 = vpack.c.b16 %v737, %v728
      %v792 = vpack.c.b16 %v738, %v729
      %v793 = vpack.c.b16 %v739, %v730
      %v794 = vpack.c.b16 %v749, %v740
      %v795 = vpack.c.b16 %v750, %v741
      %v796 = vpack.c.b16 %v751, %v742
      %v797 = vpack.c.b16 %v752, %v743
      %v798 = vpack.c.b16 %v753, %v744
      %v799 = vpack.c.b16 %v754, %v745
      %v800 = vpack.c.b16 %v755, %v746
      %v801 = vpack.c.b16 %v756, %v747
      %v802 = vpack.c.b16 %v757, %v748
      %v803 = vpack.c.b16 %v767, %v758
      %v804 = vpack.c.b16 %v768, %v759
      %v805 = vpack.c.b16 %v769, %v760
      %v806 = vpack.c.b16 %v770, %v761
      %v807 = vpack.c.b16 %v771, %v762
      %v808 = vpack.c.b16 %v772, %v763
      %v809 = vpack.c.b16 %v773, %v764
      %v810 = vpack.c.b16 %v774, %v765
      %v811 = vpack.c.b16 %v775, %v766
      %v992 = vunpack.c.l.b16 %v520
      %v993 = vunpack.c.l.b16 %v521
      %v994 = vunpack.c.l.b16 %v522
      %v995 = vunpack.c.l.b16 %v523
      %v996 = vunpack.c.l.b16 %v524
      %v997 = vunpack.c.l.b16 %v525
      %v998 = vunpack.c.l.b16 %v526
      %v999 = vunpack.c.l.b16 %v527
      %v1000 = vunpack.c.l.b16 %v528
      %v1001 = vunpack.c.l.b16 %v529
      %v1002 = vunpack.c.l.b16 %v530
      %v1003 = vunpack.c.l.b16 %v531
      %v1004 = vunpack.c.l.b16 %v532
      %v1005 = vunpack.c.l.b16 %v533
      %v1006 = vunpack.c.l.b16 %v534
      %v1007 = vunpack.c.l.b16 %v535
      %v1008 = vunpack.c.l.b16 %v536
      %v1009 = vunpack.c.l.b16 %v537
      %v1010 = vunpack.c.l.b16 %v538
      %v1011 = vunpack.c.l.b16 %v539
      %v1012 = vunpack.c.l.b16 %v540
      %v1013 = vunpack.c.l.b16 %v541
      %v1014 = vunpack.c.l.b16 %v542
      %v1015 = vunpack.c.l.b16 %v543
      %v1016 = vunpack.c.l.b16 %v544
      %v1017 = vunpack.c.l.b16 %v545
      %v1018 = vunpack.c.l.b16 %v546
      %v1019 = vunpack.c.l.b16 %v547
      %v1020 = vunpack.c.l.b16 %v548
      %v1021 = vunpack.c.l.b16 %v549
      %v1022 = vunpack.c.l.b16 %v550
      %v1023 = vunpack.c.l.b16 %v551
      %v1024 = vunpack.c.l.b16 %v552
      %v1025 = vunpack.c.l.b16 %v553
      %v1026 = vunpack.c.l.b16 %v554
      %v1027 = vunpack.c.l.b16 %v555
      %v1028 = vunpack.c.l.b16 %v556
      %v1029 = vunpack.c.l.b16 %v557
      %v1030 = vunpack.c.l.b16 %v558
      %v1031 = vunpack.c.l.b16 %v559
      %v1032 = vunpack.c.l.b16 %v560
      %v1033 = vunpack.c.l.b16 %v561
      %v1034 = vunpack.c.l.b16 %v562
      %v1035 = vunpack.c.l.b16 %v563
      %v1036 = vunpack.c.l.b16 %v564
      %v1037 = vunpack.c.l.b16 %v565
      %v1038 = vunpack.c.l.b16 %v566
      %v1039 = vunpack.c.l.b16 %v567
      %v1040 = vunpack.c.l.b16 %v568
      %v1041 = vunpack.c.l.b16 %v569
      %v1042 = vunpack.c.l.b16 %v570
      %v1043 = vunpack.c.l.b16 %v571
      %v1044 = vunpack.c.l.b16 %v572
      %v1045 = vunpack.c.l.b16 %v573
      %v1046 = vunpack.c.l.b16 %v574
      %v1047 = vunpack.c.l.b16 %v575
      %v1048 = vunpack.c.l.b16 %v576
      %v1049 = vunpack.c.l.b16 %v577
      %v1050 = vunpack.c.l.b16 %v578
      %v1051 = vunpack.c.l.b16 %v579
      %v1052 = vunpack.c.l.b16 %v580
      %v1053 = vunpack.c.l.b16 %v581
      %v1054 = vunpack.c.l.b16 %v582
      %v1055 = vunpack.c.l.b16 %v583
      %v1056 = vunpack.c.l.b16 %v584
      %v1057 = vunpack.c.l.b16 %v585
      %v1058 = vunpack.c.l.b16 %v586
      %v1059 = vunpack.c.l.b16 %v587
      %v1060 = vunpack.c.l.b16 %v588
      %v1061 = vunpack.c.l.b16 %v589
      %v1062 = vunpack.c.l.b16 %v590
      %v1063 = vunpack.c.l.b16 %v591
      %v1064 = vunpack.c.l.b16 %v592
      %v1065 = vunpack.c.l.b16 %v593
      %v1066 = vunpack.c.l.b16 %v594
      %v1067 = vunpack.c.l.b16 %v595
      %v1068 = vunpack.c.l.b16 %v596
      %v1069 = vunpack.c.l.b16 %v597
      %v1070 = vunpack.c.l.b16 %v598
      %v1071 = vunpack.c.l.b16 %v599
      %v1072 = vunpack.c.l.b16 %v600
      %v1073 = vunpack.c.l.b16 %v601
      %v1074 = vunpack.c.l.b16 %v602
      %v1075 = vunpack.c.l.b16 %v603
      %v1076 = vunpack.c.l.b16 %v604
      %v1077 = vunpack.c.l.b16 %v605
      %v1078 = vunpack.c.l.b16 %v606
      %v1079 = vunpack.c.l.b16 %v607
      %v1080 = vunpack.c.l.b16 %v608
      %v1081 = vunpack.c.l.b16 %v609
      %v1082 = vunpack.c.l.b16 %v610
      %v1083 = vunpack.c.l.b16 %v611
      %v1084 = vunpack.c.l.b16 %v612
      %v1085 = vunpack.c.l.b16 %v613
      %v1086 = vunpack.c.l.b16 %v614
      %v1087 = vunpack.c.l.b16 %v615
      %v1088 = vunpack.c.l.b16 %v616
      %v1089 = vunpack.c.l.b16 %v617
      %v1090 = vunpack.c.l.b16 %v618
      %v1091 = vunpack.c.l.b16 %v619
      %v1092 = vunpack.c.l.b16 %v620
      %v1093 = vunpack.c.l.b16 %v621
      %v1094 = vunpack.c.l.b16 %v622
      %v1095 = vunpack.c.l.b16 %v623
      %v1096 = vunpack.c.l.b16 %v624
      %v1097 = vunpack.c.l.b16 %v625
      %v1098 = vunpack.c.l.b16 %v626
      %v1099 = vunpack.c.l.b16 %v627
      %v1100 = vunpack.c.l.b16 %v628
      %v1101 = vunpack.c.l.b16 %v629
      %v1102 = vunpack.c.l.b16 %v630
      %v1103 = vunpack.c.l.b16 %v631
      %v1104 = vunpack.c.l.b16 %v632
      %v1105 = vunpack.c.l.b16 %v633
      %v1106 = vunpack.c.l.b16 %v634
      %v1107 = vunpack.c.l.b16 %v635
      %v1108 = vunpack.c.l.b16 %v636
      %v1109 = vunpack.c.l.b16 %v637
      %v1110 = vunpack.c.l.b16 %v638
      %v1111 = vunpack.c.l.b16 %v639
      %v1112 = vunpack.c.l.b16 %v640
      %v1113 = vunpack.c.l.b16 %v641
      %v1114 = vunpack.c.l.b16 %v642
      %v1115 = vunpack.c.l.b16 %v643
      %v1116 = vunpack.c.l.b16 %v644
      %v1117 = vunpack.c.l.b16 %v645
      %v1118 = vunpack.c.l.b16 %v646
      %v1119 = vunpack.c.l.b16 %v647
      %v1120 = vunpack.c.l.b16 %v648
      %v1121 = vunpack.c.l.b16 %v649
      %v1122 = vunpack.c.l.b16 %v650
      %v1123 = vunpack.c.l.b16 %v651
      %v1124 = vunpack.c.l.b16 %v652
      %v1125 = vunpack.c.l.b16 %v653
      %v1126 = vunpack.c.l.b16 %v654
      %v1127 = vunpack.c.l.b16 %v655
      %v1128 = vunpack.c.l.b16 %v656
      %v1129 = vunpack.c.l.b16 %v657
      %v1130 = vunpack.c.l.b16 %v658
      %v1131 = vunpack.c.l.b16 %v659
      %v1132 = vunpack.c.l.b16 %v660
      %v1133 = vunpack.c.l.b16 %v661
      %v1134 = vunpack.c.l.b16 %v662
      %v1135 = vunpack.c.l.b16 %v663
      %v1136 = vpack.c.b16 %v993, %v992
      %v1137 = vpack.c.b16 %v995, %v994
      %v1138 = vpack.c.b16 %v997, %v996
      %v1139 = vpack.c.b16 %v999, %v998
      %v1140 = vpack.c.b16 %v1001, %v1000
      %v1141 = vpack.c.b16 %v1003, %v1002
      %v1142 = vpack.c.b16 %v1005, %v1004
      %v1143 = vpack.c.b16 %v1007, %v1006
      %v1144 = vpack.c.b16 %v1009, %v1008
      %v1145 = vpack.c.b16 %v1011, %v1010
      %v1146 = vpack.c.b16 %v1013, %v1012
      %v1147 = vpack.c.b16 %v1015, %v1014
      %v1148 = vpack.c.b16 %v1017, %v1016
      %v1149 = vpack.c.b16 %v1019, %v1018
      %v1150 = vpack.c.b16 %v1021, %v1020
      %v1151 = vpack.c.b16 %v1023, %v1022
      %v1152 = vpack.c.b16 %v1025, %v1024
      %v1153 = vpack.c.b16 %v1027, %v1026
      %v1154 = vpack.c.b16 %v1029, %v1028
      %v1155 = vpack.c.b16 %v1031, %v1030
      %v1156 = vpack.c.b16 %v1033, %v1032
      %v1157 = vpack.c.b16 %v1035, %v1034
      %v1158 = vpack.c.b16 %v1037, %v1036
      %v1159 = vpack.c.b16 %v1039, %v1038
      %v1160 = vpack.c.b16 %v1041, %v1040
      %v1161 = vpack.c.b16 %v1043, %v1042
      %v1162 = vpack.c.b16 %v1045, %v1044
      %v1163 = vpack.c.b16 %v1047, %v1046
      %v1164 = vpack.c.b16 %v1049, %v1048
      %v1165 = vpack.c.b16 %v1051, %v1050
      %v1166 = vpack.c.b16 %v1053, %v1052
      %v1167 = vpack.c.b16 %v1055, %v1054
      %v1168 = vpack.c.b16 %v1057, %v1056
      %v1169 = vpack.c.b16 %v1059, %v1058
      %v1170 = vpack.c.b16 %v1061, %v1060
      %v1171 = vpack.c.b16 %v1063, %v1062
      %v1172 = vpack.c.b16 %v1065, %v1064
      %v1173 = vpack.c.b16 %v1067, %v1066
      %v1174 = vpack.c.b16 %v1069, %v1068
      %v1175 = vpack.c.b16 %v1071, %v1070
      %v1176 = vpack.c.b16 %v1073, %v1072
      %v1177 = vpack.c.b16 %v1075, %v1074
      %v1178 = vpack.c.b16 %v1077, %v1076
      %v1179 = vpack.c.b16 %v1079, %v1078
      %v1180 = vpack.c.b16 %v1081, %v1080
      %v1181 = vpack.c.b16 %v1083, %v1082
      %v1182 = vpack.c.b16 %v1085, %v1084
      %v1183 = vpack.c.b16 %v1087, %v1086
      %v1184 = vpack.c.b16 %v1089, %v1088
      %v1185 = vpack.c.b16 %v1091, %v1090
      %v1186 = vpack.c.b16 %v1093, %v1092
      %v1187 = vpack.c.b16 %v1095, %v1094
      %v1188 = vpack.c.b16 %v1097, %v1096
      %v1189 = vpack.c.b16 %v1099, %v1098
      %v1190 = vpack.c.b16 %v1101, %v1100
      %v1191 = vpack.c.b16 %v1103, %v1102
      %v1192 = vpack.c.b16 %v1105, %v1104
      %v1193 = vpack.c.b16 %v1107, %v1106
      %v1194 = vpack.c.b16 %v1109, %v1108
      %v1195 = vpack.c.b16 %v1111, %v1110
      %v1196 = vpack.c.b16 %v1113, %v1112
      %v1197 = vpack.c.b16 %v1115, %v1114
      %v1198 = vpack.c.b16 %v1117, %v1116
      %v1199 = vpack.c.b16 %v1119, %v1118
      %v1200 = vpack.c.b16 %v1121, %v1120
      %v1201 = vpack.c.b16 %v1123, %v1122
      %v1202 = vpack.c.b16 %v1125, %v1124
      %v1203 = vpack.c.b16 %v1127, %v1126
      %v1204 = vpack.c.b16 %v1129, %v1128
      %v1205 = vpack.c.b16 %v1131, %v1130
      %v1206 = vpack.c.b16 %v1133, %v1132
      %v1207 = vpack.c.b16 %v1135, %v1134
      %1280 = vmatprep.subr.bf16.mxu0 0
      %1281 = vmatpush1.bf16.msra.mxu0 %v1136
      %1282 = vmatprep.subr.bf16.mxu0 0
      %1283 = vmatpush1.bf16.msra.mxu0 %v1137
      %1284 = vmatprep.subr.bf16.mxu0 0
      %1285 = vmatpush1.bf16.msra.mxu0 %v1138
      %1286 = vmatprep.subr.bf16.mxu0 0
      %1287 = vmatpush1.bf16.msra.mxu0 %v1139
      %1288 = vmatprep.subr.bf16.mxu0 0
      %1289 = vmatpush1.bf16.msra.mxu0 %v1140
      %1290 = vmatprep.subr.bf16.mxu0 0
      %1291 = vmatpush1.bf16.msra.mxu0 %v1141
      %1292 = vmatprep.subr.bf16.mxu0 0
      %1293 = vmatpush1.bf16.msra.mxu0 %v1142
      %1294 = vmatprep.subr.bf16.mxu0 0
      %1295 = vmatpush1.bf16.msra.mxu0 %v1143
      %1296 = vmatprep.subr.bf16.mxu0 0
      %1297 = vmatpush1.bf16.msra.mxu0 %v1144
      %1298 = vmatprep.subr.bf16.mxu0 0
      %1299 = vmatpush1.bf16.msra.mxu0 %v1145
      %1300 = vmatprep.subr.bf16.mxu0 0
      %1301 = vmatpush1.bf16.msra.mxu0 %v1146
      %1302 = vmatprep.subr.bf16.mxu0 0
      %1303 = vmatpush1.bf16.msra.mxu0 %v1147
      %1304 = vmatprep.subr.bf16.mxu0 0
      %1305 = vmatpush1.bf16.msra.mxu0 %v1148
      %1306 = vmatprep.subr.bf16.mxu0 0
      %1307 = vmatpush1.bf16.msra.mxu0 %v1149
      %1308 = vmatprep.subr.bf16.mxu0 0
      %1309 = vmatpush1.bf16.msra.mxu0 %v1150
      %1310 = vmatprep.subr.bf16.mxu0 0
      %1311 = vmatpush1.bf16.msra.mxu0 %v1151
      %1312 = vmatprep.mubr.bf16.mxu0 %v777
      %1313 = vmatmul.mubr.bf16.gmra.mrb[0].mxu0 %v776
      %v1314 = vpop.f32.mrb[0].mxu0
      %v1315 = vadd.f32 0.0, %v1314
      %v1316 = vpop.f32.mrb[0].mxu0
      %v1317 = vpop.f32.mrb[0].mxu0
      %v1318 = vadd.f32 0.0, %v1317
      %v1319 = vpop.f32.mrb[0].mxu0
      %1320 = vmatprep.mubr.bf16.mxu0 %v786
      %1321 = vmatmul.mubr.bf16.gmra.mrb[0].mxu0 %v785
      %v1322 = vpop.f32.mrb[0].mxu0
      %v1323 = vadd.f32 0.0, %v1322
      %v1324 = vpop.f32.mrb[0].mxu0
      %v1325 = vpop.f32.mrb[0].mxu0
      %v1326 = vadd.f32 0.0, %v1325
      %v1327 = vpop.f32.mrb[0].mxu0
      %1328 = vmatprep.mubr.bf16.mxu0 %v795
      %1329 = vmatmul.mubr.bf16.gmra.mrb[0].mxu0 %v794
      %v1330 = vpop.f32.mrb[0].mxu0
      %v1331 = vadd.f32 0.0, %v1330
      %v1332 = vpop.f32.mrb[0].mxu0
      %v1333 = vpop.f32.mrb[0].mxu0
      %v1334 = vadd.f32 0.0, %v1333
      %v1335 = vpop.f32.mrb[0].mxu0
      %1336 = vmatprep.mubr.bf16.mxu0 %v804
      %1337 = vmatmul.mubr.bf16.gmra.mrb[0].mxu0 %v803
      %v1338 = vpop.f32.mrb[0].mxu0
      %v1339 = vadd.f32 0.0, %v1338
      %v1340 = vpop.f32.mrb[0].mxu0
      %v1341 = vpop.f32.mrb[0].mxu0
      %v1342 = vadd.f32 0.0, %v1341
      %v1343 = vpop.f32.mrb[0].mxu0
      %1344 = vdwg.mxu0
      %1345 = vmatprep.subr.bf16.mxu0 0
      %1346 = vmatpush1.bf16.msra.mxu0 %v1152
      %1347 = vmatprep.subr.bf16.mxu0 0
      %1348 = vmatpush1.bf16.msra.mxu0 %v1153
      %1349 = vmatprep.subr.bf16.mxu0 0
      %1350 = vmatpush1.bf16.msra.mxu0 %v1154
      %1351 = vmatprep.subr.bf16.mxu0 0
      %1352 = vmatpush1.bf16.msra.mxu0 %v1155
      %1353 = vmatprep.subr.bf16.mxu0 0
      %1354 = vmatpush1.bf16.msra.mxu0 %v1156
      %1355 = vmatprep.subr.bf16.mxu0 0
      %1356 = vmatpush1.bf16.msra.mxu0 %v1157
      %1357 = vmatprep.subr.bf16.mxu0 0
      %1358 = vmatpush1.bf16.msra.mxu0 %v1158
      %1359 = vmatprep.subr.bf16.mxu0 0
      %1360 = vmatpush1.bf16.msra.mxu0 %v1159
      %1361 = vmatprep.subr.bf16.mxu0 0
      %1362 = vmatpush1.bf16.msra.mxu0 %v1160
      %1363 = vmatprep.subr.bf16.mxu0 0
      %1364 = vmatpush1.bf16.msra.mxu0 %v1161
      %1365 = vmatprep.subr.bf16.mxu0 0
      %1366 = vmatpush1.bf16.msra.mxu0 %v1162
      %1367 = vmatprep.subr.bf16.mxu0 0
      %1368 = vmatpush1.bf16.msra.mxu0 %v1163
      %1369 = vmatprep.subr.bf16.mxu0 0
      %1370 = vmatpush1.bf16.msra.mxu0 %v1164
      %1371 = vmatprep.subr.bf16.mxu0 0
      %1372 = vmatpush1.bf16.msra.mxu0 %v1165
      %1373 = vmatprep.subr.bf16.mxu0 0
      %1374 = vmatpush1.bf16.msra.mxu0 %v1166
      %1375 = vmatprep.subr.bf16.mxu0 0
      %1376 = vmatpush1.bf16.msra.mxu0 %v1167
      %1377 = vmatprep.mubr.bf16.mxu0 %v779
      %1378 = vmatmul.mubr.bf16.gmra.mrb[0].mxu0 %v778
      %v1379 = vpop.f32.mrb[0].mxu0
      %v1380 = vadd.f32 %v1315, %v1379
      %v1381 = vpop.f32.mrb[0].mxu0
      %v1382 = vpop.f32.mrb[0].mxu0
      %v1383 = vadd.f32 %v1318, %v1382
      %v1384 = vpop.f32.mrb[0].mxu0
      %1385 = vmatprep.mubr.bf16.mxu0 %v788
      %1386 = vmatmul.mubr.bf16.gmra.mrb[0].mxu0 %v787
      %v1387 = vpop.f32.mrb[0].mxu0
      %v1388 = vadd.f32 %v1323, %v1387
      %v1389 = vpop.f32.mrb[0].mxu0
      %v1390 = vpop.f32.mrb[0].mxu0
      %v1391 = vadd.f32 %v1326, %v1390
      %v1392 = vpop.f32.mrb[0].mxu0
      %1393 = vmatprep.mubr.bf16.mxu0 %v797
      %1394 = vmatmul.mubr.bf16.gmra.mrb[0].mxu0 %v796
      %v1395 = vpop.f32.mrb[0].mxu0
      %v1396 = vadd.f32 %v1331, %v1395
      %v1397 = vpop.f32.mrb[0].mxu0
      %v1398 = vpop.f32.mrb[0].mxu0
      %v1399 = vadd.f32 %v1334, %v1398
      %v1400 = vpop.f32.mrb[0].mxu0
      %1401 = vmatprep.mubr.bf16.mxu0 %v806
      %1402 = vmatmul.mubr.bf16.gmra.mrb[0].mxu0 %v805
      %v1403 = vpop.f32.mrb[0].mxu0
      %v1404 = vadd.f32 %v1339, %v1403
      %v1405 = vpop.f32.mrb[0].mxu0
      %v1406 = vpop.f32.mrb[0].mxu0
      %v1407 = vadd.f32 %v1342, %v1406
      %v1408 = vpop.f32.mrb[0].mxu0
      %1409 = vdwg.mxu0
      %1410 = vmatprep.subr.bf16.mxu0 0
      %1411 = vmatpush1.bf16.msra.mxu0 %v1168
      %1412 = vmatprep.subr.bf16.mxu0 0
      %1413 = vmatpush1.bf16.msra.mxu0 %v1169
      %1414 = vmatprep.subr.bf16.mxu0 0
      %1415 = vmatpush1.bf16.msra.mxu0 %v1170
      %1416 = vmatprep.subr.bf16.mxu0 0
      %1417 = vmatpush1.bf16.msra.mxu0 %v1171
      %1418 = vmatprep.subr.bf16.mxu0 0
      %1419 = vmatpush1.bf16.msra.mxu0 %v1172
      %1420 = vmatprep.subr.bf16.mxu0 0
      %1421 = vmatpush1.bf16.msra.mxu0 %v1173
      %1422 = vmatprep.subr.bf16.mxu0 0
      %1423 = vmatpush1.bf16.msra.mxu0 %v1174
      %1424 = vmatprep.subr.bf16.mxu0 0
      %1425 = vmatpush1.bf16.msra.mxu0 %v1175
      %1426 = vmatprep.subr.bf16.mxu0 0
      %1427 = vmatpush1.bf16.msra.mxu0 %v1176
      %1428 = vmatprep.subr.bf16.mxu0 0
      %1429 = vmatpush1.bf16.msra.mxu0 %v1177
      %1430 = vmatprep.subr.bf16.mxu0 0
      %1431 = vmatpush1.bf16.msra.mxu0 %v1178
      %1432 = vmatprep.subr.bf16.mxu0 0
      %1433 = vmatpush1.bf16.msra.mxu0 %v1179
      %1434 = vmatprep.subr.bf16.mxu0 0
      %1435 = vmatpush1.bf16.msra.mxu0 %v1180
      %1436 = vmatprep.subr.bf16.mxu0 0
      %1437 = vmatpush1.bf16.msra.mxu0 %v1181
      %1438 = vmatprep.subr.bf16.mxu0 0
      %1439 = vmatpush1.bf16.msra.mxu0 %v1182
      %1440 = vmatprep.subr.bf16.mxu0 0
      %1441 = vmatpush1.bf16.msra.mxu0 %v1183
      %1442 = vmatprep.mubr.bf16.mxu0 %v781
      %1443 = vmatmul.mubr.bf16.gmra.mrb[0].mxu0 %v780
      %v1444 = vpop.f32.mrb[0].mxu0
      %v1445 = vadd.f32 %v1380, %v1444
      %v1446 = vpop.f32.mrb[0].mxu0
      %v1447 = vpop.f32.mrb[0].mxu0
      %v1448 = vadd.f32 %v1383, %v1447
      %v1449 = vpop.f32.mrb[0].mxu0
      %1450 = vmatprep.mubr.bf16.mxu0 %v790
      %1451 = vmatmul.mubr.bf16.gmra.mrb[0].mxu0 %v789
      %v1452 = vpop.f32.mrb[0].mxu0
      %v1453 = vadd.f32 %v1388, %v1452
      %v1454 = vpop.f32.mrb[0].mxu0
      %v1455 = vpop.f32.mrb[0].mxu0
      %v1456 = vadd.f32 %v1391, %v1455
      %v1457 = vpop.f32.mrb[0].mxu0
      %1458 = vmatprep.mubr.bf16.mxu0 %v799
      %1459 = vmatmul.mubr.bf16.gmra.mrb[0].mxu0 %v798
      %v1460 = vpop.f32.mrb[0].mxu0
      %v1461 = vadd.f32 %v1396, %v1460
      %v1462 = vpop.f32.mrb[0].mxu0
      %v1463 = vpop.f32.mrb[0].mxu0
      %v1464 = vadd.f32 %v1399, %v1463
      %v1465 = vpop.f32.mrb[0].mxu0
      %1466 = vmatprep.mubr.bf16.mxu0 %v808
      %1467 = vmatmul.mubr.bf16.gmra.mrb[0].mxu0 %v807
      %v1468 = vpop.f32.mrb[0].mxu0
      %v1469 = vadd.f32 %v1404, %v1468
      %v1470 = vpop.f32.mrb[0].mxu0
      %v1471 = vpop.f32.mrb[0].mxu0
      %v1472 = vadd.f32 %v1407, %v1471
      %v1473 = vpop.f32.mrb[0].mxu0
      %1474 = vdwg.mxu0
      %1475 = vmatprep.subr.bf16.mxu0 0
      %1476 = vmatpush1.bf16.msra.mxu0 %v1184
      %1477 = vmatprep.subr.bf16.mxu0 0
      %1478 = vmatpush1.bf16.msra.mxu0 %v1185
      %1479 = vmatprep.subr.bf16.mxu0 0
      %1480 = vmatpush1.bf16.msra.mxu0 %v1186
      %1481 = vmatprep.subr.bf16.mxu0 0
      %1482 = vmatpush1.bf16.msra.mxu0 %v1187
      %1483 = vmatprep.subr.bf16.mxu0 0
      %1484 = vmatpush1.bf16.msra.mxu0 %v1188
      %1485 = vmatprep.subr.bf16.mxu0 0
      %1486 = vmatpush1.bf16.msra.mxu0 %v1189
      %1487 = vmatprep.subr.bf16.mxu0 0
      %1488 = vmatpush1.bf16.msra.mxu0 %v1190
      %1489 = vmatprep.subr.bf16.mxu0 0
      %1490 = vmatpush1.bf16.msra.mxu0 %v1191
      %1491 = vmatprep.subr.bf16.mxu0 0
      %1492 = vmatpush1.bf16.msra.mxu0 %v1192
      %1493 = vmatprep.subr.bf16.mxu0 0
      %1494 = vmatpush1.bf16.msra.mxu0 %v1193
      %1495 = vmatprep.subr.bf16.mxu0 0
      %1496 = vmatpush1.bf16.msra.mxu0 %v1194
      %1497 = vmatprep.subr.bf16.mxu0 0
      %1498 = vmatpush1.bf16.msra.mxu0 %v1195
      %1499 = vmatprep.subr.bf16.mxu0 0
      %1500 = vmatpush1.bf16.msra.mxu0 %v1196
      %1501 = vmatprep.subr.bf16.mxu0 0
      %1502 = vmatpush1.bf16.msra.mxu0 %v1197
      %1503 = vmatprep.subr.bf16.mxu0 0
      %1504 = vmatpush1.bf16.msra.mxu0 %v1198
      %1505 = vmatprep.subr.bf16.mxu0 0
      %1506 = vmatpush1.bf16.msra.mxu0 %v1199
      %1507 = vmatprep.mubr.bf16.mxu0 %v783
      %1508 = vmatmul.mubr.bf16.gmra.mrb[0].mxu0 %v782
      %v1509 = vpop.f32.mrb[0].mxu0
      %v1510 = vadd.f32 %v1445, %v1509
      %v1511 = vpop.f32.mrb[0].mxu0
      %v1512 = vpop.f32.mrb[0].mxu0
      %v1513 = vadd.f32 %v1448, %v1512
      %v1514 = vpop.f32.mrb[0].mxu0
      %1515 = vmatprep.mubr.bf16.mxu0 %v792
      %1516 = vmatmul.mubr.bf16.gmra.mrb[0].mxu0 %v791
      %v1517 = vpop.f32.mrb[0].mxu0
      %v1518 = vadd.f32 %v1453, %v1517
      %v1519 = vpop.f32.mrb[0].mxu0
      %v1520 = vpop.f32.mrb[0].mxu0
      %v1521 = vadd.f32 %v1456, %v1520
      %v1522 = vpop.f32.mrb[0].mxu0
      %1523 = vmatprep.mubr.bf16.mxu0 %v801
      %1524 = vmatmul.mubr.bf16.gmra.mrb[0].mxu0 %v800
      %v1525 = vpop.f32.mrb[0].mxu0
      %v1526 = vadd.f32 %v1461, %v1525
      %v1527 = vpop.f32.mrb[0].mxu0
      %v1528 = vpop.f32.mrb[0].mxu0
      %v1529 = vadd.f32 %v1464, %v1528
      %v1530 = vpop.f32.mrb[0].mxu0
      %1531 = vmatprep.mubr.bf16.mxu0 %v810
      %1532 = vmatmul.mubr.bf16.gmra.mrb[0].mxu0 %v809
      %v1533 = vpop.f32.mrb[0].mxu0
      %v1534 = vadd.f32 %v1469, %v1533
      %v1535 = vpop.f32.mrb[0].mxu0
      %v1536 = vpop.f32.mrb[0].mxu0
      %v1537 = vadd.f32 %v1472, %v1536
      %v1538 = vpop.f32.mrb[0].mxu0
      %1539 = vdwg.mxu0
      %1540 = vmatprep.subr.bf16.mxu0 0
      %1541 = vmatpush1.bf16.msra.mxu0 %v1200
      %1542 = vmatprep.subr.bf16.mxu0 0
      %1543 = vmatpush1.bf16.msra.mxu0 %v1201
      %1544 = vmatprep.subr.bf16.mxu0 0
      %1545 = vmatpush1.bf16.msra.mxu0 %v1202
      %1546 = vmatprep.subr.bf16.mxu0 0
      %1547 = vmatpush1.bf16.msra.mxu0 %v1203
      %1548 = vmatprep.subr.bf16.mxu0 0
      %1549 = vmatpush1.bf16.msra.mxu0 %v1204
      %1550 = vmatprep.subr.bf16.mxu0 0
      %1551 = vmatpush1.bf16.msra.mxu0 %v1205
      %1552 = vmatprep.subr.bf16.mxu0 0
      %1553 = vmatpush1.bf16.msra.mxu0 %v1206
      %1554 = vmatprep.subr.bf16.mxu0 0
      %1555 = vmatpush1.bf16.msra.mxu0 %v1207
      %1556 = vmatprep.subr.bf16.mxu0 0
      %1557 = vmatpush1.bf16.msra.mxu0 0
      %1558 = vmatprep.subr.bf16.mxu0 0
      %1559 = vmatpush1.bf16.msra.mxu0 0
      %1560 = vmatprep.subr.bf16.mxu0 0
      %1561 = vmatpush1.bf16.msra.mxu0 0
      %1562 = vmatprep.subr.bf16.mxu0 0
      %1563 = vmatpush1.bf16.msra.mxu0 0
      %1564 = vmatprep.subr.bf16.mxu0 0
      %1565 = vmatpush1.bf16.msra.mxu0 0
      %1566 = vmatprep.subr.bf16.mxu0 0
      %1567 = vmatpush1.bf16.msra.mxu0 0
      %1568 = vmatprep.subr.bf16.mxu0 0
      %1569 = vmatpush1.bf16.msra.mxu0 0
      %1570 = vmatprep.subr.bf16.mxu0 0
      %1571 = vmatpush1.bf16.msra.mxu0 0
      %1572 = vmatprep.mubr.bf16.mxu0 0
      %1573 = vmatmul.mubr.bf16.gmra.mrb[0].mxu0 %v784
      %v1574 = vpop.f32.mrb[0].mxu0
      %v1575 = vadd.f32 %v1510, %v1574
      %v1576 = vpop.f32.mrb[0].mxu0
      %v1577 = vpop.f32.mrb[0].mxu0
      %v1578 = vadd.f32 %v1513, %v1577
      %v1579 = vpop.f32.mrb[0].mxu0
      %1580 = vmatprep.mubr.bf16.mxu0 0
      %1581 = vmatmul.mubr.bf16.gmra.mrb[0].mxu0 %v793
      %v1582 = vpop.f32.mrb[0].mxu0
      %v1583 = vadd.f32 %v1518, %v1582
      %v1584 = vpop.f32.mrb[0].mxu0
      %v1585 = vpop.f32.mrb[0].mxu0
      %v1586 = vadd.f32 %v1521, %v1585
      %v1587 = vpop.f32.mrb[0].mxu0
      %1588 = vmatprep.mubr.bf16.mxu0 0
      %1589 = vmatmul.mubr.bf16.gmra.mrb[0].mxu0 %v802
      %v1590 = vpop.f32.mrb[0].mxu0
      %v1591 = vadd.f32 %v1526, %v1590
      %v1592 = vpop.f32.mrb[0].mxu0
      %v1593 = vpop.f32.mrb[0].mxu0
      %v1594 = vadd.f32 %v1529, %v1593
      %v1595 = vpop.f32.mrb[0].mxu0
      %1596 = vmatprep.mubr.bf16.mxu0 0
      %1597 = vmatmul.mubr.bf16.gmra.mrb[0].mxu0 %v811
      %v1598 = vpop.f32.mrb[0].mxu0
      %v1599 = vadd.f32 %v1534, %v1598
      %v1600 = vpop.f32.mrb[0].mxu0
      %v1601 = vpop.f32.mrb[0].mxu0
      %v1602 = vadd.f32 %v1537, %v1601
      %v1603 = vpop.f32.mrb[0].mxu0
      %1604 = vdwg.mxu0
      %v1605 = vld [vmem:[%s457] sm:$0xf]
      %v1606 = vld [vmem:[%s457 + $0x4] sm:$0xf]
      %v1607 = vld [vmem:[%s457 + $0x8] sm:$0xf]
      %v1608 = vld [vmem:[%s457 + $0xc] sm:$0xf]
      %v1609 = vld [vmem:[%s457 + $0x10] sm:$0xf]
      %v1610 = vld [vmem:[%s457 + $0x14] sm:$0xf]
      %v1611 = vld [vmem:[%s457 + $0x18] sm:$0xf]
      %v1612 = vld [vmem:[%s457 + $0x1c] sm:$0xf]
      %v1613 = vld [vmem:[%s5] sm:$0xf]
      %v1614 = vld [vmem:[%s5 + $0x4] sm:$0xf]
      %v1615 = vld [vmem:[%s5 + $0x8] sm:$0xf]
      %v1616 = vld [vmem:[%s5 + $0xc] sm:$0xf]
      %v1617 = vld [vmem:[%s5 + $0x10] sm:$0xf]
      %v1618 = vld [vmem:[%s5 + $0x14] sm:$0xf]
      %v1619 = vld [vmem:[%s5 + $0x18] sm:$0xf]
      %v1620 = vld [vmem:[%s5 + $0x1c] sm:$0xf]
      %v1621 = vld [vmem:[%s5 + $0x20] sm:$0xf]
      %v1622 = vld [vmem:[%s5 + $0x24] sm:$0xf]
      %v1623 = vld [vmem:[%s5 + $0x28] sm:$0xf]
      %v1624 = vld [vmem:[%s5 + $0x2c] sm:$0xf]
      %v1625 = vld [vmem:[%s5 + $0x30] sm:$0xf]
      %v1626 = vld [vmem:[%s5 + $0x34] sm:$0xf]
      %v1627 = vld [vmem:[%s5 + $0x38] sm:$0xf]
      %v1628 = vld [vmem:[%s5 + $0x3c] sm:$0xf]
      %v1637 = vunpack.c.l.b16 %v1605
      %v1638 = vunpack.c.l.b16 %v1606
      %v1639 = vunpack.c.l.b16 %v1607
      %v1640 = vunpack.c.l.b16 %v1608
      %v1641 = vunpack.c.l.b16 %v1609
      %v1642 = vunpack.c.l.b16 %v1610
      %v1643 = vunpack.c.l.b16 %v1611
      %v1644 = vunpack.c.l.b16 %v1612
      %v1645 = vpack.c.b16 %v1638, %v1637
      %v1646 = vpack.c.b16 %v1640, %v1639
      %v1647 = vpack.c.b16 %v1642, %v1641
      %v1648 = vpack.c.b16 %v1644, %v1643
      %v1669 = vunpack.c.l.b16 %v1613
      %v1670 = vunpack.c.l.b16 %v1614
      %v1671 = vunpack.c.l.b16 %v1615
      %v1672 = vunpack.c.l.b16 %v1616
      %v1673 = vunpack.c.l.b16 %v1617
      %v1674 = vunpack.c.l.b16 %v1618
      %v1675 = vunpack.c.l.b16 %v1619
      %v1676 = vunpack.c.l.b16 %v1620
      %v1677 = vunpack.c.l.b16 %v1621
      %v1678 = vunpack.c.l.b16 %v1622
      %v1679 = vunpack.c.l.b16 %v1623
      %v1680 = vunpack.c.l.b16 %v1624
      %v1681 = vunpack.c.l.b16 %v1625
      %v1682 = vunpack.c.l.b16 %v1626
      %v1683 = vunpack.c.l.b16 %v1627
      %v1684 = vunpack.c.l.b16 %v1628
      %v1685 = vpack.c.b16 %v1670, %v1669
      %v1686 = vpack.c.b16 %v1672, %v1671
      %v1687 = vpack.c.b16 %v1674, %v1673
      %v1688 = vpack.c.b16 %v1676, %v1675
      %v1689 = vpack.c.b16 %v1678, %v1677
      %v1690 = vpack.c.b16 %v1680, %v1679
      %v1691 = vpack.c.b16 %v1682, %v1681
      %v1692 = vpack.c.b16 %v1684, %v1683
      %1701 = vmatprep.subr.bf16.mxu0 0
      %1702 = vmatpush1.bf16.msra.mxu0 %v1685
      %1703 = vmatprep.subr.bf16.mxu0 0
      %1704 = vmatpush1.bf16.msra.mxu0 %v1686
      %1705 = vmatprep.subr.bf16.mxu0 0
      %1706 = vmatpush1.bf16.msra.mxu0 %v1687
      %1707 = vmatprep.subr.bf16.mxu0 0
      %1708 = vmatpush1.bf16.msra.mxu0 %v1688
      %1709 = vmatprep.subr.bf16.mxu0 0
      %1710 = vmatpush1.bf16.msra.mxu0 %v1689
      %1711 = vmatprep.subr.bf16.mxu0 0
      %1712 = vmatpush1.bf16.msra.mxu0 %v1690
      %1713 = vmatprep.subr.bf16.mxu0 0
      %1714 = vmatpush1.bf16.msra.mxu0 %v1691
      %1715 = vmatprep.subr.bf16.mxu0 0
      %1716 = vmatpush1.bf16.msra.mxu0 %v1692
      %1717 = vmatprep.subr.bf16.mxu0 0
      %1718 = vmatpush1.bf16.msra.mxu0 0
      %1719 = vmatprep.subr.bf16.mxu0 0
      %1720 = vmatpush1.bf16.msra.mxu0 0
      %1721 = vmatprep.subr.bf16.mxu0 0
      %1722 = vmatpush1.bf16.msra.mxu0 0
      %1723 = vmatprep.subr.bf16.mxu0 0
      %1724 = vmatpush1.bf16.msra.mxu0 0
      %1725 = vmatprep.subr.bf16.mxu0 0
      %1726 = vmatpush1.bf16.msra.mxu0 0
      %1727 = vmatprep.subr.bf16.mxu0 0
      %1728 = vmatpush1.bf16.msra.mxu0 0
      %1729 = vmatprep.subr.bf16.mxu0 0
      %1730 = vmatpush1.bf16.msra.mxu0 0
      %1731 = vmatprep.subr.bf16.mxu0 0
      %1732 = vmatpush1.bf16.msra.mxu0 0
      %1733 = vmatprep.mubr.bf16.mxu0 0
      %1734 = vmatmul.mubr.bf16.gmra.mrb[0].mxu0 %v1645
      %v1735 = vpop.f32.mrb[0].mxu0
      %v1736 = vadd.f32 0.0, %v1735
      %v1737 = vpop.f32.mrb[0].mxu0
      %v1738 = vpop.f32.mrb[0].mxu0
      %v1739 = vadd.f32 0.0, %v1738
      %v1740 = vpop.f32.mrb[0].mxu0
      %1741 = vmatprep.mubr.bf16.mxu0 0
      %1742 = vmatmul.mubr.bf16.gmra.mrb[0].mxu0 %v1646
      %v1743 = vpop.f32.mrb[0].mxu0
      %v1744 = vadd.f32 0.0, %v1743
      %v1745 = vpop.f32.mrb[0].mxu0
      %v1746 = vpop.f32.mrb[0].mxu0
      %v1747 = vadd.f32 0.0, %v1746
      %v1748 = vpop.f32.mrb[0].mxu0
      %1749 = vmatprep.mubr.bf16.mxu0 0
      %1750 = vmatmul.mubr.bf16.gmra.mrb[0].mxu0 %v1647
      %v1751 = vpop.f32.mrb[0].mxu0
      %v1752 = vadd.f32 0.0, %v1751
      %v1753 = vpop.f32.mrb[0].mxu0
      %v1754 = vpop.f32.mrb[0].mxu0
      %v1755 = vadd.f32 0.0, %v1754
      %v1756 = vpop.f32.mrb[0].mxu0
      %1757 = vmatprep.mubr.bf16.mxu0 0
      %1758 = vmatmul.mubr.bf16.gmra.mrb[0].mxu0 %v1648
      %v1759 = vpop.f32.mrb[0].mxu0
      %v1760 = vadd.f32 0.0, %v1759
      %v1761 = vpop.f32.mrb[0].mxu0
      %v1762 = vpop.f32.mrb[0].mxu0
      %v1763 = vadd.f32 0.0, %v1762
      %v1764 = vpop.f32.mrb[0].mxu0
      %1765 = vdwg.mxu0
      %1766 = vst [vmem:[%s463] sm:$0xff] %v1575
      %1767 = vst [vmem:[%s463 + $0x8] sm:$0xff] %v1578
      %1768 = vst [vmem:[%s463 + $0x10] sm:$0xff] %v1583
      %1769 = vst [vmem:[%s463 + $0x18] sm:$0xff] %v1586
      %1770 = vst [vmem:[%s463 + $0x20] sm:$0xff] %v1591
      %1771 = vst [vmem:[%s463 + $0x28] sm:$0xff] %v1594
      %1772 = vst [vmem:[%s463 + $0x30] sm:$0xff] %v1599
      %1773 = vst [vmem:[%s463 + $0x38] sm:$0xff] %v1602
      %1774 = vst [vmem:[%s469] sm:$0xff] %v1736
      %1775 = vst [vmem:[%s469 + $0x8] sm:$0xff] %v1739
      %1776 = vst [vmem:[%s469 + $0x10] sm:$0xff] %v1744
      %1777 = vst [vmem:[%s469 + $0x18] sm:$0xff] %v1747
      %1778 = vst [vmem:[%s469 + $0x20] sm:$0xff] %v1752
      %1779 = vst [vmem:[%s469 + $0x28] sm:$0xff] %v1755
      %1780 = vst [vmem:[%s469 + $0x30] sm:$0xff] %v1760
      %1781 = vst [vmem:[%s469 + $0x38] sm:$0xff] %v1763
      %v1782 = vld [vmem:[%s10] sm:$0x1]
      %v1783 = vadd.f32 %v1575, %v1578
      %v1784 = vadd.f32 %v1783, %v1583
      %v1785 = vadd.f32 %v1784, %v1586
      %v1786 = vadd.f32 %v1785, %v1591
      %v1787 = vadd.f32 %v1786, %v1594
      %v1788 = vadd.f32 %v1787, %v1599
      %v1789 = vadd.f32 %v1788, %v1602
      %v1790 = vrot.slane %v1789, 4
      %v1791 = vadd.f32 %v1789, %v1790
      %v1792 = vrot.slane %v1791, 2
      %v1793 = vadd.f32 %v1791, %v1792
      %v1794 = vrot.slane %v1793, 1
      %v1795 = vadd.f32 %v1793, %v1794
      %v1796 = vadd.f32 %v1782, %v1795
      %1797 = vst [vmem:[%s10] sm:$0x1] %v1796
      %v1798 = vld [vmem:[%s11] sm:$0x1]
      %v1799 = vmul.f32 %v1575, %v1575
      %v1800 = vmul.f32 %v1578, %v1578
      %v1801 = vmul.f32 %v1583, %v1583
      %v1802 = vmul.f32 %v1586, %v1586
      %v1803 = vmul.f32 %v1591, %v1591
      %v1804 = vmul.f32 %v1594, %v1594
      %v1805 = vmul.f32 %v1599, %v1599
      %v1806 = vmul.f32 %v1602, %v1602
      %v1807 = vadd.f32 %v1799, %v1800
      %v1808 = vadd.f32 %v1807, %v1801
      %v1809 = vadd.f32 %v1808, %v1802
      %v1810 = vadd.f32 %v1809, %v1803
      %v1811 = vadd.f32 %v1810, %v1804
      %v1812 = vadd.f32 %v1811, %v1805
      %v1813 = vadd.f32 %v1812, %v1806
      %v1814 = vrot.slane %v1813, 4
      %v1815 = vadd.f32 %v1813, %v1814
      %v1816 = vrot.slane %v1815, 2
      %v1817 = vadd.f32 %v1815, %v1816
      %v1818 = vrot.slane %v1817, 1
      %v1819 = vadd.f32 %v1817, %v1818
      %v1820 = vadd.f32 %v1798, %v1819
      %1821 = vst [vmem:[%s11] sm:$0x1] %v1820
      %v1822 = vld [vmem:[%s12] sm:$0x1]
      %v1823 = vadd.f32 %v1736, %v1739
      %v1824 = vadd.f32 %v1823, %v1744
      %v1825 = vadd.f32 %v1824, %v1747
      %v1826 = vadd.f32 %v1825, %v1752
      %v1827 = vadd.f32 %v1826, %v1755
      %v1828 = vadd.f32 %v1827, %v1760
      %v1829 = vadd.f32 %v1828, %v1763
      %v1830 = vrot.slane %v1829, 4
      %v1831 = vadd.f32 %v1829, %v1830
      %v1832 = vrot.slane %v1831, 2
      %v1833 = vadd.f32 %v1831, %v1832
      %v1834 = vrot.slane %v1833, 1
      %v1835 = vadd.f32 %v1833, %v1834
      %v1836 = vadd.f32 %v1822, %v1835
      %1837 = vst [vmem:[%s12] sm:$0x1] %v1836
      %v1838 = vld [vmem:[%s13] sm:$0x1]
      %v1839 = vmul.f32 %v1736, %v1736
      %v1840 = vmul.f32 %v1739, %v1739
      %v1841 = vmul.f32 %v1744, %v1744
      %v1842 = vmul.f32 %v1747, %v1747
      %v1843 = vmul.f32 %v1752, %v1752
      %v1844 = vmul.f32 %v1755, %v1755
      %v1845 = vmul.f32 %v1760, %v1760
      %v1846 = vmul.f32 %v1763, %v1763
      %v1847 = vadd.f32 %v1839, %v1840
      %v1848 = vadd.f32 %v1847, %v1841
      %v1849 = vadd.f32 %v1848, %v1842
      %v1850 = vadd.f32 %v1849, %v1843
      %v1851 = vadd.f32 %v1850, %v1844
      %v1852 = vadd.f32 %v1851, %v1845
      %v1853 = vadd.f32 %v1852, %v1846
      %v1854 = vrot.slane %v1853, 4
      %v1855 = vadd.f32 %v1853, %v1854
      %v1856 = vrot.slane %v1855, 2
      %v1857 = vadd.f32 %v1855, %v1856
      %v1858 = vrot.slane %v1857, 1
      %v1859 = vadd.f32 %v1857, %v1858
      %v1860 = vadd.f32 %v1838, %v1859
      %1861 = vst [vmem:[%s13] sm:$0x1] %v1860
      %p1862 = scmp.eq.s32.totalorder %s25, 1
      // Predicated region
      $region57: #{basic_block_forward.6} parent=51 // pred_check
        %p1863 = pneg %p1862
      $region58: #{basic_block_forward.6} parent=51 // pred_check_branch
        %1865 = sbr.rel (%p1863) target = $region60
      $region59: #{basic_block_forward.6} parent=51 // pred_region
        %v1866 = vld [vmem:[%s10] sm:$0x1]
        %v1867 = vmul.f32 %v1866, 0.0078125
        %v1868 = vld [vmem:[%s11] sm:$0x1]
        %v1869 = vmul.f32 %v1868, 0.0078125
        %v1870 = vmul.f32 %v1867, %v1867
        %v1871 = vsub.f32 %v1869, %v1870
        %v1872 = vmax.f32 %v1871, 0.0
        %v1873 = vld [vmem:[%s2] sm:$0x1]
        %v1874 = vadd.f32 %v1872, 1e-05
        %v1875 = vrsqrt.pop %v1874
        %v1876 = vmul.f32 %v1873, %v1875
        %v1877 = vld [vmem:[%s3] sm:$0x1]
        %v1878 = vmul.f32 %v1867, %v1876
        %v1879 = vsub.f32 %v1877, %v1878
        %1880 = vst [vmem:[%s10] sm:$0x1] %v1876
        %1881 = vst [vmem:[%s11] sm:$0x1] %v1879
        %v1882 = vld [vmem:[%s12] sm:$0x1]
        %v1883 = vmul.f32 %v1882, 0.0078125
        %v1884 = vld [vmem:[%s13] sm:$0x1]
        %v1885 = vmul.f32 %v1884, 0.0078125
        %v1886 = vmul.f32 %v1883, %v1883
        %v1887 = vsub.f32 %v1885, %v1886
        %v1888 = vmax.f32 %v1887, 0.0
        %v1889 = vld [vmem:[%s6] sm:$0x1]
        %v1890 = vadd.f32 %v1888, 1e-05
        %v1891 = vrsqrt.pop %v1890
        %v1892 = vmul.f32 %v1889, %v1891
        %v1893 = vld [vmem:[%s7] sm:$0x1]
        %v1894 = vmul.f32 %v1883, %v1892
        %v1895 = vsub.f32 %v1893, %v1894
        %1896 = vst [vmem:[%s12] sm:$0x1] %v1892
        %1897 = vst [vmem:[%s13] sm:$0x1] %v1895
      $region60: #{basic_block_forward.6} parent=51 // pred_fallthru
        _
      %s1898 = smul.u32 8, %s25
      %p1899 = scmp.lt.s32.totalorder %s1898, 15
      %s1900 = scalar_select %p1899, %s1898, 15
      %s1901 = smul.addr %s1900, 8
      %s1902 = scalar_lea.vmem %s8, %s1901
      %s1903 = smul.u32 8, %s25
      %p1904 = scmp.lt.s32.totalorder %s1903, 15
      %s1905 = scalar_select %p1904, %s1903, 15
      %s1906 = smul.addr %s1905, 8
      %s1907 = scalar_lea.vmem %s9, %s1906
      // Predicated region
      $region61: #{basic_block_forward.6} parent=51 // pred_check
        %p1908 = pneg %p221
      $region62: #{basic_block_forward.6} parent=51 // pred_check_branch
        %1910 = sbr.rel (%p1908) target = $region64
      $region63: #{basic_block_forward.6} parent=51 // pred_region
        %s1911 = smul.u32 8, %s25
      $region64: #{basic_block_forward.6} parent=51 // pred_fallthru
        _
      // Predicated region
      $region65: #{basic_block_forward.6} parent=51 // pred_check
        %p1912 = pneg %p247
      $region66: #{basic_block_forward.6} parent=51 // pred_check_branch
        %1914 = sbr.rel (%p1912) target = $region68
      $region67: #{basic_block_forward.6} parent=51 // pred_region
        %s1915 = smul.u32 8, %s25
      $region68: #{basic_block_forward.6} parent=51 // pred_fallthru
        _
      // Predicated region
      $region69: #{basic_block_forward.6} parent=51 // pred_check
        %p1916 = pneg %p268
      $region70: #{basic_block_forward.6} parent=51 // pred_check_branch
        %1918 = sbr.rel (%p1916) target = $region72
      $region71: #{basic_block_forward.6} parent=51 // pred_region
        _
      $region72: #{basic_block_forward.6} parent=51 // pred_fallthru
        _
      // Predicated region
      $region73: #{basic_block_forward.6} parent=51 // pred_check
        %p1919 = pneg %p289
      $region74: #{basic_block_forward.6} parent=51 // pred_check_branch
        %1921 = sbr.rel (%p1919) target = $region76
      $region75: #{basic_block_forward.6} parent=51 // pred_region
        _
      $region76: #{basic_block_forward.6} parent=51 // pred_fallthru
        _
      // Predicated region
      $region77: #{basic_block_forward.6} parent=51 // pred_check
        %p1922 = pneg %p310
      $region78: #{basic_block_forward.6} parent=51 // pred_check_branch
        %1924 = sbr.rel (%p1922) target = $region80
      $region79: #{basic_block_forward.6} parent=51 // pred_region
        _
      $region80: #{basic_block_forward.6} parent=51 // pred_fallthru
        _
      // Predicated region
      $region81: #{basic_block_forward.6} parent=51 // pred_check
        %p1925 = pneg %p331
      $region82: #{basic_block_forward.6} parent=51 // pred_check_branch
        %1927 = sbr.rel (%p1925) target = $region84
      $region83: #{basic_block_forward.6} parent=51 // pred_region
        _
      $region84: #{basic_block_forward.6} parent=51 // pred_fallthru
        _
      // Predicated region
      $region85: #{basic_block_forward.6} parent=51 // pred_check
        %p1928 = pneg %p268
      $region86: #{basic_block_forward.6} parent=51 // pred_check_branch
        %1930 = sbr.rel (%p1928) target = $region88
      $region87: #{basic_block_forward.6} parent=51 // pred_region
        _
      $region88: #{basic_block_forward.6} parent=51 // pred_fallthru
        _
      // Predicated region
      $region89: #{basic_block_forward.6} parent=51 // pred_check
        %p1931 = pneg %p289
      $region90: #{basic_block_forward.6} parent=51 // pred_check_branch
        %1933 = sbr.rel (%p1931) target = $region92
      $region91: #{basic_block_forward.6} parent=51 // pred_region
        _
      $region92: #{basic_block_forward.6} parent=51 // pred_fallthru
        _
      // Predicated region
      $region93: #{basic_block_forward.6} parent=51 // pred_check
        %p1934 = pneg %p310
      $region94: #{basic_block_forward.6} parent=51 // pred_check_branch
        %1936 = sbr.rel (%p1934) target = $region96
      $region95: #{basic_block_forward.6} parent=51 // pred_region
        _
      $region96: #{basic_block_forward.6} parent=51 // pred_fallthru
        _
      // Predicated region
      $region97: #{basic_block_forward.6} parent=51 // pred_check
        %p1937 = pneg %p331
      $region98: #{basic_block_forward.6} parent=51 // pred_check_branch
        %1939 = sbr.rel (%p1937) target = $region100
      $region99: #{basic_block_forward.6} parent=51 // pred_region
        _
      $region100: #{basic_block_forward.6} parent=51 // pred_fallthru
        _
    $region52: #{basic_block_forward.6} parent=5 // pred_fallthru
      _
    %p1940 = scmp.le.s32.totalorder 2, %s20
    // Predicated region
    $region101: #{basic_block_forward.6} parent=5 // pred_check
      %p1941 = pneg %p1940
    $region102: #{basic_block_forward.6} parent=5 // pred_check_branch
      %1943 = sbr.rel (%p1941) target = $region104
    $region103: #{basic_block_forward.6} parent=5 // pred_region
      %s1944 = ssub.s32 %s20, 2
      // Predicated region
      $region105: #{basic_block_forward.6} parent=103 // pred_check
        %p1945 = pneg %p227
      $region106: #{basic_block_forward.6} parent=103 // pred_check_branch
        %1947 = sbr.rel (%p1945) target = $region108
      $region107: #{basic_block_forward.6} parent=103 // pred_region
        %s1948 = smul.u32 8, %s26
        %p1949 = scmp.lt.s32.totalorder %s1948, 15
        %s1950 = scalar_select %p1949, %s1948, 15
        %s1951 = smul.addr %s1950, 8
        %s1952 = scalar_lea.vmem %s8, %s1951
      $region108: #{basic_block_forward.6} parent=103 // pred_fallthru
        _
      // Predicated region
      $region109: #{basic_block_forward.6} parent=103 // pred_check
        %p1953 = pneg %p253
      $region110: #{basic_block_forward.6} parent=103 // pred_check_branch
        %1955 = sbr.rel (%p1953) target = $region112
      $region111: #{basic_block_forward.6} parent=103 // pred_region
        %s1956 = smul.u32 8, %s26
        %p1957 = scmp.lt.s32.totalorder %s1956, 15
        %s1958 = scalar_select %p1957, %s1956, 15
        %s1959 = smul.addr %s1958, 8
        %s1960 = scalar_lea.vmem %s9, %s1959
      $region112: #{basic_block_forward.6} parent=103 // pred_fallthru
        _
    $region104: #{basic_block_forward.6} parent=5 // pred_fallthru
      _
  $region6: #{basic_block_forward.6} parent=0 // loop_footer
    %s24 = sadd.s32 1, %s20
  $region7: #{basic_block_forward.6} parent=0 // loop_footer_branch
    %19 = sbr.rel target = $region3
  $region8: #{basic_block_forward.6} parent=0 // loop_exit
    _

</llo_original>
